<compile_context>
chip_gen: v6e
topology: v6e:2x2x1
jax: 0.10.0
libtpu: 0.0.40
codegen_flags: <defaults>
</compile_context>

<pallas_src>
import math

import jax
import jax.numpy as jnp
import numpy as np
from jax.experimental import pallas as pl
from jax.experimental.pallas import tpu as pltpu

# ----------------------------- small BERT config -----------------------------
VOCAB = 100
HIDDEN = 32
N_HEADS = 4
HEAD_DIM = HIDDEN // N_HEADS
INTER = 64
N_LAYERS = 2
MAX_POS = 32
TYPE_VOCAB = 2
PAD_ID = 0
N_LABELS = 5
LN_EPS = 1e-12
LOGIT_PAD = 128  # lane-dense classifier output slab (sliced to N_LABELS in wrapper)

# row layout of the packed small-vector array ("vecs"):
#   rows [0, MAX_POS)            : position-embedding rows
#   row  EMB_G_ROW / EMB_B_ROW   : embedding LayerNorm gamma / beta
#   rows LAYER_VEC_BASE + 4*l .. : per-layer ln1g, ln1b, ln2g, ln2b
EMB_G_ROW = MAX_POS
EMB_B_ROW = MAX_POS + 1
LAYER_VEC_BASE = MAX_POS + 2


# ------------------------------- kernel helpers -------------------------------
def _layernorm(x, gamma, beta):
    # torch.nn.LayerNorm semantics: biased variance, eps inside sqrt.
    mean = jnp.mean(x, axis=-1, keepdims=True)
    var = jnp.mean(jnp.square(x - mean), axis=-1, keepdims=True)
    return (x - mean) * jax.lax.rsqrt(var + LN_EPS) * gamma + beta


_ERF_P = 0.3275911
_ERF_A = (0.254829592, -0.284496736, 1.421413741, -1.453152027, 1.061405429)


def _erf(x):
    # Abramowitz & Stegun 7.1.26 rational approximation, |error| <= 1.5e-7.
    # Implemented explicitly so the kernel only needs abs/div/exp/select (all with
    # robust Mosaic lowerings) while keeping nn.GELU()'s exact-erf semantics.
    a = jnp.abs(x)
    t = 1.0 / (1.0 + _ERF_P * a)
    a1, a2, a3, a4, a5 = _ERF_A
    poly = ((((a5 * t + a4) * t + a3) * t + a2) * t + a1) * t
    y = 1.0 - poly * jnp.exp(-(a * a))
    return jnp.where(x >= 0.0, y, -y)


def _gelu_exact(x):
    # nn.GELU() default = exact erf-based GELU.
    return 0.5 * x * (1.0 + _erf(x * (1.0 / math.sqrt(2.0))))


# --------------------------------- fused kernel --------------------------------
def bert_fused_kernel(ids_ref,      # SMEM (2, B*S) i32: row 0 = input_ids, row 1 = token_type_ids
                      mask_ref,     # VMEM (B, S) f32 attention mask (1 = attend)
                      table_ref,    # VMEM (VOCAB+TYPE_VOCAB, 1, H) word + token-type rows
                      vecs_ref,     # VMEM (42, H) pos rows + LayerNorm gammas/betas
                      wqkv_ref,     # VMEM (L, H+1, 3H) fused qkv weight, last row = bias (q pre-scaled)
                      wo_ref,       # VMEM (L, H+1, H)   attn output proj (+bias row)
                      wi_ref,       # VMEM (L, H+1, INTER)
                      w2_ref,       # VMEM (L, INTER+1, H)
                      wp_ref,       # VMEM (H+1, H)      pooler (+bias row)
                      wc_ref,       # VMEM (H+1, LOGIT_PAD) classifier, padded lanes (+bias row)
                      out_ref):     # VMEM (B, LOGIT_PAD)
    B, S = mask_ref.shape
    T = B * S
    H = HIDDEN

    def vrow(r):  # (1, H) row of the packed small-vector array (static index)
        return vecs_ref[r:r + 1, :]

    # ---- embeddings: word + token-type gathers (dynamic VMEM row reads) + position ----
    rows = []
    for b in range(B):
        for s in range(S):
            t = b * S + s
            wid = ids_ref[0, t]
            tid = ids_ref[1, t]
            rows.append(table_ref[wid] + table_ref[VOCAB + tid] + vrow(s))
    x = jnp.concatenate(rows, axis=0)                                   # (T, H)
    h = _layernorm(x, vrow(EMB_G_ROW), vrow(EMB_B_ROW))

    # ---- additive attention bias, hoisted out of the layer loop; g = head*B + b ----
    bias = ((1.0 - mask_ref[...]) * -10000.0).reshape(B, 1, S)
    bias_g = jnp.concatenate([bias] * N_HEADS, axis=0)                  # (NH*B, 1, S)

    # ---- encoder layers (statically unrolled) ----
    for l in range(N_LAYERS):
        lv = LAYER_VEC_BASE + 4 * l

        # fused dense QKV projection: one (T,H)@(H,3H) MXU matmul (q columns pre-scaled)
        qkv = (jnp.dot(h, wqkv_ref[l, :H, :], preferred_element_type=jnp.float32)
               + wqkv_ref[l, H:H + 1, :])                               # (T, 3H)

        def heads(off):  # -> (NH*B, S, HD) batched layout for the attention einsums
            blocks = [qkv[:, off + hh * HEAD_DIM: off + (hh + 1) * HEAD_DIM]
                      .reshape(B, S, HEAD_DIM) for hh in range(N_HEADS)]
            return jnp.concatenate(blocks, axis=0)

        q, k, v = heads(0), heads(H), heads(2 * H)

        sc = jnp.einsum('gqd,gkd->gqk', q, k,
                        preferred_element_type=jnp.float32) + bias_g    # (NH*B, S, S)
        sc = sc - jnp.max(sc, axis=-1, keepdims=True)
        p = jnp.exp(sc)
        p = p * pl.reciprocal(jnp.sum(p, axis=-1, keepdims=True), approx=True)
        ctx = jnp.einsum('gqk,gkd->gqd', p, v,
                         preferred_element_type=jnp.float32)            # (NH*B, S, HD)

        # heads back onto lanes, then ONE dense output projection (accumulates in MXU)
        ctx2d = jnp.concatenate(
            [ctx[hh * B:(hh + 1) * B].reshape(T, HEAD_DIM) for hh in range(N_HEADS)],
            axis=1)                                                     # (T, H)
        attn = (jnp.dot(ctx2d, wo_ref[l, :H, :], preferred_element_type=jnp.float32)
                + wo_ref[l, H:H + 1, :])
        attn = _layernorm(attn + h, vrow(lv), vrow(lv + 1))

        # feed-forward: dense + exact GELU + dense, residual + LayerNorm
        inter = _gelu_exact(
            jnp.dot(attn, wi_ref[l, :H, :], preferred_element_type=jnp.float32)
            + wi_ref[l, H:H + 1, :])
        ffo = (jnp.dot(inter, w2_ref[l, :INTER, :], preferred_element_type=jnp.float32)
               + w2_ref[l, INTER:INTER + 1, :])
        h = _layernorm(ffo + attn, vrow(lv + 2), vrow(lv + 3))

    # ---- pooler (first token) + classifier (lane-dense padded logits) ----
    x0 = jnp.concatenate([h[b * S: b * S + 1, :] for b in range(B)], axis=0)   # (B, H)
    pooled = jnp.tanh(jnp.dot(x0, wp_ref[:H, :], preferred_element_type=jnp.float32)
                      + wp_ref[H:H + 1, :])
    out_ref[...] = (jnp.dot(pooled, wc_ref[:H, :], preferred_element_type=jnp.float32)
                    + wc_ref[H:H + 1, :])                               # (B, LOGIT_PAD)


# ----------------------------- parameter creation ------------------------------
def init_params(key):
    def normal(k, shape):
        return jax.random.normal(k, shape, dtype=jnp.float32) * 0.02

    keys = iter(jax.random.split(key, 8 * N_LAYERS + 16))

    params = {}
    params['word'] = normal(next(keys), (VOCAB, HIDDEN)).at[PAD_ID].set(0.0)
    params['pos'] = normal(next(keys), (MAX_POS, HIDDEN))
    params['tok'] = normal(next(keys), (TYPE_VOCAB, HIDDEN))
    params['emb_g'] = jnp.ones((1, HIDDEN), jnp.float32)
    params['emb_b'] = jnp.zeros((1, HIDDEN), jnp.float32)

    layers = []
    for _ in range(N_LAYERS):
        layers.append(dict(
            wq=normal(next(keys), (HIDDEN, HIDDEN)), bq=jnp.zeros((1, HIDDEN), jnp.float32),
            wk=normal(next(keys), (HIDDEN, HIDDEN)), bk=jnp.zeros((1, HIDDEN), jnp.float32),
            wv=normal(next(keys), (HIDDEN, HIDDEN)), bv=jnp.zeros((1, HIDDEN), jnp.float32),
            wo=normal(next(keys), (HIDDEN, HIDDEN)), bo=jnp.zeros((1, HIDDEN), jnp.float32),
            ln1g=jnp.ones((1, HIDDEN), jnp.float32), ln1b=jnp.zeros((1, HIDDEN), jnp.float32),
            wi=normal(next(keys), (HIDDEN, INTER)), bi=jnp.zeros((1, INTER), jnp.float32),
            w2=normal(next(keys), (INTER, HIDDEN)), b2=jnp.zeros((1, HIDDEN), jnp.float32),
            ln2g=jnp.ones((1, HIDDEN), jnp.float32), ln2b=jnp.zeros((1, HIDDEN), jnp.float32),
        ))
    params['layers'] = layers

    params['wp'] = normal(next(keys), (HIDDEN, HIDDEN))
    params['bp'] = jnp.zeros((1, HIDDEN), jnp.float32)
    params['wc'] = normal(next(keys), (HIDDEN, N_LABELS))
    params['bc'] = jnp.zeros((1, N_LABELS), jnp.float32)
    return params


def prepare_kernel_params(params):
    """Pack nn.Module-style params into the fused kernel's 8-operand layout."""
    scale = 1.0 / math.sqrt(HEAD_DIM)

    # word + token-type rows stacked into one gather table; each row is its own slab
    table = jnp.concatenate([params['word'], params['tok']], axis=0)[:, None, :]

    # packed small vectors: [pos rows | emb LN gamma/beta | per-layer ln1g,ln1b,ln2g,ln2b]
    vec_rows = [params['pos'], params['emb_g'], params['emb_b']]
    for layer in params['layers']:
        vec_rows += [layer['ln1g'], layer['ln1b'], layer['ln2g'], layer['ln2b']]
    vecs = jnp.concatenate(vec_rows, axis=0)                             # (42, H)

    def with_bias(w, b):  # fold the Linear bias in as one extra trailing row
        return jnp.concatenate([w, b], axis=0)

    # fused QKV weight (H, 3H) with 1/sqrt(head_dim) folded into q weight AND bias
    wqkv = jnp.stack([with_bias(
        jnp.concatenate([l['wq'] * scale, l['wk'], l['wv']], axis=1),
        jnp.concatenate([l['bq'] * scale, l['bk'], l['bv']], axis=1))
        for l in params['layers']])                                      # (L, H+1, 3H)
    wo = jnp.stack([with_bias(l['wo'], l['bo']) for l in params['layers']])
    wi = jnp.stack([with_bias(l['wi'], l['bi']) for l in params['layers']])
    w2 = jnp.stack([with_bias(l['w2'], l['b2']) for l in params['layers']])

    wp = with_bias(params['wp'], params['bp'])                           # (H+1, H)
    # classifier padded to a lane-dense 128-wide slab; padding columns MUST stay zero
    wc = jnp.zeros((HIDDEN + 1, LOGIT_PAD), jnp.float32)
    wc = wc.at[:HIDDEN, :N_LABELS].set(params['wc'])
    wc = wc.at[HIDDEN:, :N_LABELS].set(params['bc'])

    # NOTE(v6e/v7x): weights could be cast to bf16 here (halved DMA/vreg footprint,
    # MXU-native bf16) while keeping f32 accumulation; kept f32 for exact parity.
    return dict(table=table, vecs=vecs, wqkv=wqkv, wo=wo, wi=wi, w2=w2, wp=wp, wc=wc)


# --------------------------------- forward ------------------------------------
@jax.jit
def bert_for_news_classification(kp, input_ids, attention_mask=None, token_type_ids=None):
    B, S = input_ids.shape
    if attention_mask is None:
        attention_mask = jnp.ones_like(input_ids)
    if token_type_ids is None:
        token_type_ids = jnp.zeros_like(input_ids)

    ids_tok = jnp.stack([input_ids.astype(jnp.int32),
                         token_type_ids.astype(jnp.int32)]).reshape(2, B * S)
    mask_f = attention_mask.astype(jnp.float32)

    vmem = pltpu.MemorySpace.VMEM
    smem = pltpu.MemorySpace.SMEM
    operands = (ids_tok, mask_f, kp['table'], kp['vecs'],
                kp['wqkv'], kp['wo'], kp['wi'], kp['w2'], kp['wp'], kp['wc'])
    in_specs = ([pl.BlockSpec(memory_space=smem)]
                + [pl.BlockSpec(memory_space=vmem)] * (len(operands) - 1))

    # NOTE: grid-less, everything VMEM-resident (<0.5 MiB total), so a single
    # TensorCore runs the whole forward.  This does NOT scale to real BERT sizes
    # (H=768, S>=128): a scaled version needs BlockSpec pipelining over sequence /
    # layers (tiles re-derived for v7x's 64 MiB VMEM) and a batch grid with
    # dimension_semantics=("parallel",) so v7x's two TensorCores split the batch.
    logits_pad = pl.pallas_call(
        bert_fused_kernel,
        out_shape=jax.ShapeDtypeStruct((B, LOGIT_PAD), jnp.float32),
        in_specs=in_specs,
        out_specs=pl.BlockSpec(memory_space=vmem),
    )(*operands)

    # TODO(synk): CrossEntropyLoss branch (labels is not None) not implemented;
    # this mirrors the labels=None path which returns logits only.
    return logits_pad[:, :N_LABELS]


# --------------------------- pure-JAX reference check ---------------------------
def _reference_forward(params, input_ids, attention_mask, token_type_ids):
    B, S = input_ids.shape
    x = params['word'][input_ids] + params['pos'][:S][None] + params['tok'][token_type_ids]

    def ln(v, g, b):
        m = jnp.mean(v, -1, keepdims=True)
        var = jnp.mean(jnp.square(v - m), -1, keepdims=True)
        return (v - m) / jnp.sqrt(var + LN_EPS) * g + b

    h = ln(x, params['emb_g'], params['emb_b'])
    ext = (1.0 - attention_mask.astype(jnp.float32))[:, None, None, :] * -10000.0
    for layer in params['layers']:
        q = h @ layer['wq'] + layer['bq']
        k = h @ layer['wk'] + layer['bk']
        v = h @ layer['wv'] + layer['bv']

        def split(t):
            return jnp.transpose(t.reshape(B, S, N_HEADS, HEAD_DIM), (0, 2, 1, 3))

        qh, kh, vh = split(q), split(k), split(v)
        s = jnp.einsum('bhqd,bhkd->bhqk', qh, kh) / math.sqrt(HEAD_DIM) + ext
        p = jax.nn.softmax(s, axis=-1)
        ctx = jnp.einsum('bhqk,bhkd->bhqd', p, vh)
        ctx = jnp.transpose(ctx, (0, 2, 1, 3)).reshape(B, S, HIDDEN)
        attn = ln(ctx @ layer['wo'] + layer['bo'] + h, layer['ln1g'], layer['ln1b'])
        inter = jax.nn.gelu(attn @ layer['wi'] + layer['bi'], approximate=False)
        out = inter @ layer['w2'] + layer['b2']
        h = ln(out + attn, layer['ln2g'], layer['ln2b'])
    pooled = jnp.tanh(h[:, 0, :] @ params['wp'] + params['bp'])
    return pooled @ params['wc'] + params['bc']


# ----------------------------------- main --------------------------------------
if __name__ == "__main__":
    key = jax.random.PRNGKey(0)
    pkey, dkey = jax.random.split(key)

    params = init_params(pkey)
    kp = prepare_kernel_params(params)

    B, S = 2, 8
    input_ids = jax.random.randint(dkey, (B, S), 1, VOCAB, dtype=jnp.int32)
    # partially masked / mixed-segment inputs to exercise the mask and type paths
    attention_mask = jnp.array([[1, 1, 1, 1, 1, 1, 1, 1],
                                [1, 1, 1, 1, 1, 1, 0, 0]], dtype=jnp.int32)
    token_type_ids = jnp.array([[0, 0, 0, 0, 0, 0, 0, 0],
                                [0, 0, 0, 0, 1, 1, 1, 1]], dtype=jnp.int32)

    logits = bert_for_news_classification(kp, input_ids, attention_mask, token_type_ids)
    logits = jax.block_until_ready(logits)

    ref = _reference_forward(params, input_ids, attention_mask, token_type_ids)

    assert logits.shape == (B, N_LABELS)
    assert bool(jnp.all(jnp.isfinite(logits)))
    np.testing.assert_allclose(np.asarray(logits), np.asarray(ref), atol=1e-2, rtol=1e-2)
    print("KERNEL_OK")
</pallas_src>

<mosaic_0001>
module attributes {stable_mosaic.version = 11 : i64} {
  func.func @bert_fused_kernel(%arg0: memref<2x16xi32, #tpu.memory_space<smem>>, %arg1: memref<2x8xf32, #tpu.memory_space<vmem>>, %arg2: memref<102x1x32xf32, #tpu.memory_space<vmem>>, %arg3: memref<42x32xf32, #tpu.memory_space<vmem>>, %arg4: memref<2x33x96xf32, #tpu.memory_space<vmem>>, %arg5: memref<2x33x32xf32, #tpu.memory_space<vmem>>, %arg6: memref<2x33x64xf32, #tpu.memory_space<vmem>>, %arg7: memref<2x65x32xf32, #tpu.memory_space<vmem>>, %arg8: memref<33x32xf32, #tpu.memory_space<vmem>>, %arg9: memref<33x128xf32, #tpu.memory_space<vmem>>, %arg10: memref<2x128xf32, #tpu.memory_space<vmem>>) attributes {dimension_semantics = [], scalar_prefetch = 0 : i64, scratch_operands = 0 : i64, tpu.core_type = #tpu.core_type<tc>} {
    %c0 = arith.constant 0 : index
    %c0_0 = arith.constant 0 : index
    %0 = memref.load %arg0[%c0, %c0_0] : memref<2x16xi32, #tpu.memory_space<smem>>
    %c1 = arith.constant 1 : index
    %c0_1 = arith.constant 0 : index
    %1 = memref.load %arg0[%c1, %c0_1] : memref<2x16xi32, #tpu.memory_space<smem>>
    %2 = arith.index_cast %0 : i32 to index
    %c0_2 = arith.constant 0 : index
    %c0_3 = arith.constant 0 : index
    %3 = vector.load %arg2[%2, %c0_2, %c0_3] : memref<102x1x32xf32, #tpu.memory_space<vmem>>, vector<1x1x32xf32>
    %4 = vector.shape_cast %3 : vector<1x1x32xf32> to vector<1x32xf32>
    %c100_i32 = arith.constant 100 : i32
    %5 = arith.addi %c100_i32, %1 : i32
    %6 = arith.index_cast %5 : i32 to index
    %c0_4 = arith.constant 0 : index
    %c0_5 = arith.constant 0 : index
    %7 = vector.load %arg2[%6, %c0_4, %c0_5] : memref<102x1x32xf32, #tpu.memory_space<vmem>>, vector<1x1x32xf32>
    %8 = vector.shape_cast %7 : vector<1x1x32xf32> to vector<1x32xf32>
    %9 = arith.addf %4, %8 : vector<1x32xf32>
    %c0_6 = arith.constant 0 : index
    %c0_7 = arith.constant 0 : index
    %10 = vector.load %arg3[%c0_6, %c0_7] : memref<42x32xf32, #tpu.memory_space<vmem>>, vector<1x32xf32>
    %11 = arith.addf %9, %10 : vector<1x32xf32>
    %c0_8 = arith.constant 0 : index
    %c1_9 = arith.constant 1 : index
    %12 = memref.load %arg0[%c0_8, %c1_9] : memref<2x16xi32, #tpu.memory_space<smem>>
    %c1_10 = arith.constant 1 : index
    %c1_11 = arith.constant 1 : index
    %13 = memref.load %arg0[%c1_10, %c1_11] : memref<2x16xi32, #tpu.memory_space<smem>>
    %14 = arith.index_cast %12 : i32 to index
    %c0_12 = arith.constant 0 : index
    %c0_13 = arith.constant 0 : index
    %15 = vector.load %arg2[%14, %c0_12, %c0_13] : memref<102x1x32xf32, #tpu.memory_space<vmem>>, vector<1x1x32xf32>
    %16 = vector.shape_cast %15 : vector<1x1x32xf32> to vector<1x32xf32>
    %c100_i32_14 = arith.constant 100 : i32
    %17 = arith.addi %c100_i32_14, %13 : i32
    %18 = arith.index_cast %17 : i32 to index
    %c0_15 = arith.constant 0 : index
    %c0_16 = arith.constant 0 : index
    %19 = vector.load %arg2[%18, %c0_15, %c0_16] : memref<102x1x32xf32, #tpu.memory_space<vmem>>, vector<1x1x32xf32>
    %20 = vector.shape_cast %19 : vector<1x1x32xf32> to vector<1x32xf32>
    %21 = arith.addf %16, %20 : vector<1x32xf32>
    %c1_17 = arith.constant 1 : index
    %c0_18 = arith.constant 0 : index
    %22 = vector.load %arg3[%c1_17, %c0_18] : memref<42x32xf32, #tpu.memory_space<vmem>>, vector<1x32xf32>
    %23 = arith.addf %21, %22 : vector<1x32xf32>
    %c0_19 = arith.constant 0 : index
    %c2 = arith.constant 2 : index
    %24 = memref.load %arg0[%c0_19, %c2] : memref<2x16xi32, #tpu.memory_space<smem>>
    %c1_20 = arith.constant 1 : index
    %c2_21 = arith.constant 2 : index
    %25 = memref.load %arg0[%c1_20, %c2_21] : memref<2x16xi32, #tpu.memory_space<smem>>
    %26 = arith.index_cast %24 : i32 to index
    %c0_22 = arith.constant 0 : index
    %c0_23 = arith.constant 0 : index
    %27 = vector.load %arg2[%26, %c0_22, %c0_23] : memref<102x1x32xf32, #tpu.memory_space<vmem>>, vector<1x1x32xf32>
    %28 = vector.shape_cast %27 : vector<1x1x32xf32> to vector<1x32xf32>
    %c100_i32_24 = arith.constant 100 : i32
    %29 = arith.addi %c100_i32_24, %25 : i32
    %30 = arith.index_cast %29 : i32 to index
    %c0_25 = arith.constant 0 : index
    %c0_26 = arith.constant 0 : index
    %31 = vector.load %arg2[%30, %c0_25, %c0_26] : memref<102x1x32xf32, #tpu.memory_space<vmem>>, vector<1x1x32xf32>
    %32 = vector.shape_cast %31 : vector<1x1x32xf32> to vector<1x32xf32>
    %33 = arith.addf %28, %32 : vector<1x32xf32>
    %c2_27 = arith.constant 2 : index
    %c0_28 = arith.constant 0 : index
    %34 = vector.load %arg3[%c2_27, %c0_28] : memref<42x32xf32, #tpu.memory_space<vmem>>, vector<1x32xf32>
    %35 = arith.addf %33, %34 : vector<1x32xf32>
    %c0_29 = arith.constant 0 : index
    %c3 = arith.constant 3 : index
    %36 = memref.load %arg0[%c0_29, %c3] : memref<2x16xi32, #tpu.memory_space<smem>>
    %c1_30 = arith.constant 1 : index
    %c3_31 = arith.constant 3 : index
    %37 = memref.load %arg0[%c1_30, %c3_31] : memref<2x16xi32, #tpu.memory_space<smem>>
    %38 = arith.index_cast %36 : i32 to index
    %c0_32 = arith.constant 0 : index
    %c0_33 = arith.constant 0 : index
    %39 = vector.load %arg2[%38, %c0_32, %c0_33] : memref<102x1x32xf32, #tpu.memory_space<vmem>>, vector<1x1x32xf32>
    %40 = vector.shape_cast %39 : vector<1x1x32xf32> to vector<1x32xf32>
    %c100_i32_34 = arith.constant 100 : i32
    %41 = arith.addi %c100_i32_34, %37 : i32
    %42 = arith.index_cast %41 : i32 to index
    %c0_35 = arith.constant 0 : index
    %c0_36 = arith.constant 0 : index
    %43 = vector.load %arg2[%42, %c0_35, %c0_36] : memref<102x1x32xf32, #tpu.memory_space<vmem>>, vector<1x1x32xf32>
    %44 = vector.shape_cast %43 : vector<1x1x32xf32> to vector<1x32xf32>
    %45 = arith.addf %40, %44 : vector<1x32xf32>
    %c3_37 = arith.constant 3 : index
    %c0_38 = arith.constant 0 : index
    %46 = vector.load %arg3[%c3_37, %c0_38] : memref<42x32xf32, #tpu.memory_space<vmem>>, vector<1x32xf32>
    %47 = arith.addf %45, %46 : vector<1x32xf32>
    %c0_39 = arith.constant 0 : index
    %c4 = arith.constant 4 : index
    %48 = memref.load %arg0[%c0_39, %c4] : memref<2x16xi32, #tpu.memory_space<smem>>
    %c1_40 = arith.constant 1 : index
    %c4_41 = arith.constant 4 : index
    %49 = memref.load %arg0[%c1_40, %c4_41] : memref<2x16xi32, #tpu.memory_space<smem>>
    %50 = arith.index_cast %48 : i32 to index
    %c0_42 = arith.constant 0 : index
    %c0_43 = arith.constant 0 : index
    %51 = vector.load %arg2[%50, %c0_42, %c0_43] : memref<102x1x32xf32, #tpu.memory_space<vmem>>, vector<1x1x32xf32>
    %52 = vector.shape_cast %51 : vector<1x1x32xf32> to vector<1x32xf32>
    %c100_i32_44 = arith.constant 100 : i32
    %53 = arith.addi %c100_i32_44, %49 : i32
    %54 = arith.index_cast %53 : i32 to index
    %c0_45 = arith.constant 0 : index
    %c0_46 = arith.constant 0 : index
    %55 = vector.load %arg2[%54, %c0_45, %c0_46] : memref<102x1x32xf32, #tpu.memory_space<vmem>>, vector<1x1x32xf32>
    %56 = vector.shape_cast %55 : vector<1x1x32xf32> to vector<1x32xf32>
    %57 = arith.addf %52, %56 : vector<1x32xf32>
    %c4_47 = arith.constant 4 : index
    %c0_48 = arith.constant 0 : index
    %58 = vector.load %arg3[%c4_47, %c0_48] : memref<42x32xf32, #tpu.memory_space<vmem>>, vector<1x32xf32>
    %59 = arith.addf %57, %58 : vector<1x32xf32>
    %c0_49 = arith.constant 0 : index
    %c5 = arith.constant 5 : index
    %60 = memref.load %arg0[%c0_49, %c5] : memref<2x16xi32, #tpu.memory_space<smem>>
    %c1_50 = arith.constant 1 : index
    %c5_51 = arith.constant 5 : index
    %61 = memref.load %arg0[%c1_50, %c5_51] : memref<2x16xi32, #tpu.memory_space<smem>>
    %62 = arith.index_cast %60 : i32 to index
    %c0_52 = arith.constant 0 : index
    %c0_53 = arith.constant 0 : index
    %63 = vector.load %arg2[%62, %c0_52, %c0_53] : memref<102x1x32xf32, #tpu.memory_space<vmem>>, vector<1x1x32xf32>
    %64 = vector.shape_cast %63 : vector<1x1x32xf32> to vector<1x32xf32>
    %c100_i32_54 = arith.constant 100 : i32
    %65 = arith.addi %c100_i32_54, %61 : i32
    %66 = arith.index_cast %65 : i32 to index
    %c0_55 = arith.constant 0 : index
    %c0_56 = arith.constant 0 : index
    %67 = vector.load %arg2[%66, %c0_55, %c0_56] : memref<102x1x32xf32, #tpu.memory_space<vmem>>, vector<1x1x32xf32>
    %68 = vector.shape_cast %67 : vector<1x1x32xf32> to vector<1x32xf32>
    %69 = arith.addf %64, %68 : vector<1x32xf32>
    %c5_57 = arith.constant 5 : index
    %c0_58 = arith.constant 0 : index
    %70 = vector.load %arg3[%c5_57, %c0_58] : memref<42x32xf32, #tpu.memory_space<vmem>>, vector<1x32xf32>
    %71 = arith.addf %69, %70 : vector<1x32xf32>
    %c0_59 = arith.constant 0 : index
    %c6 = arith.constant 6 : index
    %72 = memref.load %arg0[%c0_59, %c6] : memref<2x16xi32, #tpu.memory_space<smem>>
    %c1_60 = arith.constant 1 : index
    %c6_61 = arith.constant 6 : index
    %73 = memref.load %arg0[%c1_60, %c6_61] : memref<2x16xi32, #tpu.memory_space<smem>>
    %74 = arith.index_cast %72 : i32 to index
    %c0_62 = arith.constant 0 : index
    %c0_63 = arith.constant 0 : index
    %75 = vector.load %arg2[%74, %c0_62, %c0_63] : memref<102x1x32xf32, #tpu.memory_space<vmem>>, vector<1x1x32xf32>
    %76 = vector.shape_cast %75 : vector<1x1x32xf32> to vector<1x32xf32>
    %c100_i32_64 = arith.constant 100 : i32
    %77 = arith.addi %c100_i32_64, %73 : i32
    %78 = arith.index_cast %77 : i32 to index
    %c0_65 = arith.constant 0 : index
    %c0_66 = arith.constant 0 : index
    %79 = vector.load %arg2[%78, %c0_65, %c0_66] : memref<102x1x32xf32, #tpu.memory_space<vmem>>, vector<1x1x32xf32>
    %80 = vector.shape_cast %79 : vector<1x1x32xf32> to vector<1x32xf32>
    %81 = arith.addf %76, %80 : vector<1x32xf32>
    %c6_67 = arith.constant 6 : index
    %c0_68 = arith.constant 0 : index
    %82 = vector.load %arg3[%c6_67, %c0_68] : memref<42x32xf32, #tpu.memory_space<vmem>>, vector<1x32xf32>
    %83 = arith.addf %81, %82 : vector<1x32xf32>
    %c0_69 = arith.constant 0 : index
    %c7 = arith.constant 7 : index
    %84 = memref.load %arg0[%c0_69, %c7] : memref<2x16xi32, #tpu.memory_space<smem>>
    %c1_70 = arith.constant 1 : index
    %c7_71 = arith.constant 7 : index
    %85 = memref.load %arg0[%c1_70, %c7_71] : memref<2x16xi32, #tpu.memory_space<smem>>
    %86 = arith.index_cast %84 : i32 to index
    %c0_72 = arith.constant 0 : index
    %c0_73 = arith.constant 0 : index
    %87 = vector.load %arg2[%86, %c0_72, %c0_73] : memref<102x1x32xf32, #tpu.memory_space<vmem>>, vector<1x1x32xf32>
    %88 = vector.shape_cast %87 : vector<1x1x32xf32> to vector<1x32xf32>
    %c100_i32_74 = arith.constant 100 : i32
    %89 = arith.addi %c100_i32_74, %85 : i32
    %90 = arith.index_cast %89 : i32 to index
    %c0_75 = arith.constant 0 : index
    %c0_76 = arith.constant 0 : index
    %91 = vector.load %arg2[%90, %c0_75, %c0_76] : memref<102x1x32xf32, #tpu.memory_space<vmem>>, vector<1x1x32xf32>
    %92 = vector.shape_cast %91 : vector<1x1x32xf32> to vector<1x32xf32>
    %93 = arith.addf %88, %92 : vector<1x32xf32>
    %c7_77 = arith.constant 7 : index
    %c0_78 = arith.constant 0 : index
    %94 = vector.load %arg3[%c7_77, %c0_78] : memref<42x32xf32, #tpu.memory_space<vmem>>, vector<1x32xf32>
    %95 = arith.addf %93, %94 : vector<1x32xf32>
    %c0_79 = arith.constant 0 : index
    %c8 = arith.constant 8 : index
    %96 = memref.load %arg0[%c0_79, %c8] : memref<2x16xi32, #tpu.memory_space<smem>>
    %c1_80 = arith.constant 1 : index
    %c8_81 = arith.constant 8 : index
    %97 = memref.load %arg0[%c1_80, %c8_81] : memref<2x16xi32, #tpu.memory_space<smem>>
    %98 = arith.index_cast %96 : i32 to index
    %c0_82 = arith.constant 0 : index
    %c0_83 = arith.constant 0 : index
    %99 = vector.load %arg2[%98, %c0_82, %c0_83] : memref<102x1x32xf32, #tpu.memory_space<vmem>>, vector<1x1x32xf32>
    %100 = vector.shape_cast %99 : vector<1x1x32xf32> to vector<1x32xf32>
    %c100_i32_84 = arith.constant 100 : i32
    %101 = arith.addi %c100_i32_84, %97 : i32
    %102 = arith.index_cast %101 : i32 to index
    %c0_85 = arith.constant 0 : index
    %c0_86 = arith.constant 0 : index
    %103 = vector.load %arg2[%102, %c0_85, %c0_86] : memref<102x1x32xf32, #tpu.memory_space<vmem>>, vector<1x1x32xf32>
    %104 = vector.shape_cast %103 : vector<1x1x32xf32> to vector<1x32xf32>
    %105 = arith.addf %100, %104 : vector<1x32xf32>
    %c0_87 = arith.constant 0 : index
    %c0_88 = arith.constant 0 : index
    %106 = vector.load %arg3[%c0_87, %c0_88] : memref<42x32xf32, #tpu.memory_space<vmem>>, vector<1x32xf32>
    %107 = arith.addf %105, %106 : vector<1x32xf32>
    %c0_89 = arith.constant 0 : index
    %c9 = arith.constant 9 : index
    %108 = memref.load %arg0[%c0_89, %c9] : memref<2x16xi32, #tpu.memory_space<smem>>
    %c1_90 = arith.constant 1 : index
    %c9_91 = arith.constant 9 : index
    %109 = memref.load %arg0[%c1_90, %c9_91] : memref<2x16xi32, #tpu.memory_space<smem>>
    %110 = arith.index_cast %108 : i32 to index
    %c0_92 = arith.constant 0 : index
    %c0_93 = arith.constant 0 : index
    %111 = vector.load %arg2[%110, %c0_92, %c0_93] : memref<102x1x32xf32, #tpu.memory_space<vmem>>, vector<1x1x32xf32>
    %112 = vector.shape_cast %111 : vector<1x1x32xf32> to vector<1x32xf32>
    %c100_i32_94 = arith.constant 100 : i32
    %113 = arith.addi %c100_i32_94, %109 : i32
    %114 = arith.index_cast %113 : i32 to index
    %c0_95 = arith.constant 0 : index
    %c0_96 = arith.constant 0 : index
    %115 = vector.load %arg2[%114, %c0_95, %c0_96] : memref<102x1x32xf32, #tpu.memory_space<vmem>>, vector<1x1x32xf32>
    %116 = vector.shape_cast %115 : vector<1x1x32xf32> to vector<1x32xf32>
    %117 = arith.addf %112, %116 : vector<1x32xf32>
    %c1_97 = arith.constant 1 : index
    %c0_98 = arith.constant 0 : index
    %118 = vector.load %arg3[%c1_97, %c0_98] : memref<42x32xf32, #tpu.memory_space<vmem>>, vector<1x32xf32>
    %119 = arith.addf %117, %118 : vector<1x32xf32>
    %c0_99 = arith.constant 0 : index
    %c10 = arith.constant 10 : index
    %120 = memref.load %arg0[%c0_99, %c10] : memref<2x16xi32, #tpu.memory_space<smem>>
    %c1_100 = arith.constant 1 : index
    %c10_101 = arith.constant 10 : index
    %121 = memref.load %arg0[%c1_100, %c10_101] : memref<2x16xi32, #tpu.memory_space<smem>>
    %122 = arith.index_cast %120 : i32 to index
    %c0_102 = arith.constant 0 : index
    %c0_103 = arith.constant 0 : index
    %123 = vector.load %arg2[%122, %c0_102, %c0_103] : memref<102x1x32xf32, #tpu.memory_space<vmem>>, vector<1x1x32xf32>
    %124 = vector.shape_cast %123 : vector<1x1x32xf32> to vector<1x32xf32>
    %c100_i32_104 = arith.constant 100 : i32
    %125 = arith.addi %c100_i32_104, %121 : i32
    %126 = arith.index_cast %125 : i32 to index
    %c0_105 = arith.constant 0 : index
    %c0_106 = arith.constant 0 : index
    %127 = vector.load %arg2[%126, %c0_105, %c0_106] : memref<102x1x32xf32, #tpu.memory_space<vmem>>, vector<1x1x32xf32>
    %128 = vector.shape_cast %127 : vector<1x1x32xf32> to vector<1x32xf32>
    %129 = arith.addf %124, %128 : vector<1x32xf32>
    %c2_107 = arith.constant 2 : index
    %c0_108 = arith.constant 0 : index
    %130 = vector.load %arg3[%c2_107, %c0_108] : memref<42x32xf32, #tpu.memory_space<vmem>>, vector<1x32xf32>
    %131 = arith.addf %129, %130 : vector<1x32xf32>
    %c0_109 = arith.constant 0 : index
    %c11 = arith.constant 11 : index
    %132 = memref.load %arg0[%c0_109, %c11] : memref<2x16xi32, #tpu.memory_space<smem>>
    %c1_110 = arith.constant 1 : index
    %c11_111 = arith.constant 11 : index
    %133 = memref.load %arg0[%c1_110, %c11_111] : memref<2x16xi32, #tpu.memory_space<smem>>
    %134 = arith.index_cast %132 : i32 to index
    %c0_112 = arith.constant 0 : index
    %c0_113 = arith.constant 0 : index
    %135 = vector.load %arg2[%134, %c0_112, %c0_113] : memref<102x1x32xf32, #tpu.memory_space<vmem>>, vector<1x1x32xf32>
    %136 = vector.shape_cast %135 : vector<1x1x32xf32> to vector<1x32xf32>
    %c100_i32_114 = arith.constant 100 : i32
    %137 = arith.addi %c100_i32_114, %133 : i32
    %138 = arith.index_cast %137 : i32 to index
    %c0_115 = arith.constant 0 : index
    %c0_116 = arith.constant 0 : index
    %139 = vector.load %arg2[%138, %c0_115, %c0_116] : memref<102x1x32xf32, #tpu.memory_space<vmem>>, vector<1x1x32xf32>
    %140 = vector.shape_cast %139 : vector<1x1x32xf32> to vector<1x32xf32>
    %141 = arith.addf %136, %140 : vector<1x32xf32>
    %c3_117 = arith.constant 3 : index
    %c0_118 = arith.constant 0 : index
    %142 = vector.load %arg3[%c3_117, %c0_118] : memref<42x32xf32, #tpu.memory_space<vmem>>, vector<1x32xf32>
    %143 = arith.addf %141, %142 : vector<1x32xf32>
    %c0_119 = arith.constant 0 : index
    %c12 = arith.constant 12 : index
    %144 = memref.load %arg0[%c0_119, %c12] : memref<2x16xi32, #tpu.memory_space<smem>>
    %c1_120 = arith.constant 1 : index
    %c12_121 = arith.constant 12 : index
    %145 = memref.load %arg0[%c1_120, %c12_121] : memref<2x16xi32, #tpu.memory_space<smem>>
    %146 = arith.index_cast %144 : i32 to index
    %c0_122 = arith.constant 0 : index
    %c0_123 = arith.constant 0 : index
    %147 = vector.load %arg2[%146, %c0_122, %c0_123] : memref<102x1x32xf32, #tpu.memory_space<vmem>>, vector<1x1x32xf32>
    %148 = vector.shape_cast %147 : vector<1x1x32xf32> to vector<1x32xf32>
    %c100_i32_124 = arith.constant 100 : i32
    %149 = arith.addi %c100_i32_124, %145 : i32
    %150 = arith.index_cast %149 : i32 to index
    %c0_125 = arith.constant 0 : index
    %c0_126 = arith.constant 0 : index
    %151 = vector.load %arg2[%150, %c0_125, %c0_126] : memref<102x1x32xf32, #tpu.memory_space<vmem>>, vector<1x1x32xf32>
    %152 = vector.shape_cast %151 : vector<1x1x32xf32> to vector<1x32xf32>
    %153 = arith.addf %148, %152 : vector<1x32xf32>
    %c4_127 = arith.constant 4 : index
    %c0_128 = arith.constant 0 : index
    %154 = vector.load %arg3[%c4_127, %c0_128] : memref<42x32xf32, #tpu.memory_space<vmem>>, vector<1x32xf32>
    %155 = arith.addf %153, %154 : vector<1x32xf32>
    %c0_129 = arith.constant 0 : index
    %c13 = arith.constant 13 : index
    %156 = memref.load %arg0[%c0_129, %c13] : memref<2x16xi32, #tpu.memory_space<smem>>
    %c1_130 = arith.constant 1 : index
    %c13_131 = arith.constant 13 : index
    %157 = memref.load %arg0[%c1_130, %c13_131] : memref<2x16xi32, #tpu.memory_space<smem>>
    %158 = arith.index_cast %156 : i32 to index
    %c0_132 = arith.constant 0 : index
    %c0_133 = arith.constant 0 : index
    %159 = vector.load %arg2[%158, %c0_132, %c0_133] : memref<102x1x32xf32, #tpu.memory_space<vmem>>, vector<1x1x32xf32>
    %160 = vector.shape_cast %159 : vector<1x1x32xf32> to vector<1x32xf32>
    %c100_i32_134 = arith.constant 100 : i32
    %161 = arith.addi %c100_i32_134, %157 : i32
    %162 = arith.index_cast %161 : i32 to index
    %c0_135 = arith.constant 0 : index
    %c0_136 = arith.constant 0 : index
    %163 = vector.load %arg2[%162, %c0_135, %c0_136] : memref<102x1x32xf32, #tpu.memory_space<vmem>>, vector<1x1x32xf32>
    %164 = vector.shape_cast %163 : vector<1x1x32xf32> to vector<1x32xf32>
    %165 = arith.addf %160, %164 : vector<1x32xf32>
    %c5_137 = arith.constant 5 : index
    %c0_138 = arith.constant 0 : index
    %166 = vector.load %arg3[%c5_137, %c0_138] : memref<42x32xf32, #tpu.memory_space<vmem>>, vector<1x32xf32>
    %167 = arith.addf %165, %166 : vector<1x32xf32>
    %c0_139 = arith.constant 0 : index
    %c14 = arith.constant 14 : index
    %168 = memref.load %arg0[%c0_139, %c14] : memref<2x16xi32, #tpu.memory_space<smem>>
    %c1_140 = arith.constant 1 : index
    %c14_141 = arith.constant 14 : index
    %169 = memref.load %arg0[%c1_140, %c14_141] : memref<2x16xi32, #tpu.memory_space<smem>>
    %170 = arith.index_cast %168 : i32 to index
    %c0_142 = arith.constant 0 : index
    %c0_143 = arith.constant 0 : index
    %171 = vector.load %arg2[%170, %c0_142, %c0_143] : memref<102x1x32xf32, #tpu.memory_space<vmem>>, vector<1x1x32xf32>
    %172 = vector.shape_cast %171 : vector<1x1x32xf32> to vector<1x32xf32>
    %c100_i32_144 = arith.constant 100 : i32
    %173 = arith.addi %c100_i32_144, %169 : i32
    %174 = arith.index_cast %173 : i32 to index
    %c0_145 = arith.constant 0 : index
    %c0_146 = arith.constant 0 : index
    %175 = vector.load %arg2[%174, %c0_145, %c0_146] : memref<102x1x32xf32, #tpu.memory_space<vmem>>, vector<1x1x32xf32>
    %176 = vector.shape_cast %175 : vector<1x1x32xf32> to vector<1x32xf32>
    %177 = arith.addf %172, %176 : vector<1x32xf32>
    %c6_147 = arith.constant 6 : index
    %c0_148 = arith.constant 0 : index
    %178 = vector.load %arg3[%c6_147, %c0_148] : memref<42x32xf32, #tpu.memory_space<vmem>>, vector<1x32xf32>
    %179 = arith.addf %177, %178 : vector<1x32xf32>
    %c0_149 = arith.constant 0 : index
    %c15 = arith.constant 15 : index
    %180 = memref.load %arg0[%c0_149, %c15] : memref<2x16xi32, #tpu.memory_space<smem>>
    %c1_150 = arith.constant 1 : index
    %c15_151 = arith.constant 15 : index
    %181 = memref.load %arg0[%c1_150, %c15_151] : memref<2x16xi32, #tpu.memory_space<smem>>
    %182 = arith.index_cast %180 : i32 to index
    %c0_152 = arith.constant 0 : index
    %c0_153 = arith.constant 0 : index
    %183 = vector.load %arg2[%182, %c0_152, %c0_153] : memref<102x1x32xf32, #tpu.memory_space<vmem>>, vector<1x1x32xf32>
    %184 = vector.shape_cast %183 : vector<1x1x32xf32> to vector<1x32xf32>
    %c100_i32_154 = arith.constant 100 : i32
    %185 = arith.addi %c100_i32_154, %181 : i32
    %186 = arith.index_cast %185 : i32 to index
    %c0_155 = arith.constant 0 : index
    %c0_156 = arith.constant 0 : index
    %187 = vector.load %arg2[%186, %c0_155, %c0_156] : memref<102x1x32xf32, #tpu.memory_space<vmem>>, vector<1x1x32xf32>
    %188 = vector.shape_cast %187 : vector<1x1x32xf32> to vector<1x32xf32>
    %189 = arith.addf %184, %188 : vector<1x32xf32>
    %c7_157 = arith.constant 7 : index
    %c0_158 = arith.constant 0 : index
    %190 = vector.load %arg3[%c7_157, %c0_158] : memref<42x32xf32, #tpu.memory_space<vmem>>, vector<1x32xf32>
    %191 = arith.addf %189, %190 : vector<1x32xf32>
    %192 = tpu.concatenate %11, %23, %35, %47, %59, %71, %83, %95, %107, %119, %131, %143, %155, %167, %179, %191 in 0 : vector<1x32xf32>, vector<1x32xf32>, vector<1x32xf32>, vector<1x32xf32>, vector<1x32xf32>, vector<1x32xf32>, vector<1x32xf32>, vector<1x32xf32>, vector<1x32xf32>, vector<1x32xf32>, vector<1x32xf32>, vector<1x32xf32>, vector<1x32xf32>, vector<1x32xf32>, vector<1x32xf32>, vector<1x32xf32> -> vector<16x32xf32>
    %c32 = arith.constant 32 : index
    %c0_159 = arith.constant 0 : index
    %193 = vector.load %arg3[%c32, %c0_159] : memref<42x32xf32, #tpu.memory_space<vmem>>, vector<1x32xf32>
    %c33 = arith.constant 33 : index
    %c0_160 = arith.constant 0 : index
    %194 = vector.load %arg3[%c33, %c0_160] : memref<42x32xf32, #tpu.memory_space<vmem>>, vector<1x32xf32>
    %cst = arith.constant dense<0.000000e+00> : vector<16xf32>
    %195 = vector.multi_reduction <add>, %192, %cst [1] : vector<16x32xf32> to vector<16xf32>
    %196 = vector.shape_cast %195 : vector<16xf32> to vector<16x1xf32>
    %cst_161 = arith.constant 3.200000e+01 : f32
    %197 = vector.broadcast %cst_161 : f32 to vector<16x1xf32>
    %198 = arith.divf %196, %197 : vector<16x1xf32>
    %199 = vector.broadcast %198 : vector<16x1xf32> to vector<16x32xf32>
    %200 = arith.subf %192, %199 : vector<16x32xf32>
    %201 = arith.mulf %200, %200 : vector<16x32xf32>
    %cst_162 = arith.constant dense<0.000000e+00> : vector<16xf32>
    %202 = vector.multi_reduction <add>, %201, %cst_162 [1] : vector<16x32xf32> to vector<16xf32>
    %203 = vector.shape_cast %202 : vector<16xf32> to vector<16x1xf32>
    %cst_163 = arith.constant 3.200000e+01 : f32
    %204 = vector.broadcast %cst_163 : f32 to vector<16x1xf32>
    %205 = arith.divf %203, %204 : vector<16x1xf32>
    %206 = vector.broadcast %198 : vector<16x1xf32> to vector<16x32xf32>
    %207 = arith.subf %192, %206 : vector<16x32xf32>
    %cst_164 = arith.constant 9.99999996E-13 : f32
    %208 = vector.broadcast %cst_164 : f32 to vector<16x1xf32>
    %209 = arith.addf %205, %208 : vector<16x1xf32>
    %210 = math.rsqrt %209 : vector<16x1xf32>
    %211 = vector.broadcast %210 : vector<16x1xf32> to vector<16x32xf32>
    %212 = arith.mulf %207, %211 : vector<16x32xf32>
    %213 = vector.broadcast %193 : vector<1x32xf32> to vector<16x32xf32>
    %214 = arith.mulf %212, %213 : vector<16x32xf32>
    %215 = vector.broadcast %194 : vector<1x32xf32> to vector<16x32xf32>
    %216 = arith.addf %214, %215 : vector<16x32xf32>
    %c0_165 = arith.constant 0 : index
    %c0_166 = arith.constant 0 : index
    %217 = vector.load %arg1[%c0_165, %c0_166] : memref<2x8xf32, #tpu.memory_space<vmem>>, vector<2x8xf32>
    %cst_167 = arith.constant 1.000000e+00 : f32
    %218 = vector.broadcast %cst_167 : f32 to vector<2x8xf32>
    %219 = arith.subf %218, %217 : vector<2x8xf32>
    %cst_168 = arith.constant -1.000000e+04 : f32
    %220 = vector.broadcast %cst_168 : f32 to vector<2x8xf32>
    %221 = arith.mulf %219, %220 : vector<2x8xf32>
    %222 = vector.shape_cast %221 : vector<2x8xf32> to vector<2x1x8xf32>
    %223 = tpu.concatenate %222, %222, %222, %222 in 0 : vector<2x1x8xf32>, vector<2x1x8xf32>, vector<2x1x8xf32>, vector<2x1x8xf32> -> vector<8x1x8xf32>
    %c0_169 = arith.constant 0 : index
    %c0_170 = arith.constant 0 : index
    %c0_171 = arith.constant 0 : index
    %224 = vector.load %arg4[%c0_169, %c0_170, %c0_171] : memref<2x33x96xf32, #tpu.memory_space<vmem>>, vector<1x32x96xf32>
    %225 = vector.shape_cast %224 : vector<1x32x96xf32> to vector<32x96xf32>
    %cst_172 = arith.constant dense<0.000000e+00> : vector<16x96xf32>
    %226 = tpu.matmul %216, %225, %cst_172 {dimension_numbers = #tpu.dot_dimension_numbers<[1], [0], [0], [1], [0, 0, 1, 1], [], []>} : vector<16x32xf32>, vector<32x96xf32>, vector<16x96xf32> -> vector<16x96xf32>
    %c0_173 = arith.constant 0 : index
    %c32_174 = arith.constant 32 : index
    %c0_175 = arith.constant 0 : index
    %227 = vector.load %arg4[%c0_173, %c32_174, %c0_175] : memref<2x33x96xf32, #tpu.memory_space<vmem>>, vector<1x1x96xf32>
    %228 = vector.shape_cast %227 : vector<1x1x96xf32> to vector<1x96xf32>
    %229 = vector.broadcast %228 : vector<1x96xf32> to vector<16x96xf32>
    %230 = arith.addf %226, %229 : vector<16x96xf32>
    %231 = vector.extract_strided_slice %230 {offsets = [0, 0], sizes = [16, 8], strides = [1, 1]} : vector<16x96xf32> to vector<16x8xf32>
    %232 = vector.shape_cast %231 : vector<16x8xf32> to vector<2x8x8xf32>
    %233 = vector.extract_strided_slice %230 {offsets = [0, 8], sizes = [16, 8], strides = [1, 1]} : vector<16x96xf32> to vector<16x8xf32>
    %234 = vector.shape_cast %233 : vector<16x8xf32> to vector<2x8x8xf32>
    %235 = vector.extract_strided_slice %230 {offsets = [0, 16], sizes = [16, 8], strides = [1, 1]} : vector<16x96xf32> to vector<16x8xf32>
    %236 = vector.shape_cast %235 : vector<16x8xf32> to vector<2x8x8xf32>
    %237 = vector.extract_strided_slice %230 {offsets = [0, 24], sizes = [16, 8], strides = [1, 1]} : vector<16x96xf32> to vector<16x8xf32>
    %238 = vector.shape_cast %237 : vector<16x8xf32> to vector<2x8x8xf32>
    %239 = tpu.concatenate %232, %234, %236, %238 in 0 : vector<2x8x8xf32>, vector<2x8x8xf32>, vector<2x8x8xf32>, vector<2x8x8xf32> -> vector<8x8x8xf32>
    %240 = vector.extract_strided_slice %230 {offsets = [0, 32], sizes = [16, 8], strides = [1, 1]} : vector<16x96xf32> to vector<16x8xf32>
    %241 = vector.shape_cast %240 : vector<16x8xf32> to vector<2x8x8xf32>
    %242 = vector.extract_strided_slice %230 {offsets = [0, 40], sizes = [16, 8], strides = [1, 1]} : vector<16x96xf32> to vector<16x8xf32>
    %243 = vector.shape_cast %242 : vector<16x8xf32> to vector<2x8x8xf32>
    %244 = vector.extract_strided_slice %230 {offsets = [0, 48], sizes = [16, 8], strides = [1, 1]} : vector<16x96xf32> to vector<16x8xf32>
    %245 = vector.shape_cast %244 : vector<16x8xf32> to vector<2x8x8xf32>
    %246 = vector.extract_strided_slice %230 {offsets = [0, 56], sizes = [16, 8], strides = [1, 1]} : vector<16x96xf32> to vector<16x8xf32>
    %247 = vector.shape_cast %246 : vector<16x8xf32> to vector<2x8x8xf32>
    %248 = tpu.concatenate %241, %243, %245, %247 in 0 : vector<2x8x8xf32>, vector<2x8x8xf32>, vector<2x8x8xf32>, vector<2x8x8xf32> -> vector<8x8x8xf32>
    %249 = vector.extract_strided_slice %230 {offsets = [0, 64], sizes = [16, 8], strides = [1, 1]} : vector<16x96xf32> to vector<16x8xf32>
    %250 = vector.shape_cast %249 : vector<16x8xf32> to vector<2x8x8xf32>
    %251 = vector.extract_strided_slice %230 {offsets = [0, 72], sizes = [16, 8], strides = [1, 1]} : vector<16x96xf32> to vector<16x8xf32>
    %252 = vector.shape_cast %251 : vector<16x8xf32> to vector<2x8x8xf32>
    %253 = vector.extract_strided_slice %230 {offsets = [0, 80], sizes = [16, 8], strides = [1, 1]} : vector<16x96xf32> to vector<16x8xf32>
    %254 = vector.shape_cast %253 : vector<16x8xf32> to vector<2x8x8xf32>
    %255 = vector.extract_strided_slice %230 {offsets = [0, 88], sizes = [16, 8], strides = [1, 1]} : vector<16x96xf32> to vector<16x8xf32>
    %256 = vector.shape_cast %255 : vector<16x8xf32> to vector<2x8x8xf32>
    %257 = tpu.concatenate %250, %252, %254, %256 in 0 : vector<2x8x8xf32>, vector<2x8x8xf32>, vector<2x8x8xf32>, vector<2x8x8xf32> -> vector<8x8x8xf32>
    "tpu.trace_start"() <{level = 10 : i32, message = "gqd,gkd->gqk"}> : () -> ()
    %cst_176 = arith.constant dense<0.000000e+00> : vector<8x8x8xf32>
    %258 = tpu.matmul %239, %248, %cst_176 {dimension_numbers = #tpu.dot_dimension_numbers<[2], [2], [1], [1], [0, 0, 0, 1, 1, 1], [0], [0]>} : vector<8x8x8xf32>, vector<8x8x8xf32>, vector<8x8x8xf32> -> vector<8x8x8xf32>
    "tpu.trace_stop"() : () -> ()
    %259 = vector.broadcast %223 : vector<8x1x8xf32> to vector<8x8x8xf32>
    %260 = arith.addf %258, %259 : vector<8x8x8xf32>
    %cst_177 = arith.constant dense<0xFF800000> : vector<8x8xf32>
    %261 = vector.multi_reduction <maximumf>, %260, %cst_177 [2] : vector<8x8x8xf32> to vector<8x8xf32>
    %262 = vector.shape_cast %261 : vector<8x8xf32> to vector<8x8x1xf32>
    %263 = vector.broadcast %262 : vector<8x8x1xf32> to vector<8x8x8xf32>
    %264 = arith.subf %260, %263 : vector<8x8x8xf32>
    %265 = math.exp %264 : vector<8x8x8xf32>
    %cst_178 = arith.constant dense<0.000000e+00> : vector<8x8xf32>
    %266 = vector.multi_reduction <add>, %265, %cst_178 [2] : vector<8x8x8xf32> to vector<8x8xf32>
    %267 = vector.shape_cast %266 : vector<8x8xf32> to vector<8x8x1xf32>
    %268 = tpu.reciprocal %267 {approx = true} : vector<8x8x1xf32> -> vector<8x8x1xf32>
    %269 = vector.broadcast %268 : vector<8x8x1xf32> to vector<8x8x8xf32>
    %270 = arith.mulf %265, %269 : vector<8x8x8xf32>
    "tpu.trace_start"() <{level = 10 : i32, message = "gqk,gkd->gqd"}> : () -> ()
    %cst_179 = arith.constant dense<0.000000e+00> : vector<8x8x8xf32>
    %271 = tpu.matmul %270, %257, %cst_179 {dimension_numbers = #tpu.dot_dimension_numbers<[2], [1], [1], [2], [0, 0, 0, 1, 1, 2], [0], [0]>} : vector<8x8x8xf32>, vector<8x8x8xf32>, vector<8x8x8xf32> -> vector<8x8x8xf32>
    "tpu.trace_stop"() : () -> ()
    %272 = vector.extract_strided_slice %271 {offsets = [0, 0, 0], sizes = [2, 8, 8], strides = [1, 1, 1]} : vector<8x8x8xf32> to vector<2x8x8xf32>
    %273 = vector.shape_cast %272 : vector<2x8x8xf32> to vector<16x8xf32>
    %274 = vector.extract_strided_slice %271 {offsets = [2, 0, 0], sizes = [2, 8, 8], strides = [1, 1, 1]} : vector<8x8x8xf32> to vector<2x8x8xf32>
    %275 = vector.shape_cast %274 : vector<2x8x8xf32> to vector<16x8xf32>
    %276 = vector.extract_strided_slice %271 {offsets = [4, 0, 0], sizes = [2, 8, 8], strides = [1, 1, 1]} : vector<8x8x8xf32> to vector<2x8x8xf32>
    %277 = vector.shape_cast %276 : vector<2x8x8xf32> to vector<16x8xf32>
    %278 = vector.extract_strided_slice %271 {offsets = [6, 0, 0], sizes = [2, 8, 8], strides = [1, 1, 1]} : vector<8x8x8xf32> to vector<2x8x8xf32>
    %279 = vector.shape_cast %278 : vector<2x8x8xf32> to vector<16x8xf32>
    %280 = tpu.concatenate %273, %275, %277, %279 in 1 : vector<16x8xf32>, vector<16x8xf32>, vector<16x8xf32>, vector<16x8xf32> -> vector<16x32xf32>
    %c0_180 = arith.constant 0 : index
    %c0_181 = arith.constant 0 : index
    %c0_182 = arith.constant 0 : index
    %281 = vector.load %arg5[%c0_180, %c0_181, %c0_182] : memref<2x33x32xf32, #tpu.memory_space<vmem>>, vector<1x32x32xf32>
    %282 = vector.shape_cast %281 : vector<1x32x32xf32> to vector<32x32xf32>
    %cst_183 = arith.constant dense<0.000000e+00> : vector<16x32xf32>
    %283 = tpu.matmul %280, %282, %cst_183 {dimension_numbers = #tpu.dot_dimension_numbers<[1], [0], [0], [1], [0, 0, 1, 1], [], []>} : vector<16x32xf32>, vector<32x32xf32>, vector<16x32xf32> -> vector<16x32xf32>
    %c0_184 = arith.constant 0 : index
    %c32_185 = arith.constant 32 : index
    %c0_186 = arith.constant 0 : index
    %284 = vector.load %arg5[%c0_184, %c32_185, %c0_186] : memref<2x33x32xf32, #tpu.memory_space<vmem>>, vector<1x1x32xf32>
    %285 = vector.shape_cast %284 : vector<1x1x32xf32> to vector<1x32xf32>
    %286 = vector.broadcast %285 : vector<1x32xf32> to vector<16x32xf32>
    %287 = arith.addf %283, %286 : vector<16x32xf32>
    %288 = arith.addf %287, %216 : vector<16x32xf32>
    %c34 = arith.constant 34 : index
    %c0_187 = arith.constant 0 : index
    %289 = vector.load %arg3[%c34, %c0_187] : memref<42x32xf32, #tpu.memory_space<vmem>>, vector<1x32xf32>
    %c35 = arith.constant 35 : index
    %c0_188 = arith.constant 0 : index
    %290 = vector.load %arg3[%c35, %c0_188] : memref<42x32xf32, #tpu.memory_space<vmem>>, vector<1x32xf32>
    %cst_189 = arith.constant dense<0.000000e+00> : vector<16xf32>
    %291 = vector.multi_reduction <add>, %288, %cst_189 [1] : vector<16x32xf32> to vector<16xf32>
    %292 = vector.shape_cast %291 : vector<16xf32> to vector<16x1xf32>
    %cst_190 = arith.constant 3.200000e+01 : f32
    %293 = vector.broadcast %cst_190 : f32 to vector<16x1xf32>
    %294 = arith.divf %292, %293 : vector<16x1xf32>
    %295 = vector.broadcast %294 : vector<16x1xf32> to vector<16x32xf32>
    %296 = arith.subf %288, %295 : vector<16x32xf32>
    %297 = arith.mulf %296, %296 : vector<16x32xf32>
    %cst_191 = arith.constant dense<0.000000e+00> : vector<16xf32>
    %298 = vector.multi_reduction <add>, %297, %cst_191 [1] : vector<16x32xf32> to vector<16xf32>
    %299 = vector.shape_cast %298 : vector<16xf32> to vector<16x1xf32>
    %cst_192 = arith.constant 3.200000e+01 : f32
    %300 = vector.broadcast %cst_192 : f32 to vector<16x1xf32>
    %301 = arith.divf %299, %300 : vector<16x1xf32>
    %302 = vector.broadcast %294 : vector<16x1xf32> to vector<16x32xf32>
    %303 = arith.subf %288, %302 : vector<16x32xf32>
    %cst_193 = arith.constant 9.99999996E-13 : f32
    %304 = vector.broadcast %cst_193 : f32 to vector<16x1xf32>
    %305 = arith.addf %301, %304 : vector<16x1xf32>
    %306 = math.rsqrt %305 : vector<16x1xf32>
    %307 = vector.broadcast %306 : vector<16x1xf32> to vector<16x32xf32>
    %308 = arith.mulf %303, %307 : vector<16x32xf32>
    %309 = vector.broadcast %289 : vector<1x32xf32> to vector<16x32xf32>
    %310 = arith.mulf %308, %309 : vector<16x32xf32>
    %311 = vector.broadcast %290 : vector<1x32xf32> to vector<16x32xf32>
    %312 = arith.addf %310, %311 : vector<16x32xf32>
    %c0_194 = arith.constant 0 : index
    %c0_195 = arith.constant 0 : index
    %c0_196 = arith.constant 0 : index
    %313 = vector.load %arg6[%c0_194, %c0_195, %c0_196] : memref<2x33x64xf32, #tpu.memory_space<vmem>>, vector<1x32x64xf32>
    %314 = vector.shape_cast %313 : vector<1x32x64xf32> to vector<32x64xf32>
    %cst_197 = arith.constant dense<0.000000e+00> : vector<16x64xf32>
    %315 = tpu.matmul %312, %314, %cst_197 {dimension_numbers = #tpu.dot_dimension_numbers<[1], [0], [0], [1], [0, 0, 1, 1], [], []>} : vector<16x32xf32>, vector<32x64xf32>, vector<16x64xf32> -> vector<16x64xf32>
    %c0_198 = arith.constant 0 : index
    %c32_199 = arith.constant 32 : index
    %c0_200 = arith.constant 0 : index
    %316 = vector.load %arg6[%c0_198, %c32_199, %c0_200] : memref<2x33x64xf32, #tpu.memory_space<vmem>>, vector<1x1x64xf32>
    %317 = vector.shape_cast %316 : vector<1x1x64xf32> to vector<1x64xf32>
    %318 = vector.broadcast %317 : vector<1x64xf32> to vector<16x64xf32>
    %319 = arith.addf %315, %318 : vector<16x64xf32>
    %cst_201 = arith.constant 5.000000e-01 : f32
    %320 = vector.broadcast %cst_201 : f32 to vector<16x64xf32>
    %321 = arith.mulf %320, %319 : vector<16x64xf32>
    %cst_202 = arith.constant 0.707106769 : f32
    %322 = vector.broadcast %cst_202 : f32 to vector<16x64xf32>
    %323 = arith.mulf %319, %322 : vector<16x64xf32>
    %324 = math.absf %323 : vector<16x64xf32>
    %cst_203 = arith.constant 0.327591091 : f32
    %325 = vector.broadcast %cst_203 : f32 to vector<16x64xf32>
    %326 = arith.mulf %325, %324 : vector<16x64xf32>
    %cst_204 = arith.constant 1.000000e+00 : f32
    %327 = vector.broadcast %cst_204 : f32 to vector<16x64xf32>
    %328 = arith.addf %327, %326 : vector<16x64xf32>
    %cst_205 = arith.constant 1.000000e+00 : f32
    %329 = vector.broadcast %cst_205 : f32 to vector<16x64xf32>
    %330 = arith.divf %329, %328 : vector<16x64xf32>
    %cst_206 = arith.constant 1.06140542 : f32
    %331 = vector.broadcast %cst_206 : f32 to vector<16x64xf32>
    %332 = arith.mulf %331, %330 : vector<16x64xf32>
    %cst_207 = arith.constant -1.45315206 : f32
    %333 = vector.broadcast %cst_207 : f32 to vector<16x64xf32>
    %334 = arith.addf %332, %333 : vector<16x64xf32>
    %335 = arith.mulf %334, %330 : vector<16x64xf32>
    %cst_208 = arith.constant 1.42141378 : f32
    %336 = vector.broadcast %cst_208 : f32 to vector<16x64xf32>
    %337 = arith.addf %335, %336 : vector<16x64xf32>
    %338 = arith.mulf %337, %330 : vector<16x64xf32>
    %cst_209 = arith.constant -0.284496725 : f32
    %339 = vector.broadcast %cst_209 : f32 to vector<16x64xf32>
    %340 = arith.addf %338, %339 : vector<16x64xf32>
    %341 = arith.mulf %340, %330 : vector<16x64xf32>
    %cst_210 = arith.constant 0.254829586 : f32
    %342 = vector.broadcast %cst_210 : f32 to vector<16x64xf32>
    %343 = arith.addf %341, %342 : vector<16x64xf32>
    %344 = arith.mulf %343, %330 : vector<16x64xf32>
    %345 = arith.mulf %324, %324 : vector<16x64xf32>
    %cst_211 = arith.constant 0.000000e+00 : f32
    %346 = vector.broadcast %cst_211 : f32 to vector<16x64xf32>
    %347 = arith.subf %346, %345 : vector<16x64xf32>
    %348 = math.exp %347 : vector<16x64xf32>
    %349 = arith.mulf %344, %348 : vector<16x64xf32>
    %cst_212 = arith.constant 1.000000e+00 : f32
    %350 = vector.broadcast %cst_212 : f32 to vector<16x64xf32>
    %351 = arith.subf %350, %349 : vector<16x64xf32>
    %cst_213 = arith.constant 0.000000e+00 : f32
    %352 = vector.broadcast %cst_213 : f32 to vector<16x64xf32>
    %353 = arith.cmpf oge, %323, %352 : vector<16x64xf32>
    %cst_214 = arith.constant 0.000000e+00 : f32
    %354 = vector.broadcast %cst_214 : f32 to vector<16x64xf32>
    %355 = arith.subf %354, %351 : vector<16x64xf32>
    %356 = arith.select %353, %351, %355 : vector<16x64xi1>, vector<16x64xf32>
    %cst_215 = arith.constant 1.000000e+00 : f32
    %357 = vector.broadcast %cst_215 : f32 to vector<16x64xf32>
    %358 = arith.addf %357, %356 : vector<16x64xf32>
    %359 = arith.mulf %321, %358 : vector<16x64xf32>
    %c0_216 = arith.constant 0 : index
    %c0_217 = arith.constant 0 : index
    %c0_218 = arith.constant 0 : index
    %360 = vector.load %arg7[%c0_216, %c0_217, %c0_218] : memref<2x65x32xf32, #tpu.memory_space<vmem>>, vector<1x64x32xf32>
    %361 = vector.shape_cast %360 : vector<1x64x32xf32> to vector<64x32xf32>
    %cst_219 = arith.constant dense<0.000000e+00> : vector<16x32xf32>
    %362 = tpu.matmul %359, %361, %cst_219 {dimension_numbers = #tpu.dot_dimension_numbers<[1], [0], [0], [1], [0, 0, 1, 1], [], []>} : vector<16x64xf32>, vector<64x32xf32>, vector<16x32xf32> -> vector<16x32xf32>
    %c0_220 = arith.constant 0 : index
    %c64 = arith.constant 64 : index
    %c0_221 = arith.constant 0 : index
    %363 = vector.load %arg7[%c0_220, %c64, %c0_221] : memref<2x65x32xf32, #tpu.memory_space<vmem>>, vector<1x1x32xf32>
    %364 = vector.shape_cast %363 : vector<1x1x32xf32> to vector<1x32xf32>
    %365 = vector.broadcast %364 : vector<1x32xf32> to vector<16x32xf32>
    %366 = arith.addf %362, %365 : vector<16x32xf32>
    %367 = arith.addf %366, %312 : vector<16x32xf32>
    %c36 = arith.constant 36 : index
    %c0_222 = arith.constant 0 : index
    %368 = vector.load %arg3[%c36, %c0_222] : memref<42x32xf32, #tpu.memory_space<vmem>>, vector<1x32xf32>
    %c37 = arith.constant 37 : index
    %c0_223 = arith.constant 0 : index
    %369 = vector.load %arg3[%c37, %c0_223] : memref<42x32xf32, #tpu.memory_space<vmem>>, vector<1x32xf32>
    %cst_224 = arith.constant dense<0.000000e+00> : vector<16xf32>
    %370 = vector.multi_reduction <add>, %367, %cst_224 [1] : vector<16x32xf32> to vector<16xf32>
    %371 = vector.shape_cast %370 : vector<16xf32> to vector<16x1xf32>
    %cst_225 = arith.constant 3.200000e+01 : f32
    %372 = vector.broadcast %cst_225 : f32 to vector<16x1xf32>
    %373 = arith.divf %371, %372 : vector<16x1xf32>
    %374 = vector.broadcast %373 : vector<16x1xf32> to vector<16x32xf32>
    %375 = arith.subf %367, %374 : vector<16x32xf32>
    %376 = arith.mulf %375, %375 : vector<16x32xf32>
    %cst_226 = arith.constant dense<0.000000e+00> : vector<16xf32>
    %377 = vector.multi_reduction <add>, %376, %cst_226 [1] : vector<16x32xf32> to vector<16xf32>
    %378 = vector.shape_cast %377 : vector<16xf32> to vector<16x1xf32>
    %cst_227 = arith.constant 3.200000e+01 : f32
    %379 = vector.broadcast %cst_227 : f32 to vector<16x1xf32>
    %380 = arith.divf %378, %379 : vector<16x1xf32>
    %381 = vector.broadcast %373 : vector<16x1xf32> to vector<16x32xf32>
    %382 = arith.subf %367, %381 : vector<16x32xf32>
    %cst_228 = arith.constant 9.99999996E-13 : f32
    %383 = vector.broadcast %cst_228 : f32 to vector<16x1xf32>
    %384 = arith.addf %380, %383 : vector<16x1xf32>
    %385 = math.rsqrt %384 : vector<16x1xf32>
    %386 = vector.broadcast %385 : vector<16x1xf32> to vector<16x32xf32>
    %387 = arith.mulf %382, %386 : vector<16x32xf32>
    %388 = vector.broadcast %368 : vector<1x32xf32> to vector<16x32xf32>
    %389 = arith.mulf %387, %388 : vector<16x32xf32>
    %390 = vector.broadcast %369 : vector<1x32xf32> to vector<16x32xf32>
    %391 = arith.addf %389, %390 : vector<16x32xf32>
    %c1_229 = arith.constant 1 : index
    %c0_230 = arith.constant 0 : index
    %c0_231 = arith.constant 0 : index
    %392 = vector.load %arg4[%c1_229, %c0_230, %c0_231] : memref<2x33x96xf32, #tpu.memory_space<vmem>>, vector<1x32x96xf32>
    %393 = vector.shape_cast %392 : vector<1x32x96xf32> to vector<32x96xf32>
    %cst_232 = arith.constant dense<0.000000e+00> : vector<16x96xf32>
    %394 = tpu.matmul %391, %393, %cst_232 {dimension_numbers = #tpu.dot_dimension_numbers<[1], [0], [0], [1], [0, 0, 1, 1], [], []>} : vector<16x32xf32>, vector<32x96xf32>, vector<16x96xf32> -> vector<16x96xf32>
    %c1_233 = arith.constant 1 : index
    %c32_234 = arith.constant 32 : index
    %c0_235 = arith.constant 0 : index
    %395 = vector.load %arg4[%c1_233, %c32_234, %c0_235] : memref<2x33x96xf32, #tpu.memory_space<vmem>>, vector<1x1x96xf32>
    %396 = vector.shape_cast %395 : vector<1x1x96xf32> to vector<1x96xf32>
    %397 = vector.broadcast %396 : vector<1x96xf32> to vector<16x96xf32>
    %398 = arith.addf %394, %397 : vector<16x96xf32>
    %399 = vector.extract_strided_slice %398 {offsets = [0, 0], sizes = [16, 8], strides = [1, 1]} : vector<16x96xf32> to vector<16x8xf32>
    %400 = vector.shape_cast %399 : vector<16x8xf32> to vector<2x8x8xf32>
    %401 = vector.extract_strided_slice %398 {offsets = [0, 8], sizes = [16, 8], strides = [1, 1]} : vector<16x96xf32> to vector<16x8xf32>
    %402 = vector.shape_cast %401 : vector<16x8xf32> to vector<2x8x8xf32>
    %403 = vector.extract_strided_slice %398 {offsets = [0, 16], sizes = [16, 8], strides = [1, 1]} : vector<16x96xf32> to vector<16x8xf32>
    %404 = vector.shape_cast %403 : vector<16x8xf32> to vector<2x8x8xf32>
    %405 = vector.extract_strided_slice %398 {offsets = [0, 24], sizes = [16, 8], strides = [1, 1]} : vector<16x96xf32> to vector<16x8xf32>
    %406 = vector.shape_cast %405 : vector<16x8xf32> to vector<2x8x8xf32>
    %407 = tpu.concatenate %400, %402, %404, %406 in 0 : vector<2x8x8xf32>, vector<2x8x8xf32>, vector<2x8x8xf32>, vector<2x8x8xf32> -> vector<8x8x8xf32>
    %408 = vector.extract_strided_slice %398 {offsets = [0, 32], sizes = [16, 8], strides = [1, 1]} : vector<16x96xf32> to vector<16x8xf32>
    %409 = vector.shape_cast %408 : vector<16x8xf32> to vector<2x8x8xf32>
    %410 = vector.extract_strided_slice %398 {offsets = [0, 40], sizes = [16, 8], strides = [1, 1]} : vector<16x96xf32> to vector<16x8xf32>
    %411 = vector.shape_cast %410 : vector<16x8xf32> to vector<2x8x8xf32>
    %412 = vector.extract_strided_slice %398 {offsets = [0, 48], sizes = [16, 8], strides = [1, 1]} : vector<16x96xf32> to vector<16x8xf32>
    %413 = vector.shape_cast %412 : vector<16x8xf32> to vector<2x8x8xf32>
    %414 = vector.extract_strided_slice %398 {offsets = [0, 56], sizes = [16, 8], strides = [1, 1]} : vector<16x96xf32> to vector<16x8xf32>
    %415 = vector.shape_cast %414 : vector<16x8xf32> to vector<2x8x8xf32>
    %416 = tpu.concatenate %409, %411, %413, %415 in 0 : vector<2x8x8xf32>, vector<2x8x8xf32>, vector<2x8x8xf32>, vector<2x8x8xf32> -> vector<8x8x8xf32>
    %417 = vector.extract_strided_slice %398 {offsets = [0, 64], sizes = [16, 8], strides = [1, 1]} : vector<16x96xf32> to vector<16x8xf32>
    %418 = vector.shape_cast %417 : vector<16x8xf32> to vector<2x8x8xf32>
    %419 = vector.extract_strided_slice %398 {offsets = [0, 72], sizes = [16, 8], strides = [1, 1]} : vector<16x96xf32> to vector<16x8xf32>
    %420 = vector.shape_cast %419 : vector<16x8xf32> to vector<2x8x8xf32>
    %421 = vector.extract_strided_slice %398 {offsets = [0, 80], sizes = [16, 8], strides = [1, 1]} : vector<16x96xf32> to vector<16x8xf32>
    %422 = vector.shape_cast %421 : vector<16x8xf32> to vector<2x8x8xf32>
    %423 = vector.extract_strided_slice %398 {offsets = [0, 88], sizes = [16, 8], strides = [1, 1]} : vector<16x96xf32> to vector<16x8xf32>
    %424 = vector.shape_cast %423 : vector<16x8xf32> to vector<2x8x8xf32>
    %425 = tpu.concatenate %418, %420, %422, %424 in 0 : vector<2x8x8xf32>, vector<2x8x8xf32>, vector<2x8x8xf32>, vector<2x8x8xf32> -> vector<8x8x8xf32>
    "tpu.trace_start"() <{level = 10 : i32, message = "gqd,gkd->gqk"}> : () -> ()
    %cst_236 = arith.constant dense<0.000000e+00> : vector<8x8x8xf32>
    %426 = tpu.matmul %407, %416, %cst_236 {dimension_numbers = #tpu.dot_dimension_numbers<[2], [2], [1], [1], [0, 0, 0, 1, 1, 1], [0], [0]>} : vector<8x8x8xf32>, vector<8x8x8xf32>, vector<8x8x8xf32> -> vector<8x8x8xf32>
    "tpu.trace_stop"() : () -> ()
    %427 = vector.broadcast %223 : vector<8x1x8xf32> to vector<8x8x8xf32>
    %428 = arith.addf %426, %427 : vector<8x8x8xf32>
    %cst_237 = arith.constant dense<0xFF800000> : vector<8x8xf32>
    %429 = vector.multi_reduction <maximumf>, %428, %cst_237 [2] : vector<8x8x8xf32> to vector<8x8xf32>
    %430 = vector.shape_cast %429 : vector<8x8xf32> to vector<8x8x1xf32>
    %431 = vector.broadcast %430 : vector<8x8x1xf32> to vector<8x8x8xf32>
    %432 = arith.subf %428, %431 : vector<8x8x8xf32>
    %433 = math.exp %432 : vector<8x8x8xf32>
    %cst_238 = arith.constant dense<0.000000e+00> : vector<8x8xf32>
    %434 = vector.multi_reduction <add>, %433, %cst_238 [2] : vector<8x8x8xf32> to vector<8x8xf32>
    %435 = vector.shape_cast %434 : vector<8x8xf32> to vector<8x8x1xf32>
    %436 = tpu.reciprocal %435 {approx = true} : vector<8x8x1xf32> -> vector<8x8x1xf32>
    %437 = vector.broadcast %436 : vector<8x8x1xf32> to vector<8x8x8xf32>
    %438 = arith.mulf %433, %437 : vector<8x8x8xf32>
    "tpu.trace_start"() <{level = 10 : i32, message = "gqk,gkd->gqd"}> : () -> ()
    %cst_239 = arith.constant dense<0.000000e+00> : vector<8x8x8xf32>
    %439 = tpu.matmul %438, %425, %cst_239 {dimension_numbers = #tpu.dot_dimension_numbers<[2], [1], [1], [2], [0, 0, 0, 1, 1, 2], [0], [0]>} : vector<8x8x8xf32>, vector<8x8x8xf32>, vector<8x8x8xf32> -> vector<8x8x8xf32>
    "tpu.trace_stop"() : () -> ()
    %440 = vector.extract_strided_slice %439 {offsets = [0, 0, 0], sizes = [2, 8, 8], strides = [1, 1, 1]} : vector<8x8x8xf32> to vector<2x8x8xf32>
    %441 = vector.shape_cast %440 : vector<2x8x8xf32> to vector<16x8xf32>
    %442 = vector.extract_strided_slice %439 {offsets = [2, 0, 0], sizes = [2, 8, 8], strides = [1, 1, 1]} : vector<8x8x8xf32> to vector<2x8x8xf32>
    %443 = vector.shape_cast %442 : vector<2x8x8xf32> to vector<16x8xf32>
    %444 = vector.extract_strided_slice %439 {offsets = [4, 0, 0], sizes = [2, 8, 8], strides = [1, 1, 1]} : vector<8x8x8xf32> to vector<2x8x8xf32>
    %445 = vector.shape_cast %444 : vector<2x8x8xf32> to vector<16x8xf32>
    %446 = vector.extract_strided_slice %439 {offsets = [6, 0, 0], sizes = [2, 8, 8], strides = [1, 1, 1]} : vector<8x8x8xf32> to vector<2x8x8xf32>
    %447 = vector.shape_cast %446 : vector<2x8x8xf32> to vector<16x8xf32>
    %448 = tpu.concatenate %441, %443, %445, %447 in 1 : vector<16x8xf32>, vector<16x8xf32>, vector<16x8xf32>, vector<16x8xf32> -> vector<16x32xf32>
    %c1_240 = arith.constant 1 : index
    %c0_241 = arith.constant 0 : index
    %c0_242 = arith.constant 0 : index
    %449 = vector.load %arg5[%c1_240, %c0_241, %c0_242] : memref<2x33x32xf32, #tpu.memory_space<vmem>>, vector<1x32x32xf32>
    %450 = vector.shape_cast %449 : vector<1x32x32xf32> to vector<32x32xf32>
    %cst_243 = arith.constant dense<0.000000e+00> : vector<16x32xf32>
    %451 = tpu.matmul %448, %450, %cst_243 {dimension_numbers = #tpu.dot_dimension_numbers<[1], [0], [0], [1], [0, 0, 1, 1], [], []>} : vector<16x32xf32>, vector<32x32xf32>, vector<16x32xf32> -> vector<16x32xf32>
    %c1_244 = arith.constant 1 : index
    %c32_245 = arith.constant 32 : index
    %c0_246 = arith.constant 0 : index
    %452 = vector.load %arg5[%c1_244, %c32_245, %c0_246] : memref<2x33x32xf32, #tpu.memory_space<vmem>>, vector<1x1x32xf32>
    %453 = vector.shape_cast %452 : vector<1x1x32xf32> to vector<1x32xf32>
    %454 = vector.broadcast %453 : vector<1x32xf32> to vector<16x32xf32>
    %455 = arith.addf %451, %454 : vector<16x32xf32>
    %456 = arith.addf %455, %391 : vector<16x32xf32>
    %c38 = arith.constant 38 : index
    %c0_247 = arith.constant 0 : index
    %457 = vector.load %arg3[%c38, %c0_247] : memref<42x32xf32, #tpu.memory_space<vmem>>, vector<1x32xf32>
    %c39 = arith.constant 39 : index
    %c0_248 = arith.constant 0 : index
    %458 = vector.load %arg3[%c39, %c0_248] : memref<42x32xf32, #tpu.memory_space<vmem>>, vector<1x32xf32>
    %cst_249 = arith.constant dense<0.000000e+00> : vector<16xf32>
    %459 = vector.multi_reduction <add>, %456, %cst_249 [1] : vector<16x32xf32> to vector<16xf32>
    %460 = vector.shape_cast %459 : vector<16xf32> to vector<16x1xf32>
    %cst_250 = arith.constant 3.200000e+01 : f32
    %461 = vector.broadcast %cst_250 : f32 to vector<16x1xf32>
    %462 = arith.divf %460, %461 : vector<16x1xf32>
    %463 = vector.broadcast %462 : vector<16x1xf32> to vector<16x32xf32>
    %464 = arith.subf %456, %463 : vector<16x32xf32>
    %465 = arith.mulf %464, %464 : vector<16x32xf32>
    %cst_251 = arith.constant dense<0.000000e+00> : vector<16xf32>
    %466 = vector.multi_reduction <add>, %465, %cst_251 [1] : vector<16x32xf32> to vector<16xf32>
    %467 = vector.shape_cast %466 : vector<16xf32> to vector<16x1xf32>
    %cst_252 = arith.constant 3.200000e+01 : f32
    %468 = vector.broadcast %cst_252 : f32 to vector<16x1xf32>
    %469 = arith.divf %467, %468 : vector<16x1xf32>
    %470 = vector.broadcast %462 : vector<16x1xf32> to vector<16x32xf32>
    %471 = arith.subf %456, %470 : vector<16x32xf32>
    %cst_253 = arith.constant 9.99999996E-13 : f32
    %472 = vector.broadcast %cst_253 : f32 to vector<16x1xf32>
    %473 = arith.addf %469, %472 : vector<16x1xf32>
    %474 = math.rsqrt %473 : vector<16x1xf32>
    %475 = vector.broadcast %474 : vector<16x1xf32> to vector<16x32xf32>
    %476 = arith.mulf %471, %475 : vector<16x32xf32>
    %477 = vector.broadcast %457 : vector<1x32xf32> to vector<16x32xf32>
    %478 = arith.mulf %476, %477 : vector<16x32xf32>
    %479 = vector.broadcast %458 : vector<1x32xf32> to vector<16x32xf32>
    %480 = arith.addf %478, %479 : vector<16x32xf32>
    %c1_254 = arith.constant 1 : index
    %c0_255 = arith.constant 0 : index
    %c0_256 = arith.constant 0 : index
    %481 = vector.load %arg6[%c1_254, %c0_255, %c0_256] : memref<2x33x64xf32, #tpu.memory_space<vmem>>, vector<1x32x64xf32>
    %482 = vector.shape_cast %481 : vector<1x32x64xf32> to vector<32x64xf32>
    %cst_257 = arith.constant dense<0.000000e+00> : vector<16x64xf32>
    %483 = tpu.matmul %480, %482, %cst_257 {dimension_numbers = #tpu.dot_dimension_numbers<[1], [0], [0], [1], [0, 0, 1, 1], [], []>} : vector<16x32xf32>, vector<32x64xf32>, vector<16x64xf32> -> vector<16x64xf32>
    %c1_258 = arith.constant 1 : index
    %c32_259 = arith.constant 32 : index
    %c0_260 = arith.constant 0 : index
    %484 = vector.load %arg6[%c1_258, %c32_259, %c0_260] : memref<2x33x64xf32, #tpu.memory_space<vmem>>, vector<1x1x64xf32>
    %485 = vector.shape_cast %484 : vector<1x1x64xf32> to vector<1x64xf32>
    %486 = vector.broadcast %485 : vector<1x64xf32> to vector<16x64xf32>
    %487 = arith.addf %483, %486 : vector<16x64xf32>
    %cst_261 = arith.constant 5.000000e-01 : f32
    %488 = vector.broadcast %cst_261 : f32 to vector<16x64xf32>
    %489 = arith.mulf %488, %487 : vector<16x64xf32>
    %cst_262 = arith.constant 0.707106769 : f32
    %490 = vector.broadcast %cst_262 : f32 to vector<16x64xf32>
    %491 = arith.mulf %487, %490 : vector<16x64xf32>
    %492 = math.absf %491 : vector<16x64xf32>
    %cst_263 = arith.constant 0.327591091 : f32
    %493 = vector.broadcast %cst_263 : f32 to vector<16x64xf32>
    %494 = arith.mulf %493, %492 : vector<16x64xf32>
    %cst_264 = arith.constant 1.000000e+00 : f32
    %495 = vector.broadcast %cst_264 : f32 to vector<16x64xf32>
    %496 = arith.addf %495, %494 : vector<16x64xf32>
    %cst_265 = arith.constant 1.000000e+00 : f32
    %497 = vector.broadcast %cst_265 : f32 to vector<16x64xf32>
    %498 = arith.divf %497, %496 : vector<16x64xf32>
    %cst_266 = arith.constant 1.06140542 : f32
    %499 = vector.broadcast %cst_266 : f32 to vector<16x64xf32>
    %500 = arith.mulf %499, %498 : vector<16x64xf32>
    %cst_267 = arith.constant -1.45315206 : f32
    %501 = vector.broadcast %cst_267 : f32 to vector<16x64xf32>
    %502 = arith.addf %500, %501 : vector<16x64xf32>
    %503 = arith.mulf %502, %498 : vector<16x64xf32>
    %cst_268 = arith.constant 1.42141378 : f32
    %504 = vector.broadcast %cst_268 : f32 to vector<16x64xf32>
    %505 = arith.addf %503, %504 : vector<16x64xf32>
    %506 = arith.mulf %505, %498 : vector<16x64xf32>
    %cst_269 = arith.constant -0.284496725 : f32
    %507 = vector.broadcast %cst_269 : f32 to vector<16x64xf32>
    %508 = arith.addf %506, %507 : vector<16x64xf32>
    %509 = arith.mulf %508, %498 : vector<16x64xf32>
    %cst_270 = arith.constant 0.254829586 : f32
    %510 = vector.broadcast %cst_270 : f32 to vector<16x64xf32>
    %511 = arith.addf %509, %510 : vector<16x64xf32>
    %512 = arith.mulf %511, %498 : vector<16x64xf32>
    %513 = arith.mulf %492, %492 : vector<16x64xf32>
    %cst_271 = arith.constant 0.000000e+00 : f32
    %514 = vector.broadcast %cst_271 : f32 to vector<16x64xf32>
    %515 = arith.subf %514, %513 : vector<16x64xf32>
    %516 = math.exp %515 : vector<16x64xf32>
    %517 = arith.mulf %512, %516 : vector<16x64xf32>
    %cst_272 = arith.constant 1.000000e+00 : f32
    %518 = vector.broadcast %cst_272 : f32 to vector<16x64xf32>
    %519 = arith.subf %518, %517 : vector<16x64xf32>
    %cst_273 = arith.constant 0.000000e+00 : f32
    %520 = vector.broadcast %cst_273 : f32 to vector<16x64xf32>
    %521 = arith.cmpf oge, %491, %520 : vector<16x64xf32>
    %cst_274 = arith.constant 0.000000e+00 : f32
    %522 = vector.broadcast %cst_274 : f32 to vector<16x64xf32>
    %523 = arith.subf %522, %519 : vector<16x64xf32>
    %524 = arith.select %521, %519, %523 : vector<16x64xi1>, vector<16x64xf32>
    %cst_275 = arith.constant 1.000000e+00 : f32
    %525 = vector.broadcast %cst_275 : f32 to vector<16x64xf32>
    %526 = arith.addf %525, %524 : vector<16x64xf32>
    %527 = arith.mulf %489, %526 : vector<16x64xf32>
    %c1_276 = arith.constant 1 : index
    %c0_277 = arith.constant 0 : index
    %c0_278 = arith.constant 0 : index
    %528 = vector.load %arg7[%c1_276, %c0_277, %c0_278] : memref<2x65x32xf32, #tpu.memory_space<vmem>>, vector<1x64x32xf32>
    %529 = vector.shape_cast %528 : vector<1x64x32xf32> to vector<64x32xf32>
    %cst_279 = arith.constant dense<0.000000e+00> : vector<16x32xf32>
    %530 = tpu.matmul %527, %529, %cst_279 {dimension_numbers = #tpu.dot_dimension_numbers<[1], [0], [0], [1], [0, 0, 1, 1], [], []>} : vector<16x64xf32>, vector<64x32xf32>, vector<16x32xf32> -> vector<16x32xf32>
    %c1_280 = arith.constant 1 : index
    %c64_281 = arith.constant 64 : index
    %c0_282 = arith.constant 0 : index
    %531 = vector.load %arg7[%c1_280, %c64_281, %c0_282] : memref<2x65x32xf32, #tpu.memory_space<vmem>>, vector<1x1x32xf32>
    %532 = vector.shape_cast %531 : vector<1x1x32xf32> to vector<1x32xf32>
    %533 = vector.broadcast %532 : vector<1x32xf32> to vector<16x32xf32>
    %534 = arith.addf %530, %533 : vector<16x32xf32>
    %535 = arith.addf %534, %480 : vector<16x32xf32>
    %c40 = arith.constant 40 : index
    %c0_283 = arith.constant 0 : index
    %536 = vector.load %arg3[%c40, %c0_283] : memref<42x32xf32, #tpu.memory_space<vmem>>, vector<1x32xf32>
    %c41 = arith.constant 41 : index
    %c0_284 = arith.constant 0 : index
    %537 = vector.load %arg3[%c41, %c0_284] : memref<42x32xf32, #tpu.memory_space<vmem>>, vector<1x32xf32>
    %cst_285 = arith.constant dense<0.000000e+00> : vector<16xf32>
    %538 = vector.multi_reduction <add>, %535, %cst_285 [1] : vector<16x32xf32> to vector<16xf32>
    %539 = vector.shape_cast %538 : vector<16xf32> to vector<16x1xf32>
    %cst_286 = arith.constant 3.200000e+01 : f32
    %540 = vector.broadcast %cst_286 : f32 to vector<16x1xf32>
    %541 = arith.divf %539, %540 : vector<16x1xf32>
    %542 = vector.broadcast %541 : vector<16x1xf32> to vector<16x32xf32>
    %543 = arith.subf %535, %542 : vector<16x32xf32>
    %544 = arith.mulf %543, %543 : vector<16x32xf32>
    %cst_287 = arith.constant dense<0.000000e+00> : vector<16xf32>
    %545 = vector.multi_reduction <add>, %544, %cst_287 [1] : vector<16x32xf32> to vector<16xf32>
    %546 = vector.shape_cast %545 : vector<16xf32> to vector<16x1xf32>
    %cst_288 = arith.constant 3.200000e+01 : f32
    %547 = vector.broadcast %cst_288 : f32 to vector<16x1xf32>
    %548 = arith.divf %546, %547 : vector<16x1xf32>
    %549 = vector.broadcast %541 : vector<16x1xf32> to vector<16x32xf32>
    %550 = arith.subf %535, %549 : vector<16x32xf32>
    %cst_289 = arith.constant 9.99999996E-13 : f32
    %551 = vector.broadcast %cst_289 : f32 to vector<16x1xf32>
    %552 = arith.addf %548, %551 : vector<16x1xf32>
    %553 = math.rsqrt %552 : vector<16x1xf32>
    %554 = vector.broadcast %553 : vector<16x1xf32> to vector<16x32xf32>
    %555 = arith.mulf %550, %554 : vector<16x32xf32>
    %556 = vector.broadcast %536 : vector<1x32xf32> to vector<16x32xf32>
    %557 = arith.mulf %555, %556 : vector<16x32xf32>
    %558 = vector.broadcast %537 : vector<1x32xf32> to vector<16x32xf32>
    %559 = arith.addf %557, %558 : vector<16x32xf32>
    %560 = vector.extract_strided_slice %559 {offsets = [0, 0], sizes = [1, 32], strides = [1, 1]} : vector<16x32xf32> to vector<1x32xf32>
    %561 = vector.extract_strided_slice %559 {offsets = [8, 0], sizes = [1, 32], strides = [1, 1]} : vector<16x32xf32> to vector<1x32xf32>
    %562 = tpu.concatenate %560, %561 in 0 : vector<1x32xf32>, vector<1x32xf32> -> vector<2x32xf32>
    %c0_290 = arith.constant 0 : index
    %c0_291 = arith.constant 0 : index
    %563 = vector.load %arg8[%c0_290, %c0_291] : memref<33x32xf32, #tpu.memory_space<vmem>>, vector<32x32xf32>
    %cst_292 = arith.constant dense<0.000000e+00> : vector<2x32xf32>
    %564 = tpu.matmul %562, %563, %cst_292 {dimension_numbers = #tpu.dot_dimension_numbers<[1], [0], [0], [1], [0, 0, 1, 1], [], []>} : vector<2x32xf32>, vector<32x32xf32>, vector<2x32xf32> -> vector<2x32xf32>
    %c32_293 = arith.constant 32 : index
    %c0_294 = arith.constant 0 : index
    %565 = vector.load %arg8[%c32_293, %c0_294] : memref<33x32xf32, #tpu.memory_space<vmem>>, vector<1x32xf32>
    %566 = vector.broadcast %565 : vector<1x32xf32> to vector<2x32xf32>
    %567 = arith.addf %564, %566 : vector<2x32xf32>
    %568 = math.tanh %567 : vector<2x32xf32>
    %c0_295 = arith.constant 0 : index
    %c0_296 = arith.constant 0 : index
    %569 = vector.load %arg9[%c0_295, %c0_296] : memref<33x128xf32, #tpu.memory_space<vmem>>, vector<32x128xf32>
    %cst_297 = arith.constant dense<0.000000e+00> : vector<2x128xf32>
    %570 = tpu.matmul %568, %569, %cst_297 {dimension_numbers = #tpu.dot_dimension_numbers<[1], [0], [0], [1], [0, 0, 1, 1], [], []>} : vector<2x32xf32>, vector<32x128xf32>, vector<2x128xf32> -> vector<2x128xf32>
    %c32_298 = arith.constant 32 : index
    %c0_299 = arith.constant 0 : index
    %571 = vector.load %arg9[%c32_298, %c0_299] : memref<33x128xf32, #tpu.memory_space<vmem>>, vector<1x128xf32>
    %572 = vector.broadcast %571 : vector<1x128xf32> to vector<2x128xf32>
    %573 = arith.addf %570, %572 : vector<2x128xf32>
    %c0_300 = arith.constant 0 : index
    %c0_301 = arith.constant 0 : index
    %574 = vector.load %arg10[%c0_300, %c0_301] : memref<2x128xf32, #tpu.memory_space<vmem>>, vector<2x128xf32>
    tpu.vector_store %arg10[%c0_300, %c0_301], %573 {strides = array<i32>} : memref<2x128xf32, #tpu.memory_space<vmem>>, vector<2x128xf32>,
    return
  }
}

</mosaic_0001>

<llo_original>
// kernel: bert_for_news_classification.1
$region0: #{bert_for_news_classification.1}
  #allocation0 [shape = 'u32[]', space=smem, size = 0x4, offset = 0x4, fixed_abs, tag = 'smem constant byte address 0x4 - core index']
  #allocation1 [shape = 'u32[144,128]{1,0:T(1,128)}', space=vmem, size = 0x12000, scoped, tag = 'internal scratch']
  %s0 = inlined_call_operand.vmem [shape: s32[2,16], index: 0, kind: input, shape index: {}]
  %s1 = inlined_call_operand.vmem [shape: f32[2,8], index: 1, kind: input, shape index: {}]
  %s2 = inlined_call_operand.vmem [shape: f32[102,1,32], index: 2, kind: input, shape index: {}]
  %s3 = inlined_call_operand.vmem [shape: f32[42,32], index: 3, kind: input, shape index: {}]
  %s4 = inlined_call_operand.vmem [shape: f32[2,33,96], index: 4, kind: input, shape index: {}]
  %s5 = inlined_call_operand.vmem [shape: f32[2,33,32], index: 5, kind: input, shape index: {}]
  %s6 = inlined_call_operand.vmem [shape: f32[2,33,64], index: 6, kind: input, shape index: {}]
  %s7 = inlined_call_operand.vmem [shape: f32[2,65,32], index: 7, kind: input, shape index: {}]
  %s8 = inlined_call_operand.vmem [shape: f32[33,32], index: 8, kind: input, shape index: {}]
  %s9 = inlined_call_operand.vmem [shape: f32[33,128], index: 9, kind: input, shape index: {}]
  %s10 = inlined_call_operand.hbm [shape: f32[2,128], index: 10, kind: output, shape index: {}]
  %s11 = sld [smem:[#allocation0]]
  $region54: #{bert_for_news_classification.1} parent=0
    _
  %s13 = ssub.s32 1, %s11
  %s14 = scalar_select 0, %s13, %s11
  $region1: #{bert_for_news_classification.1} parent=0
    #allocation2 [shape = 'u8[1024]{0}', space=smem, size = 0x400, scoped, tag = 'input window, operand 0, single buffered']
    #allocation3 [shape = 's32[1]{0}', space=sflag, size = 0x4, scoped, tag = 'scoped memory for bert_for_news_classification.1']
    #allocation4 [shape = 's32[1]{0}', space=sflag, size = 0x4, scoped, tag = 'scoped memory for bert_for_news_classification.1']
    #allocation5 [shape = 'u8[1024]{0}', space=vmem, size = 0x400, scoped, tag = 'output window, operand 0, single buffered']
    %15 = vsyncpa [#allocation4], 0
    %16 = vsyncpa [#allocation3], 0
    // Predicated region
    $region2: #{bert_for_news_classification.1} parent=1 // pred_check
      _
    $region3: #{bert_for_news_classification.1} parent=1 // pred_check_branch
      %18 = sbr.rel (0) target = $region5
    $region4: #{bert_for_news_classification.1} parent=1 // pred_region
      %s20 = ssub.s32 32, 32
      %21 = vsyncadd [#allocation4], %s20
      %s23 = sshll.u32 %s0, 4
      %s24 = int_to_ptr.vmem [resolvable:$true] %s23
      %26 = dma.vmem_to_smem %s24, 32, [#allocation2], [#allocation4]
    $region5: #{bert_for_news_classification.1} parent=1 // pred_fallthru
      _
    // Predicated region
    $region6: #{bert_for_news_classification.1} parent=1 // pred_check
      _
    $region7: #{bert_for_news_classification.1} parent=1 // pred_check_branch
      %28 = sbr.rel (0) target = $region9
    $region8: #{bert_for_news_classification.1} parent=1 // pred_region
      _
    $region9: #{bert_for_news_classification.1} parent=1 // pred_fallthru
      _
    // Predicated region
    $region10: #{bert_for_news_classification.1} parent=1 // pred_check
      _
    $region11: #{bert_for_news_classification.1} parent=1 // pred_check_branch
      %30 = sbr.rel (0) target = $region13
    $region12: #{bert_for_news_classification.1} parent=1 // pred_region
      _
    $region13: #{bert_for_news_classification.1} parent=1 // pred_fallthru
      _
    // Predicated region
    $region14: #{bert_for_news_classification.1} parent=1 // pred_check
      _
    $region15: #{bert_for_news_classification.1} parent=1 // pred_check_branch
      %32 = sbr.rel (0) target = $region17
    $region16: #{bert_for_news_classification.1} parent=1 // pred_region
      _
    $region17: #{bert_for_news_classification.1} parent=1 // pred_fallthru
      _
    // Predicated region
    $region18: #{bert_for_news_classification.1} parent=1 // pred_check
      _
    $region19: #{bert_for_news_classification.1} parent=1 // pred_check_branch
      %34 = sbr.rel (0) target = $region21
    $region20: #{bert_for_news_classification.1} parent=1 // pred_region
      _
    $region21: #{bert_for_news_classification.1} parent=1 // pred_fallthru
      _
    // Predicated region
    $region22: #{bert_for_news_classification.1} parent=1 // pred_check
      _
    $region23: #{bert_for_news_classification.1} parent=1 // pred_check_branch
      %36 = sbr.rel (0) target = $region25
    $region24: #{bert_for_news_classification.1} parent=1 // pred_region
      _
    $region25: #{bert_for_news_classification.1} parent=1 // pred_fallthru
      _
    // Predicated region
    $region26: #{bert_for_news_classification.1} parent=1 // pred_check
      _
    $region27: #{bert_for_news_classification.1} parent=1 // pred_check_branch
      %38 = sbr.rel (0) target = $region29
    $region28: #{bert_for_news_classification.1} parent=1 // pred_region
      _
    $region29: #{bert_for_news_classification.1} parent=1 // pred_fallthru
      _
    // Predicated region
    $region30: #{bert_for_news_classification.1} parent=1 // pred_check
      _
    $region31: #{bert_for_news_classification.1} parent=1 // pred_check_branch
      %40 = sbr.rel (0) target = $region33
    $region32: #{bert_for_news_classification.1} parent=1 // pred_region
      _
    $region33: #{bert_for_news_classification.1} parent=1 // pred_fallthru
      _
    // Predicated region
    $region34: #{bert_for_news_classification.1} parent=1 // pred_check
      _
    $region35: #{bert_for_news_classification.1} parent=1 // pred_check_branch
      %42 = sbr.rel (0) target = $region37
    $region36: #{bert_for_news_classification.1} parent=1 // pred_region
      _
    $region37: #{bert_for_news_classification.1} parent=1 // pred_fallthru
      _
    // Predicated region
    $region38: #{bert_for_news_classification.1} parent=1 // pred_check
      _
    $region39: #{bert_for_news_classification.1} parent=1 // pred_check_branch
      %44 = sbr.rel (0) target = $region41
    $region40: #{bert_for_news_classification.1} parent=1 // pred_region
      _
    $region41: #{bert_for_news_classification.1} parent=1 // pred_fallthru
      _
    // Predicated region
    $region42: #{bert_for_news_classification.1} parent=1 // pred_check
      _
    $region43: #{bert_for_news_classification.1} parent=1 // pred_check_branch
      %46 = sbr.rel (0) target = $region45
    $region44: #{bert_for_news_classification.1} parent=1 // pred_region
      %47 = dma.done [#allocation4], 32
    $region45: #{bert_for_news_classification.1} parent=1 // pred_fallthru
      _
    %48 = sfence
    %s49 = sld [smem:[#allocation2]]
    %s50 = sld [smem:[#allocation2 + $0x80]]
    %s51 = scalar_lea.vmem %s2, %s49
    %v52 = vld [vmem:[%s51] sm:$0x1]
    %s53 = sadd.s32 %s50, 100
    %s54 = scalar_lea.vmem %s2, %s53
    %v55 = vld [vmem:[%s54] sm:$0x1]
    %v56 = vadd.f32 %v52, %v55
    %v57 = vld [vmem:[%s3] sm:$0x1]
    %v58 = vadd.f32 %v56, %v57
    %s59 = sld [smem:[#allocation2 + $0x1]]
    %s60 = sld [smem:[#allocation2 + $0x81]]
    %s61 = scalar_lea.vmem %s2, %s59
    %v62 = vld [vmem:[%s61] sm:$0x1]
    %s63 = sadd.s32 %s60, 100
    %s64 = scalar_lea.vmem %s2, %s63
    %v65 = vld [vmem:[%s64] sm:$0x1]
    %v66 = vadd.f32 %v62, %v65
    %v67 = vld [vmem:[%s3 + $0x1] sm:$0x1]
    %v68 = vadd.f32 %v66, %v67
    %s69 = sld [smem:[#allocation2 + $0x2]]
    %s70 = sld [smem:[#allocation2 + $0x82]]
    %s71 = scalar_lea.vmem %s2, %s69
    %v72 = vld [vmem:[%s71] sm:$0x1]
    %s73 = sadd.s32 %s70, 100
    %s74 = scalar_lea.vmem %s2, %s73
    %v75 = vld [vmem:[%s74] sm:$0x1]
    %v76 = vadd.f32 %v72, %v75
    %v77 = vld [vmem:[%s3 + $0x2] sm:$0x1]
    %v78 = vadd.f32 %v76, %v77
    %s79 = sld [smem:[#allocation2 + $0x3]]
    %s80 = sld [smem:[#allocation2 + $0x83]]
    %s81 = scalar_lea.vmem %s2, %s79
    %v82 = vld [vmem:[%s81] sm:$0x1]
    %s83 = sadd.s32 %s80, 100
    %s84 = scalar_lea.vmem %s2, %s83
    %v85 = vld [vmem:[%s84] sm:$0x1]
    %v86 = vadd.f32 %v82, %v85
    %v87 = vld [vmem:[%s3 + $0x3] sm:$0x1]
    %v88 = vadd.f32 %v86, %v87
    %s89 = sld [smem:[#allocation2 + $0x4]]
    %s90 = sld [smem:[#allocation2 + $0x84]]
    %s91 = scalar_lea.vmem %s2, %s89
    %v92 = vld [vmem:[%s91] sm:$0x1]
    %s93 = sadd.s32 %s90, 100
    %s94 = scalar_lea.vmem %s2, %s93
    %v95 = vld [vmem:[%s94] sm:$0x1]
    %v96 = vadd.f32 %v92, %v95
    %v97 = vld [vmem:[%s3 + $0x4] sm:$0x1]
    %v98 = vadd.f32 %v96, %v97
    %s99 = sld [smem:[#allocation2 + $0x5]]
    %s100 = sld [smem:[#allocation2 + $0x85]]
    %s101 = scalar_lea.vmem %s2, %s99
    %v102 = vld [vmem:[%s101] sm:$0x1]
    %s103 = sadd.s32 %s100, 100
    %s104 = scalar_lea.vmem %s2, %s103
    %v105 = vld [vmem:[%s104] sm:$0x1]
    %v106 = vadd.f32 %v102, %v105
    %v107 = vld [vmem:[%s3 + $0x5] sm:$0x1]
    %v108 = vadd.f32 %v106, %v107
    %s109 = sld [smem:[#allocation2 + $0x6]]
    %s110 = sld [smem:[#allocation2 + $0x86]]
    %s111 = scalar_lea.vmem %s2, %s109
    %v112 = vld [vmem:[%s111] sm:$0x1]
    %s113 = sadd.s32 %s110, 100
    %s114 = scalar_lea.vmem %s2, %s113
    %v115 = vld [vmem:[%s114] sm:$0x1]
    %v116 = vadd.f32 %v112, %v115
    %v117 = vld [vmem:[%s3 + $0x6] sm:$0x1]
    %v118 = vadd.f32 %v116, %v117
    %s119 = sld [smem:[#allocation2 + $0x7]]
    %s120 = sld [smem:[#allocation2 + $0x87]]
    %s121 = scalar_lea.vmem %s2, %s119
    %v122 = vld [vmem:[%s121] sm:$0x1]
    %s123 = sadd.s32 %s120, 100
    %s124 = scalar_lea.vmem %s2, %s123
    %v125 = vld [vmem:[%s124] sm:$0x1]
    %v126 = vadd.f32 %v122, %v125
    %v127 = vld [vmem:[%s3 + $0x7] sm:$0x1]
    %v128 = vadd.f32 %v126, %v127
    %s129 = sld [smem:[#allocation2 + $0x8]]
    %s130 = sld [smem:[#allocation2 + $0x88]]
    %s131 = scalar_lea.vmem %s2, %s129
    %v132 = vld [vmem:[%s131] sm:$0x1]
    %s133 = sadd.s32 %s130, 100
    %s134 = scalar_lea.vmem %s2, %s133
    %v135 = vld [vmem:[%s134] sm:$0x1]
    %v136 = vadd.f32 %v132, %v135
    %v137 = vadd.f32 %v136, %v57
    %s138 = sld [smem:[#allocation2 + $0x9]]
    %s139 = sld [smem:[#allocation2 + $0x89]]
    %s140 = scalar_lea.vmem %s2, %s138
    %v141 = vld [vmem:[%s140] sm:$0x1]
    %s142 = sadd.s32 %s139, 100
    %s143 = scalar_lea.vmem %s2, %s142
    %v144 = vld [vmem:[%s143] sm:$0x1]
    %v145 = vadd.f32 %v141, %v144
    %v146 = vadd.f32 %v145, %v67
    %s147 = sld [smem:[#allocation2 + $0xa]]
    %s148 = sld [smem:[#allocation2 + $0x8a]]
    %s149 = scalar_lea.vmem %s2, %s147
    %v150 = vld [vmem:[%s149] sm:$0x1]
    %s151 = sadd.s32 %s148, 100
    %s152 = scalar_lea.vmem %s2, %s151
    %v153 = vld [vmem:[%s152] sm:$0x1]
    %v154 = vadd.f32 %v150, %v153
    %v155 = vadd.f32 %v154, %v77
    %s156 = sld [smem:[#allocation2 + $0xb]]
    %s157 = sld [smem:[#allocation2 + $0x8b]]
    %s158 = scalar_lea.vmem %s2, %s156
    %v159 = vld [vmem:[%s158] sm:$0x1]
    %s160 = sadd.s32 %s157, 100
    %s161 = scalar_lea.vmem %s2, %s160
    %v162 = vld [vmem:[%s161] sm:$0x1]
    %v163 = vadd.f32 %v159, %v162
    %v164 = vadd.f32 %v163, %v87
    %s165 = sld [smem:[#allocation2 + $0xc]]
    %s166 = sld [smem:[#allocation2 + $0x8c]]
    %s167 = scalar_lea.vmem %s2, %s165
    %v168 = vld [vmem:[%s167] sm:$0x1]
    %s169 = sadd.s32 %s166, 100
    %s170 = scalar_lea.vmem %s2, %s169
    %v171 = vld [vmem:[%s170] sm:$0x1]
    %v172 = vadd.f32 %v168, %v171
    %v173 = vadd.f32 %v172, %v97
    %s174 = sld [smem:[#allocation2 + $0xd]]
    %s175 = sld [smem:[#allocation2 + $0x8d]]
    %s176 = scalar_lea.vmem %s2, %s174
    %v177 = vld [vmem:[%s176] sm:$0x1]
    %s178 = sadd.s32 %s175, 100
    %s179 = scalar_lea.vmem %s2, %s178
    %v180 = vld [vmem:[%s179] sm:$0x1]
    %v181 = vadd.f32 %v177, %v180
    %v182 = vadd.f32 %v181, %v107
    %s183 = sld [smem:[#allocation2 + $0xe]]
    %s184 = sld [smem:[#allocation2 + $0x8e]]
    %s185 = scalar_lea.vmem %s2, %s183
    %v186 = vld [vmem:[%s185] sm:$0x1]
    %s187 = sadd.s32 %s184, 100
    %s188 = scalar_lea.vmem %s2, %s187
    %v189 = vld [vmem:[%s188] sm:$0x1]
    %v190 = vadd.f32 %v186, %v189
    %v191 = vadd.f32 %v190, %v117
    %s192 = sld [smem:[#allocation2 + $0xf]]
    %s193 = sld [smem:[#allocation2 + $0x8f]]
    %s194 = scalar_lea.vmem %s2, %s192
    %v195 = vld [vmem:[%s194] sm:$0x1]
    %s196 = sadd.s32 %s193, 100
    %s197 = scalar_lea.vmem %s2, %s196
    %v198 = vld [vmem:[%s197] sm:$0x1]
    %v199 = vadd.f32 %v195, %v198
    %v200 = vadd.f32 %v199, %v127
    %v202 = vlaneseq
    %v203 = vshrl.u32 %v202, 7
    %v204 = vsub.s32 0, %v203
    %v205 = vrot.slane %v68, %v204
    %v208 = vlaneseq
    %v209 = vshrl.u32 %v208, 7
    %v210 = vsub.s32 0, %v209
    %v211 = vrot.slane %v78, %v210
    %v214 = vlaneseq
    %v215 = vshrl.u32 %v214, 7
    %v216 = vsub.s32 0, %v215
    %v217 = vrot.slane %v88, %v216
    %v220 = vlaneseq
    %v221 = vshrl.u32 %v220, 7
    %v222 = vsub.s32 0, %v221
    %v223 = vrot.slane %v98, %v222
    %v226 = vlaneseq
    %v227 = vshrl.u32 %v226, 7
    %v228 = vsub.s32 0, %v227
    %v229 = vrot.slane %v108, %v228
    %v232 = vlaneseq
    %v233 = vshrl.u32 %v232, 7
    %v234 = vsub.s32 0, %v233
    %v235 = vrot.slane %v118, %v234
    %v238 = vlaneseq
    %v239 = vshrl.u32 %v238, 7
    %v240 = vsub.s32 0, %v239
    %v241 = vrot.slane %v128, %v240
    %v244 = vlaneseq
    %v245 = vshrl.u32 %v244, 7
    %v246 = vsub.s32 0, %v245
    %v247 = vrot.slane %v146, %v246
    %v250 = vlaneseq
    %v251 = vshrl.u32 %v250, 7
    %v252 = vsub.s32 0, %v251
    %v253 = vrot.slane %v155, %v252
    %v256 = vlaneseq
    %v257 = vshrl.u32 %v256, 7
    %v258 = vsub.s32 0, %v257
    %v259 = vrot.slane %v164, %v258
    %v262 = vlaneseq
    %v263 = vshrl.u32 %v262, 7
    %v264 = vsub.s32 0, %v263
    %v265 = vrot.slane %v173, %v264
    %v268 = vlaneseq
    %v269 = vshrl.u32 %v268, 7
    %v270 = vsub.s32 0, %v269
    %v271 = vrot.slane %v182, %v270
    %v274 = vlaneseq
    %v275 = vshrl.u32 %v274, 7
    %v276 = vsub.s32 0, %v275
    %v277 = vrot.slane %v191, %v276
    %v280 = vlaneseq
    %v281 = vshrl.u32 %v280, 7
    %v282 = vsub.s32 0, %v281
    %v283 = vrot.slane %v200, %v282
    %vm285 = vcmask 1040384
    %v286 = vsel %vm285, %v58, %v205
    %vm287 = vcmask 1041408
    %v288 = vsel %vm287, %v286, %v211
    %vm289 = vcmask 1042432
    %v290 = vsel %vm289, %v288, %v217
    %vm291 = vcmask 1043456
    %v292 = vsel %vm291, %v290, %v223
    %vm293 = vcmask 1044480
    %v294 = vsel %vm293, %v292, %v229
    %vm295 = vcmask 1045504
    %v296 = vsel %vm295, %v294, %v235
    %vm297 = vcmask 1046528
    %v298 = vsel %vm297, %v296, %v241
    %v299 = vsel %vm285, %v137, %v247
    %v300 = vsel %vm287, %v299, %v253
    %v301 = vsel %vm289, %v300, %v259
    %v302 = vsel %vm291, %v301, %v265
    %v303 = vsel %vm293, %v302, %v271
    %v304 = vsel %vm295, %v303, %v277
    %v305 = vsel %vm297, %v304, %v283
    %v306 = vld [vmem:[%s3 + $0x20] sm:$0x1]
    %v307 = vld [vmem:[%s3 + $0x21] sm:$0x1]
    %vm308 = vcmask 261120
    %v309 = vsel %vm308, %v298, 0.0
    %310 = vadd.xlane.f32.xlu0 %v309
    %v311 = vpop.xlane.xlu0 %310
    %v312 = vsel %vm308, %v305, 0.0
    %313 = vadd.xlane.f32.xlu0 %v312
    %v314 = vpop.xlane.xlu0 %313
    %v315 = vrcp.pop 32.0
    %v316 = vmul.f32 %v311, %v315
    %v317 = vmul.f32 %v314, %v315
    %v318 = vsub.f32 %v298, %v316
    %v319 = vsub.f32 %v305, %v317
    %v320 = vmul.f32 %v318, %v318
    %v321 = vmul.f32 %v319, %v319
    %v322 = vsel %vm308, %v320, 0.0
    %323 = vadd.xlane.f32.xlu0 %v322
    %v324 = vpop.xlane.xlu0 %323
    %v325 = vsel %vm308, %v321, 0.0
    %326 = vadd.xlane.f32.xlu0 %v325
    %v327 = vpop.xlane.xlu0 %326
    %v328 = vmul.f32 %v324, %v315
    %v329 = vmul.f32 %v327, %v315
    %v330 = vadd.f32 %v328, 1e-12
    %v331 = vadd.f32 %v329, 1e-12
    %v332 = vrsqrt.pop %v330
    %v333 = vrsqrt.pop %v331
    %v334 = vmul.f32 %v318, %v332
    %v335 = vmul.f32 %v319, %v333
    %v336 = vlaneseq
    %v337 = vshrl.u32 %v336, 7
    %v338 = vsub.s32 0, %v337
    %v339 = vrot.slane %v306, %v338
    %v340 = vmul.f32 %v334, %v339
    %v341 = vmul.f32 %v335, %v339
    %v342 = vlaneseq
    %v343 = vshrl.u32 %v342, 7
    %v344 = vsub.s32 0, %v343
    %v345 = vrot.slane %v307, %v344
    %v346 = vadd.f32 %v340, %v345
    %v347 = vadd.f32 %v341, %v345
    %v348 = vld [vmem:[%s1] sm:$0x3]
    %v349 = vsub.f32 1.0, %v348
    %v350 = vmul.f32 %v349, -10000.0
    %v353 = vunpack.c.l.s4 1966171168
    %v354 = vunpack.c.0.s8 %v353
    %v355 = vlaneseq
    %v356 = vshrl.u32 %v355, 7
    %v357 = vsub.s32 %v354, %v356
    %v358 = vrot.slane %v350, %v357
    %v359 = vcombine.high %v358, %v358
    %v361 = vunpack.c.l.s4 1966171168
    %v362 = vunpack.c.0.s8 %v361
    %v363 = vlaneseq
    %v364 = vshrl.u32 %v363, 7
    %v365 = vsub.s32 %v362, %v364
    %v366 = vrot.slane %v358, %v365
    %v368 = vunpack.c.l.s4 1966171168
    %v369 = vunpack.c.0.s8 %v368
    %v370 = vlaneseq
    %v371 = vshrl.u32 %v370, 7
    %v372 = vsub.s32 %v369, %v371
    %v373 = vrot.slane %v359, %v372
    %v374 = vld [vmem:[%s4] sm:$0xff]
    %v375 = vld [vmem:[%s4 + $0x8] sm:$0xff]
    %v376 = vld [vmem:[%s4 + $0x10] sm:$0xff]
    %v377 = vld [vmem:[%s4 + $0x18] sm:$0xff]
    %v378 = vld [vmem:[%s4 + $0x20] sm:$0x1]
    %v379 = vlaneseq
    %v380 = vshrl.u32 %v379, 7
    %v381 = vsub.s32 0, %v380
    %v382 = vrot.slane %v378, %v381
    %v384 = vsel %vm308, %v346, 0
    %v387 = vsel %vm308, %v347, 0
    %389 = vmatprep.subr.mxu0 0.0
    %390 = vmatpush1.msra.mxu0 0.0
    %391 = vmatprep.subr.mxu0 0.0
    %392 = vmatpush1.msra.mxu0 0.0
    %393 = vmatprep.subr.mxu0 0.0
    %394 = vmatpush1.msra.mxu0 0.0
    %395 = vmatprep.subr.mxu0 0.0
    %396 = vmatpush1.msra.mxu0 0.0
    %397 = vmatprep.subr.mxu0 0.0
    %398 = vmatpush1.msra.mxu0 0.0
    %399 = vmatprep.subr.mxu0 0.0
    %400 = vmatpush1.msra.mxu0 0.0
    %401 = vmatprep.subr.mxu0 0.0
    %402 = vmatpush1.msra.mxu0 0.0
    %403 = vmatprep.subr.mxu0 0.0
    %404 = vmatpush1.msra.mxu0 0.0
    %405 = vmatprep.subr.mxu0 0.0
    %406 = vmatpush1.msra.mxu0 0.0
    %407 = vmatprep.subr.mxu0 0.0
    %408 = vmatpush1.msra.mxu0 0.0
    %409 = vmatprep.subr.mxu0 0.0
    %410 = vmatpush1.msra.mxu0 0.0
    %411 = vmatprep.subr.mxu0 0.0
    %412 = vmatpush1.msra.mxu0 0.0
    %413 = vmatprep.subr.mxu0 0.0
    %414 = vmatpush1.msra.mxu0 %v377
    %415 = vmatprep.subr.mxu0 0.0
    %416 = vmatpush1.msra.mxu0 %v376
    %417 = vmatprep.subr.mxu0 0.0
    %418 = vmatpush1.msra.mxu0 %v375
    %419 = vmatprep.subr.mxu0 0.0
    %420 = vmatpush1.msra.mxu0 %v374
    %421 = vmatprep.subr.mxu0 0.0
    %422 = vmatpush2.msra.mxu0 0.0
    %423 = vmatprep.subr.mxu0 0.0
    %424 = vmatpush2.msra.mxu0 0.0
    %425 = vmatprep.subr.mxu0 0.0
    %426 = vmatpush2.msra.mxu0 0.0
    %427 = vmatprep.subr.mxu0 0.0
    %428 = vmatpush2.msra.mxu0 0.0
    %429 = vmatprep.subr.mxu0 0.0
    %430 = vmatpush2.msra.mxu0 0.0
    %431 = vmatprep.subr.mxu0 0.0
    %432 = vmatpush2.msra.mxu0 0.0
    %433 = vmatprep.subr.mxu0 0.0
    %434 = vmatpush2.msra.mxu0 0.0
    %435 = vmatprep.subr.mxu0 0.0
    %436 = vmatpush2.msra.mxu0 0.0
    %437 = vmatprep.subr.mxu0 0.0
    %438 = vmatpush2.msra.mxu0 0.0
    %439 = vmatprep.subr.mxu0 0.0
    %440 = vmatpush2.msra.mxu0 0.0
    %441 = vmatprep.subr.mxu0 0.0
    %442 = vmatpush2.msra.mxu0 0.0
    %443 = vmatprep.subr.mxu0 0.0
    %444 = vmatpush2.msra.mxu0 0.0
    %445 = vmatprep.subr.mxu0 0.0
    %446 = vmatpush2.msra.mxu0 0.0
    %447 = vmatprep.subr.mxu0 0.0
    %448 = vmatpush2.msra.mxu0 0.0
    %449 = vmatprep.subr.mxu0 0.0
    %450 = vmatpush2.msra.mxu0 0.0
    %451 = vmatprep.subr.mxu0 0.0
    %452 = vmatpush2.msra.mxu0 0.0
    %453 = vmatprep.mubr.f32.mxu0 0.0
    %454 = vmatmul.mubr.f32.gmra.mxu0 %v384
    %v455 = vpop.f32.mrf.mxu0
    %v456 = vadd.f32 %v382, %v455
    %v457 = vpop.f32.mrf.mxu0
    %458 = vmatprep.mubr.f32.mxu0 0.0
    %459 = vmatmul.mubr.f32.gmra.mxu0 %v387
    %v460 = vpop.f32.mrf.mxu0
    %v461 = vadd.f32 %v382, %v460
    %v462 = vpop.f32.mrf.mxu0
    %463 = vdwg.mxu0
    %466 = vrot.lane.b32.xlu0 %v456, 120
    %v467 = vpop.permute.xlu0 %466
    %468 = vrot.lane.b32.xlu0 %v461, 120
    %v469 = vpop.permute.xlu0 %468
    %470 = vrot.lane.b32.xlu0 %v456, 112
    %v471 = vpop.permute.xlu0 %470
    %472 = vrot.lane.b32.xlu0 %v461, 112
    %v473 = vpop.permute.xlu0 %472
    %474 = vrot.lane.b32.xlu0 %v456, 104
    %v475 = vpop.permute.xlu0 %474
    %476 = vrot.lane.b32.xlu0 %v461, 104
    %v477 = vpop.permute.xlu0 %476
    %v478 = vlaneseq
    %v479 = vshrl.u32 %v478, 7
    %v480 = vsub.s32 0, %v479
    %v481 = vrot.slane %v366, %v480
    %v482 = vlaneseq
    %v483 = vshrl.u32 %v482, 7
    %v484 = vsub.s32 0, %v483
    %v485 = vrot.slane %v373, %v484
    %488 = vrot.lane.b32.xlu0 %v456, 96
    %v489 = vpop.permute.xlu0 %488
    %vm490 = vcmask 64512
    %v491 = vsel %vm490, %v456, 0
    %v493 = vsel %vm490, %v489, 0
    %495 = vmatprep.subr.mxu0 0.0
    %496 = vmatpush1.xpose.msra.mxu0 0.0
    %497 = vmatprep.subr.mxu0 0.0
    %498 = vmatpush1.xpose.msra.mxu0 0.0
    %499 = vmatprep.subr.mxu0 0.0
    %500 = vmatpush1.xpose.msra.mxu0 0.0
    %501 = vmatprep.subr.mxu0 0.0
    %502 = vmatpush1.xpose.msra.mxu0 0.0
    %503 = vmatprep.subr.mxu0 0.0
    %504 = vmatpush1.xpose.msra.mxu0 0.0
    %505 = vmatprep.subr.mxu0 0.0
    %506 = vmatpush1.xpose.msra.mxu0 0.0
    %507 = vmatprep.subr.mxu0 0.0
    %508 = vmatpush1.xpose.msra.mxu0 0.0
    %509 = vmatprep.subr.mxu0 0.0
    %510 = vmatpush1.xpose.msra.mxu0 0.0
    %511 = vmatprep.subr.mxu0 0.0
    %512 = vmatpush1.xpose.msra.mxu0 0.0
    %513 = vmatprep.subr.mxu0 0.0
    %514 = vmatpush1.xpose.msra.mxu0 0.0
    %515 = vmatprep.subr.mxu0 0.0
    %516 = vmatpush1.xpose.msra.mxu0 0.0
    %517 = vmatprep.subr.mxu0 0.0
    %518 = vmatpush1.xpose.msra.mxu0 0.0
    %519 = vmatprep.subr.mxu0 0.0
    %520 = vmatpush1.xpose.msra.mxu0 0.0
    %521 = vmatprep.subr.mxu0 0.0
    %522 = vmatpush1.xpose.msra.mxu0 0.0
    %523 = vmatprep.subr.mxu0 0.0
    %524 = vmatpush1.xpose.msra.mxu0 0.0
    %525 = vmatprep.subr.mxu0 0.0
    %526 = vmatpush1.xpose.msra.mxu0 %v493
    %527 = vmatprep.subr.mxu0 0.0
    %528 = vmatpush2.xpose.msra.mxu0 0.0
    %529 = vmatprep.subr.mxu0 0.0
    %530 = vmatpush2.xpose.msra.mxu0 0.0
    %531 = vmatprep.subr.mxu0 0.0
    %532 = vmatpush2.xpose.msra.mxu0 0.0
    %533 = vmatprep.subr.mxu0 0.0
    %534 = vmatpush2.xpose.msra.mxu0 0.0
    %535 = vmatprep.subr.mxu0 0.0
    %536 = vmatpush2.xpose.msra.mxu0 0.0
    %537 = vmatprep.subr.mxu0 0.0
    %538 = vmatpush2.xpose.msra.mxu0 0.0
    %539 = vmatprep.subr.mxu0 0.0
    %540 = vmatpush2.xpose.msra.mxu0 0.0
    %541 = vmatprep.subr.mxu0 0.0
    %542 = vmatpush2.xpose.msra.mxu0 0.0
    %543 = vmatprep.subr.mxu0 0.0
    %544 = vmatpush2.xpose.msra.mxu0 0.0
    %545 = vmatprep.subr.mxu0 0.0
    %546 = vmatpush2.xpose.msra.mxu0 0.0
    %547 = vmatprep.subr.mxu0 0.0
    %548 = vmatpush2.xpose.msra.mxu0 0.0
    %549 = vmatprep.subr.mxu0 0.0
    %550 = vmatpush2.xpose.msra.mxu0 0.0
    %551 = vmatprep.subr.mxu0 0.0
    %552 = vmatpush2.xpose.msra.mxu0 0.0
    %553 = vmatprep.subr.mxu0 0.0
    %554 = vmatpush2.xpose.msra.mxu0 0.0
    %555 = vmatprep.subr.mxu0 0.0
    %556 = vmatpush2.xpose.msra.mxu0 0.0
    %557 = vmatprep.subr.mxu0 0.0
    %558 = vmatpush2.xpose.msra.mxu0 0.0
    %559 = vmatprep.mubr.f32.mxu0 0.0
    %560 = vmatmul.mubr.f32.gmra.mxu0 %v491
    %v561 = vpop.f32.mrf.mxu0
    %v562 = vadd.f32 %v481, %v561
    %v563 = vpop.f32.mrf.mxu0
    %564 = vdwg.mxu0
    %565 = vrot.lane.b32.xlu0 %v461, 96
    %v566 = vpop.permute.xlu0 %565
    %v567 = vsel %vm490, %v461, 0
    %v569 = vsel %vm490, %v566, 0
    %571 = vmatprep.subr.mxu0 0.0
    %572 = vmatpush1.xpose.msra.mxu0 0.0
    %573 = vmatprep.subr.mxu0 0.0
    %574 = vmatpush1.xpose.msra.mxu0 0.0
    %575 = vmatprep.subr.mxu0 0.0
    %576 = vmatpush1.xpose.msra.mxu0 0.0
    %577 = vmatprep.subr.mxu0 0.0
    %578 = vmatpush1.xpose.msra.mxu0 0.0
    %579 = vmatprep.subr.mxu0 0.0
    %580 = vmatpush1.xpose.msra.mxu0 0.0
    %581 = vmatprep.subr.mxu0 0.0
    %582 = vmatpush1.xpose.msra.mxu0 0.0
    %583 = vmatprep.subr.mxu0 0.0
    %584 = vmatpush1.xpose.msra.mxu0 0.0
    %585 = vmatprep.subr.mxu0 0.0
    %586 = vmatpush1.xpose.msra.mxu0 0.0
    %587 = vmatprep.subr.mxu0 0.0
    %588 = vmatpush1.xpose.msra.mxu0 0.0
    %589 = vmatprep.subr.mxu0 0.0
    %590 = vmatpush1.xpose.msra.mxu0 0.0
    %591 = vmatprep.subr.mxu0 0.0
    %592 = vmatpush1.xpose.msra.mxu0 0.0
    %593 = vmatprep.subr.mxu0 0.0
    %594 = vmatpush1.xpose.msra.mxu0 0.0
    %595 = vmatprep.subr.mxu0 0.0
    %596 = vmatpush1.xpose.msra.mxu0 0.0
    %597 = vmatprep.subr.mxu0 0.0
    %598 = vmatpush1.xpose.msra.mxu0 0.0
    %599 = vmatprep.subr.mxu0 0.0
    %600 = vmatpush1.xpose.msra.mxu0 0.0
    %601 = vmatprep.subr.mxu0 0.0
    %602 = vmatpush1.xpose.msra.mxu0 %v569
    %603 = vmatprep.subr.mxu0 0.0
    %604 = vmatpush2.xpose.msra.mxu0 0.0
    %605 = vmatprep.subr.mxu0 0.0
    %606 = vmatpush2.xpose.msra.mxu0 0.0
    %607 = vmatprep.subr.mxu0 0.0
    %608 = vmatpush2.xpose.msra.mxu0 0.0
    %609 = vmatprep.subr.mxu0 0.0
    %610 = vmatpush2.xpose.msra.mxu0 0.0
    %611 = vmatprep.subr.mxu0 0.0
    %612 = vmatpush2.xpose.msra.mxu0 0.0
    %613 = vmatprep.subr.mxu0 0.0
    %614 = vmatpush2.xpose.msra.mxu0 0.0
    %615 = vmatprep.subr.mxu0 0.0
    %616 = vmatpush2.xpose.msra.mxu0 0.0
    %617 = vmatprep.subr.mxu0 0.0
    %618 = vmatpush2.xpose.msra.mxu0 0.0
    %619 = vmatprep.subr.mxu0 0.0
    %620 = vmatpush2.xpose.msra.mxu0 0.0
    %621 = vmatprep.subr.mxu0 0.0
    %622 = vmatpush2.xpose.msra.mxu0 0.0
    %623 = vmatprep.subr.mxu0 0.0
    %624 = vmatpush2.xpose.msra.mxu0 0.0
    %625 = vmatprep.subr.mxu0 0.0
    %626 = vmatpush2.xpose.msra.mxu0 0.0
    %627 = vmatprep.subr.mxu0 0.0
    %628 = vmatpush2.xpose.msra.mxu0 0.0
    %629 = vmatprep.subr.mxu0 0.0
    %630 = vmatpush2.xpose.msra.mxu0 0.0
    %631 = vmatprep.subr.mxu0 0.0
    %632 = vmatpush2.xpose.msra.mxu0 0.0
    %633 = vmatprep.subr.mxu0 0.0
    %634 = vmatpush2.xpose.msra.mxu0 0.0
    %635 = vmatprep.mubr.f32.mxu0 0.0
    %636 = vmatmul.mubr.f32.gmra.mxu0 %v567
    %v637 = vpop.f32.mrf.mxu0
    %v638 = vadd.f32 %v485, %v637
    %v639 = vpop.f32.mrf.mxu0
    %640 = vdwg.mxu0
    %641 = vrot.lane.b32.xlu0 %v467, 96
    %v642 = vpop.permute.xlu0 %641
    %v643 = vsel %vm490, %v467, 0
    %v645 = vsel %vm490, %v642, 0
    %647 = vmatprep.subr.mxu0 0.0
    %648 = vmatpush1.xpose.msra.mxu0 0.0
    %649 = vmatprep.subr.mxu0 0.0
    %650 = vmatpush1.xpose.msra.mxu0 0.0
    %651 = vmatprep.subr.mxu0 0.0
    %652 = vmatpush1.xpose.msra.mxu0 0.0
    %653 = vmatprep.subr.mxu0 0.0
    %654 = vmatpush1.xpose.msra.mxu0 0.0
    %655 = vmatprep.subr.mxu0 0.0
    %656 = vmatpush1.xpose.msra.mxu0 0.0
    %657 = vmatprep.subr.mxu0 0.0
    %658 = vmatpush1.xpose.msra.mxu0 0.0
    %659 = vmatprep.subr.mxu0 0.0
    %660 = vmatpush1.xpose.msra.mxu0 0.0
    %661 = vmatprep.subr.mxu0 0.0
    %662 = vmatpush1.xpose.msra.mxu0 0.0
    %663 = vmatprep.subr.mxu0 0.0
    %664 = vmatpush1.xpose.msra.mxu0 0.0
    %665 = vmatprep.subr.mxu0 0.0
    %666 = vmatpush1.xpose.msra.mxu0 0.0
    %667 = vmatprep.subr.mxu0 0.0
    %668 = vmatpush1.xpose.msra.mxu0 0.0
    %669 = vmatprep.subr.mxu0 0.0
    %670 = vmatpush1.xpose.msra.mxu0 0.0
    %671 = vmatprep.subr.mxu0 0.0
    %672 = vmatpush1.xpose.msra.mxu0 0.0
    %673 = vmatprep.subr.mxu0 0.0
    %674 = vmatpush1.xpose.msra.mxu0 0.0
    %675 = vmatprep.subr.mxu0 0.0
    %676 = vmatpush1.xpose.msra.mxu0 0.0
    %677 = vmatprep.subr.mxu0 0.0
    %678 = vmatpush1.xpose.msra.mxu0 %v645
    %679 = vmatprep.subr.mxu0 0.0
    %680 = vmatpush2.xpose.msra.mxu0 0.0
    %681 = vmatprep.subr.mxu0 0.0
    %682 = vmatpush2.xpose.msra.mxu0 0.0
    %683 = vmatprep.subr.mxu0 0.0
    %684 = vmatpush2.xpose.msra.mxu0 0.0
    %685 = vmatprep.subr.mxu0 0.0
    %686 = vmatpush2.xpose.msra.mxu0 0.0
    %687 = vmatprep.subr.mxu0 0.0
    %688 = vmatpush2.xpose.msra.mxu0 0.0
    %689 = vmatprep.subr.mxu0 0.0
    %690 = vmatpush2.xpose.msra.mxu0 0.0
    %691 = vmatprep.subr.mxu0 0.0
    %692 = vmatpush2.xpose.msra.mxu0 0.0
    %693 = vmatprep.subr.mxu0 0.0
    %694 = vmatpush2.xpose.msra.mxu0 0.0
    %695 = vmatprep.subr.mxu0 0.0
    %696 = vmatpush2.xpose.msra.mxu0 0.0
    %697 = vmatprep.subr.mxu0 0.0
    %698 = vmatpush2.xpose.msra.mxu0 0.0
    %699 = vmatprep.subr.mxu0 0.0
    %700 = vmatpush2.xpose.msra.mxu0 0.0
    %701 = vmatprep.subr.mxu0 0.0
    %702 = vmatpush2.xpose.msra.mxu0 0.0
    %703 = vmatprep.subr.mxu0 0.0
    %704 = vmatpush2.xpose.msra.mxu0 0.0
    %705 = vmatprep.subr.mxu0 0.0
    %706 = vmatpush2.xpose.msra.mxu0 0.0
    %707 = vmatprep.subr.mxu0 0.0
    %708 = vmatpush2.xpose.msra.mxu0 0.0
    %709 = vmatprep.subr.mxu0 0.0
    %710 = vmatpush2.xpose.msra.mxu0 0.0
    %711 = vmatprep.mubr.f32.mxu0 0.0
    %712 = vmatmul.mubr.f32.gmra.mxu0 %v643
    %v713 = vpop.f32.mrf.mxu0
    %v714 = vadd.f32 %v481, %v713
    %v715 = vpop.f32.mrf.mxu0
    %716 = vdwg.mxu0
    %717 = vrot.lane.b32.xlu0 %v469, 96
    %v718 = vpop.permute.xlu0 %717
    %v719 = vsel %vm490, %v469, 0
    %v721 = vsel %vm490, %v718, 0
    %723 = vmatprep.subr.mxu0 0.0
    %724 = vmatpush1.xpose.msra.mxu0 0.0
    %725 = vmatprep.subr.mxu0 0.0
    %726 = vmatpush1.xpose.msra.mxu0 0.0
    %727 = vmatprep.subr.mxu0 0.0
    %728 = vmatpush1.xpose.msra.mxu0 0.0
    %729 = vmatprep.subr.mxu0 0.0
    %730 = vmatpush1.xpose.msra.mxu0 0.0
    %731 = vmatprep.subr.mxu0 0.0
    %732 = vmatpush1.xpose.msra.mxu0 0.0
    %733 = vmatprep.subr.mxu0 0.0
    %734 = vmatpush1.xpose.msra.mxu0 0.0
    %735 = vmatprep.subr.mxu0 0.0
    %736 = vmatpush1.xpose.msra.mxu0 0.0
    %737 = vmatprep.subr.mxu0 0.0
    %738 = vmatpush1.xpose.msra.mxu0 0.0
    %739 = vmatprep.subr.mxu0 0.0
    %740 = vmatpush1.xpose.msra.mxu0 0.0
    %741 = vmatprep.subr.mxu0 0.0
    %742 = vmatpush1.xpose.msra.mxu0 0.0
    %743 = vmatprep.subr.mxu0 0.0
    %744 = vmatpush1.xpose.msra.mxu0 0.0
    %745 = vmatprep.subr.mxu0 0.0
    %746 = vmatpush1.xpose.msra.mxu0 0.0
    %747 = vmatprep.subr.mxu0 0.0
    %748 = vmatpush1.xpose.msra.mxu0 0.0
    %749 = vmatprep.subr.mxu0 0.0
    %750 = vmatpush1.xpose.msra.mxu0 0.0
    %751 = vmatprep.subr.mxu0 0.0
    %752 = vmatpush1.xpose.msra.mxu0 0.0
    %753 = vmatprep.subr.mxu0 0.0
    %754 = vmatpush1.xpose.msra.mxu0 %v721
    %755 = vmatprep.subr.mxu0 0.0
    %756 = vmatpush2.xpose.msra.mxu0 0.0
    %757 = vmatprep.subr.mxu0 0.0
    %758 = vmatpush2.xpose.msra.mxu0 0.0
    %759 = vmatprep.subr.mxu0 0.0
    %760 = vmatpush2.xpose.msra.mxu0 0.0
    %761 = vmatprep.subr.mxu0 0.0
    %762 = vmatpush2.xpose.msra.mxu0 0.0
    %763 = vmatprep.subr.mxu0 0.0
    %764 = vmatpush2.xpose.msra.mxu0 0.0
    %765 = vmatprep.subr.mxu0 0.0
    %766 = vmatpush2.xpose.msra.mxu0 0.0
    %767 = vmatprep.subr.mxu0 0.0
    %768 = vmatpush2.xpose.msra.mxu0 0.0
    %769 = vmatprep.subr.mxu0 0.0
    %770 = vmatpush2.xpose.msra.mxu0 0.0
    %771 = vmatprep.subr.mxu0 0.0
    %772 = vmatpush2.xpose.msra.mxu0 0.0
    %773 = vmatprep.subr.mxu0 0.0
    %774 = vmatpush2.xpose.msra.mxu0 0.0
    %775 = vmatprep.subr.mxu0 0.0
    %776 = vmatpush2.xpose.msra.mxu0 0.0
    %777 = vmatprep.subr.mxu0 0.0
    %778 = vmatpush2.xpose.msra.mxu0 0.0
    %779 = vmatprep.subr.mxu0 0.0
    %780 = vmatpush2.xpose.msra.mxu0 0.0
    %781 = vmatprep.subr.mxu0 0.0
    %782 = vmatpush2.xpose.msra.mxu0 0.0
    %783 = vmatprep.subr.mxu0 0.0
    %784 = vmatpush2.xpose.msra.mxu0 0.0
    %785 = vmatprep.subr.mxu0 0.0
    %786 = vmatpush2.xpose.msra.mxu0 0.0
    %787 = vmatprep.mubr.f32.mxu0 0.0
    %788 = vmatmul.mubr.f32.gmra.mxu0 %v719
    %v789 = vpop.f32.mrf.mxu0
    %v790 = vadd.f32 %v485, %v789
    %v791 = vpop.f32.mrf.mxu0
    %792 = vdwg.mxu0
    %793 = vrot.lane.b32.xlu0 %v471, 96
    %v794 = vpop.permute.xlu0 %793
    %v795 = vsel %vm490, %v471, 0
    %v797 = vsel %vm490, %v794, 0
    %799 = vmatprep.subr.mxu0 0.0
    %800 = vmatpush1.xpose.msra.mxu0 0.0
    %801 = vmatprep.subr.mxu0 0.0
    %802 = vmatpush1.xpose.msra.mxu0 0.0
    %803 = vmatprep.subr.mxu0 0.0
    %804 = vmatpush1.xpose.msra.mxu0 0.0
    %805 = vmatprep.subr.mxu0 0.0
    %806 = vmatpush1.xpose.msra.mxu0 0.0
    %807 = vmatprep.subr.mxu0 0.0
    %808 = vmatpush1.xpose.msra.mxu0 0.0
    %809 = vmatprep.subr.mxu0 0.0
    %810 = vmatpush1.xpose.msra.mxu0 0.0
    %811 = vmatprep.subr.mxu0 0.0
    %812 = vmatpush1.xpose.msra.mxu0 0.0
    %813 = vmatprep.subr.mxu0 0.0
    %814 = vmatpush1.xpose.msra.mxu0 0.0
    %815 = vmatprep.subr.mxu0 0.0
    %816 = vmatpush1.xpose.msra.mxu0 0.0
    %817 = vmatprep.subr.mxu0 0.0
    %818 = vmatpush1.xpose.msra.mxu0 0.0
    %819 = vmatprep.subr.mxu0 0.0
    %820 = vmatpush1.xpose.msra.mxu0 0.0
    %821 = vmatprep.subr.mxu0 0.0
    %822 = vmatpush1.xpose.msra.mxu0 0.0
    %823 = vmatprep.subr.mxu0 0.0
    %824 = vmatpush1.xpose.msra.mxu0 0.0
    %825 = vmatprep.subr.mxu0 0.0
    %826 = vmatpush1.xpose.msra.mxu0 0.0
    %827 = vmatprep.subr.mxu0 0.0
    %828 = vmatpush1.xpose.msra.mxu0 0.0
    %829 = vmatprep.subr.mxu0 0.0
    %830 = vmatpush1.xpose.msra.mxu0 %v797
    %831 = vmatprep.subr.mxu0 0.0
    %832 = vmatpush2.xpose.msra.mxu0 0.0
    %833 = vmatprep.subr.mxu0 0.0
    %834 = vmatpush2.xpose.msra.mxu0 0.0
    %835 = vmatprep.subr.mxu0 0.0
    %836 = vmatpush2.xpose.msra.mxu0 0.0
    %837 = vmatprep.subr.mxu0 0.0
    %838 = vmatpush2.xpose.msra.mxu0 0.0
    %839 = vmatprep.subr.mxu0 0.0
    %840 = vmatpush2.xpose.msra.mxu0 0.0
    %841 = vmatprep.subr.mxu0 0.0
    %842 = vmatpush2.xpose.msra.mxu0 0.0
    %843 = vmatprep.subr.mxu0 0.0
    %844 = vmatpush2.xpose.msra.mxu0 0.0
    %845 = vmatprep.subr.mxu0 0.0
    %846 = vmatpush2.xpose.msra.mxu0 0.0
    %847 = vmatprep.subr.mxu0 0.0
    %848 = vmatpush2.xpose.msra.mxu0 0.0
    %849 = vmatprep.subr.mxu0 0.0
    %850 = vmatpush2.xpose.msra.mxu0 0.0
    %851 = vmatprep.subr.mxu0 0.0
    %852 = vmatpush2.xpose.msra.mxu0 0.0
    %853 = vmatprep.subr.mxu0 0.0
    %854 = vmatpush2.xpose.msra.mxu0 0.0
    %855 = vmatprep.subr.mxu0 0.0
    %856 = vmatpush2.xpose.msra.mxu0 0.0
    %857 = vmatprep.subr.mxu0 0.0
    %858 = vmatpush2.xpose.msra.mxu0 0.0
    %859 = vmatprep.subr.mxu0 0.0
    %860 = vmatpush2.xpose.msra.mxu0 0.0
    %861 = vmatprep.subr.mxu0 0.0
    %862 = vmatpush2.xpose.msra.mxu0 0.0
    %863 = vmatprep.mubr.f32.mxu0 0.0
    %864 = vmatmul.mubr.f32.gmra.mxu0 %v795
    %v865 = vpop.f32.mrf.mxu0
    %v866 = vadd.f32 %v481, %v865
    %v867 = vpop.f32.mrf.mxu0
    %868 = vdwg.mxu0
    %869 = vrot.lane.b32.xlu0 %v473, 96
    %v870 = vpop.permute.xlu0 %869
    %v871 = vsel %vm490, %v473, 0
    %v873 = vsel %vm490, %v870, 0
    %875 = vmatprep.subr.mxu0 0.0
    %876 = vmatpush1.xpose.msra.mxu0 0.0
    %877 = vmatprep.subr.mxu0 0.0
    %878 = vmatpush1.xpose.msra.mxu0 0.0
    %879 = vmatprep.subr.mxu0 0.0
    %880 = vmatpush1.xpose.msra.mxu0 0.0
    %881 = vmatprep.subr.mxu0 0.0
    %882 = vmatpush1.xpose.msra.mxu0 0.0
    %883 = vmatprep.subr.mxu0 0.0
    %884 = vmatpush1.xpose.msra.mxu0 0.0
    %885 = vmatprep.subr.mxu0 0.0
    %886 = vmatpush1.xpose.msra.mxu0 0.0
    %887 = vmatprep.subr.mxu0 0.0
    %888 = vmatpush1.xpose.msra.mxu0 0.0
    %889 = vmatprep.subr.mxu0 0.0
    %890 = vmatpush1.xpose.msra.mxu0 0.0
    %891 = vmatprep.subr.mxu0 0.0
    %892 = vmatpush1.xpose.msra.mxu0 0.0
    %893 = vmatprep.subr.mxu0 0.0
    %894 = vmatpush1.xpose.msra.mxu0 0.0
    %895 = vmatprep.subr.mxu0 0.0
    %896 = vmatpush1.xpose.msra.mxu0 0.0
    %897 = vmatprep.subr.mxu0 0.0
    %898 = vmatpush1.xpose.msra.mxu0 0.0
    %899 = vmatprep.subr.mxu0 0.0
    %900 = vmatpush1.xpose.msra.mxu0 0.0
    %901 = vmatprep.subr.mxu0 0.0
    %902 = vmatpush1.xpose.msra.mxu0 0.0
    %903 = vmatprep.subr.mxu0 0.0
    %904 = vmatpush1.xpose.msra.mxu0 0.0
    %905 = vmatprep.subr.mxu0 0.0
    %906 = vmatpush1.xpose.msra.mxu0 %v873
    %907 = vmatprep.subr.mxu0 0.0
    %908 = vmatpush2.xpose.msra.mxu0 0.0
    %909 = vmatprep.subr.mxu0 0.0
    %910 = vmatpush2.xpose.msra.mxu0 0.0
    %911 = vmatprep.subr.mxu0 0.0
    %912 = vmatpush2.xpose.msra.mxu0 0.0
    %913 = vmatprep.subr.mxu0 0.0
    %914 = vmatpush2.xpose.msra.mxu0 0.0
    %915 = vmatprep.subr.mxu0 0.0
    %916 = vmatpush2.xpose.msra.mxu0 0.0
    %917 = vmatprep.subr.mxu0 0.0
    %918 = vmatpush2.xpose.msra.mxu0 0.0
    %919 = vmatprep.subr.mxu0 0.0
    %920 = vmatpush2.xpose.msra.mxu0 0.0
    %921 = vmatprep.subr.mxu0 0.0
    %922 = vmatpush2.xpose.msra.mxu0 0.0
    %923 = vmatprep.subr.mxu0 0.0
    %924 = vmatpush2.xpose.msra.mxu0 0.0
    %925 = vmatprep.subr.mxu0 0.0
    %926 = vmatpush2.xpose.msra.mxu0 0.0
    %927 = vmatprep.subr.mxu0 0.0
    %928 = vmatpush2.xpose.msra.mxu0 0.0
    %929 = vmatprep.subr.mxu0 0.0
    %930 = vmatpush2.xpose.msra.mxu0 0.0
    %931 = vmatprep.subr.mxu0 0.0
    %932 = vmatpush2.xpose.msra.mxu0 0.0
    %933 = vmatprep.subr.mxu0 0.0
    %934 = vmatpush2.xpose.msra.mxu0 0.0
    %935 = vmatprep.subr.mxu0 0.0
    %936 = vmatpush2.xpose.msra.mxu0 0.0
    %937 = vmatprep.subr.mxu0 0.0
    %938 = vmatpush2.xpose.msra.mxu0 0.0
    %939 = vmatprep.mubr.f32.mxu0 0.0
    %940 = vmatmul.mubr.f32.gmra.mxu0 %v871
    %v941 = vpop.f32.mrf.mxu0
    %v942 = vadd.f32 %v485, %v941
    %v943 = vpop.f32.mrf.mxu0
    %944 = vdwg.mxu0
    %945 = vrot.lane.b32.xlu0 %v475, 96
    %v946 = vpop.permute.xlu0 %945
    %v947 = vsel %vm490, %v475, 0
    %v949 = vsel %vm490, %v946, 0
    %951 = vmatprep.subr.mxu0 0.0
    %952 = vmatpush1.xpose.msra.mxu0 0.0
    %953 = vmatprep.subr.mxu0 0.0
    %954 = vmatpush1.xpose.msra.mxu0 0.0
    %955 = vmatprep.subr.mxu0 0.0
    %956 = vmatpush1.xpose.msra.mxu0 0.0
    %957 = vmatprep.subr.mxu0 0.0
    %958 = vmatpush1.xpose.msra.mxu0 0.0
    %959 = vmatprep.subr.mxu0 0.0
    %960 = vmatpush1.xpose.msra.mxu0 0.0
    %961 = vmatprep.subr.mxu0 0.0
    %962 = vmatpush1.xpose.msra.mxu0 0.0
    %963 = vmatprep.subr.mxu0 0.0
    %964 = vmatpush1.xpose.msra.mxu0 0.0
    %965 = vmatprep.subr.mxu0 0.0
    %966 = vmatpush1.xpose.msra.mxu0 0.0
    %967 = vmatprep.subr.mxu0 0.0
    %968 = vmatpush1.xpose.msra.mxu0 0.0
    %969 = vmatprep.subr.mxu0 0.0
    %970 = vmatpush1.xpose.msra.mxu0 0.0
    %971 = vmatprep.subr.mxu0 0.0
    %972 = vmatpush1.xpose.msra.mxu0 0.0
    %973 = vmatprep.subr.mxu0 0.0
    %974 = vmatpush1.xpose.msra.mxu0 0.0
    %975 = vmatprep.subr.mxu0 0.0
    %976 = vmatpush1.xpose.msra.mxu0 0.0
    %977 = vmatprep.subr.mxu0 0.0
    %978 = vmatpush1.xpose.msra.mxu0 0.0
    %979 = vmatprep.subr.mxu0 0.0
    %980 = vmatpush1.xpose.msra.mxu0 0.0
    %981 = vmatprep.subr.mxu0 0.0
    %982 = vmatpush1.xpose.msra.mxu0 %v949
    %983 = vmatprep.subr.mxu0 0.0
    %984 = vmatpush2.xpose.msra.mxu0 0.0
    %985 = vmatprep.subr.mxu0 0.0
    %986 = vmatpush2.xpose.msra.mxu0 0.0
    %987 = vmatprep.subr.mxu0 0.0
    %988 = vmatpush2.xpose.msra.mxu0 0.0
    %989 = vmatprep.subr.mxu0 0.0
    %990 = vmatpush2.xpose.msra.mxu0 0.0
    %991 = vmatprep.subr.mxu0 0.0
    %992 = vmatpush2.xpose.msra.mxu0 0.0
    %993 = vmatprep.subr.mxu0 0.0
    %994 = vmatpush2.xpose.msra.mxu0 0.0
    %995 = vmatprep.subr.mxu0 0.0
    %996 = vmatpush2.xpose.msra.mxu0 0.0
    %997 = vmatprep.subr.mxu0 0.0
    %998 = vmatpush2.xpose.msra.mxu0 0.0
    %999 = vmatprep.subr.mxu0 0.0
    %1000 = vmatpush2.xpose.msra.mxu0 0.0
    %1001 = vmatprep.subr.mxu0 0.0
    %1002 = vmatpush2.xpose.msra.mxu0 0.0
    %1003 = vmatprep.subr.mxu0 0.0
    %1004 = vmatpush2.xpose.msra.mxu0 0.0
    %1005 = vmatprep.subr.mxu0 0.0
    %1006 = vmatpush2.xpose.msra.mxu0 0.0
    %1007 = vmatprep.subr.mxu0 0.0
    %1008 = vmatpush2.xpose.msra.mxu0 0.0
    %1009 = vmatprep.subr.mxu0 0.0
    %1010 = vmatpush2.xpose.msra.mxu0 0.0
    %1011 = vmatprep.subr.mxu0 0.0
    %1012 = vmatpush2.xpose.msra.mxu0 0.0
    %1013 = vmatprep.subr.mxu0 0.0
    %1014 = vmatpush2.xpose.msra.mxu0 0.0
    %1015 = vmatprep.mubr.f32.mxu0 0.0
    %1016 = vmatmul.mubr.f32.gmra.mxu0 %v947
    %v1017 = vpop.f32.mrf.mxu0
    %v1018 = vadd.f32 %v481, %v1017
    %v1019 = vpop.f32.mrf.mxu0
    %1020 = vdwg.mxu0
    %1021 = vrot.lane.b32.xlu0 %v477, 96
    %v1022 = vpop.permute.xlu0 %1021
    %v1023 = vsel %vm490, %v477, 0
    %v1025 = vsel %vm490, %v1022, 0
    %1027 = vmatprep.subr.mxu0 0.0
    %1028 = vmatpush1.xpose.msra.mxu0 0.0
    %1029 = vmatprep.subr.mxu0 0.0
    %1030 = vmatpush1.xpose.msra.mxu0 0.0
    %1031 = vmatprep.subr.mxu0 0.0
    %1032 = vmatpush1.xpose.msra.mxu0 0.0
    %1033 = vmatprep.subr.mxu0 0.0
    %1034 = vmatpush1.xpose.msra.mxu0 0.0
    %1035 = vmatprep.subr.mxu0 0.0
    %1036 = vmatpush1.xpose.msra.mxu0 0.0
    %1037 = vmatprep.subr.mxu0 0.0
    %1038 = vmatpush1.xpose.msra.mxu0 0.0
    %1039 = vmatprep.subr.mxu0 0.0
    %1040 = vmatpush1.xpose.msra.mxu0 0.0
    %1041 = vmatprep.subr.mxu0 0.0
    %1042 = vmatpush1.xpose.msra.mxu0 0.0
    %1043 = vmatprep.subr.mxu0 0.0
    %1044 = vmatpush1.xpose.msra.mxu0 0.0
    %1045 = vmatprep.subr.mxu0 0.0
    %1046 = vmatpush1.xpose.msra.mxu0 0.0
    %1047 = vmatprep.subr.mxu0 0.0
    %1048 = vmatpush1.xpose.msra.mxu0 0.0
    %1049 = vmatprep.subr.mxu0 0.0
    %1050 = vmatpush1.xpose.msra.mxu0 0.0
    %1051 = vmatprep.subr.mxu0 0.0
    %1052 = vmatpush1.xpose.msra.mxu0 0.0
    %1053 = vmatprep.subr.mxu0 0.0
    %1054 = vmatpush1.xpose.msra.mxu0 0.0
    %1055 = vmatprep.subr.mxu0 0.0
    %1056 = vmatpush1.xpose.msra.mxu0 0.0
    %1057 = vmatprep.subr.mxu0 0.0
    %1058 = vmatpush1.xpose.msra.mxu0 %v1025
    %1059 = vmatprep.subr.mxu0 0.0
    %1060 = vmatpush2.xpose.msra.mxu0 0.0
    %1061 = vmatprep.subr.mxu0 0.0
    %1062 = vmatpush2.xpose.msra.mxu0 0.0
    %1063 = vmatprep.subr.mxu0 0.0
    %1064 = vmatpush2.xpose.msra.mxu0 0.0
    %1065 = vmatprep.subr.mxu0 0.0
    %1066 = vmatpush2.xpose.msra.mxu0 0.0
    %1067 = vmatprep.subr.mxu0 0.0
    %1068 = vmatpush2.xpose.msra.mxu0 0.0
    %1069 = vmatprep.subr.mxu0 0.0
    %1070 = vmatpush2.xpose.msra.mxu0 0.0
    %1071 = vmatprep.subr.mxu0 0.0
    %1072 = vmatpush2.xpose.msra.mxu0 0.0
    %1073 = vmatprep.subr.mxu0 0.0
    %1074 = vmatpush2.xpose.msra.mxu0 0.0
    %1075 = vmatprep.subr.mxu0 0.0
    %1076 = vmatpush2.xpose.msra.mxu0 0.0
    %1077 = vmatprep.subr.mxu0 0.0
    %1078 = vmatpush2.xpose.msra.mxu0 0.0
    %1079 = vmatprep.subr.mxu0 0.0
    %1080 = vmatpush2.xpose.msra.mxu0 0.0
    %1081 = vmatprep.subr.mxu0 0.0
    %1082 = vmatpush2.xpose.msra.mxu0 0.0
    %1083 = vmatprep.subr.mxu0 0.0
    %1084 = vmatpush2.xpose.msra.mxu0 0.0
    %1085 = vmatprep.subr.mxu0 0.0
    %1086 = vmatpush2.xpose.msra.mxu0 0.0
    %1087 = vmatprep.subr.mxu0 0.0
    %1088 = vmatpush2.xpose.msra.mxu0 0.0
    %1089 = vmatprep.subr.mxu0 0.0
    %1090 = vmatpush2.xpose.msra.mxu0 0.0
    %1091 = vmatprep.mubr.f32.mxu0 0.0
    %1092 = vmatmul.mubr.f32.gmra.mxu0 %v1023
    %v1093 = vpop.f32.mrf.mxu0
    %v1094 = vadd.f32 %v485, %v1093
    %v1095 = vpop.f32.mrf.mxu0
    %1096 = vdwg.mxu0
    %v1097 = vsel %vm490, %v562, -inf
    %1098 = vmax.xlane.f32.xlu0 %v1097
    %v1099 = vpop.xlane.xlu0 %1098
    %v1100 = vsel %vm490, %v638, -inf
    %1101 = vmax.xlane.f32.xlu0 %v1100
    %v1102 = vpop.xlane.xlu0 %1101
    %v1103 = vsel %vm490, %v714, -inf
    %1104 = vmax.xlane.f32.xlu0 %v1103
    %v1105 = vpop.xlane.xlu0 %1104
    %v1106 = vsel %vm490, %v790, -inf
    %1107 = vmax.xlane.f32.xlu0 %v1106
    %v1108 = vpop.xlane.xlu0 %1107
    %v1109 = vsel %vm490, %v866, -inf
    %1110 = vmax.xlane.f32.xlu0 %v1109
    %v1111 = vpop.xlane.xlu0 %1110
    %v1112 = vsel %vm490, %v942, -inf
    %1113 = vmax.xlane.f32.xlu0 %v1112
    %v1114 = vpop.xlane.xlu0 %1113
    %v1115 = vsel %vm490, %v1018, -inf
    %1116 = vmax.xlane.f32.xlu0 %v1115
    %v1117 = vpop.xlane.xlu0 %1116
    %v1118 = vsel %vm490, %v1094, -inf
    %1119 = vmax.xlane.f32.xlu0 %v1118
    %v1120 = vpop.xlane.xlu0 %1119
    %v1121 = vsub.f32 %v562, %v1099
    %v1122 = vsub.f32 %v638, %v1102
    %v1123 = vsub.f32 %v714, %v1105
    %v1124 = vsub.f32 %v790, %v1108
    %v1125 = vsub.f32 %v866, %v1111
    %v1126 = vsub.f32 %v942, %v1114
    %v1127 = vsub.f32 %v1018, %v1117
    %v1128 = vsub.f32 %v1094, %v1120
    %v1129 = vmul.f32 %v1121, 1.442695
    %v1130 = vpow.pop %v1129
    %v1131 = vmul.f32 %v1122, 1.442695
    %v1132 = vpow.pop %v1131
    %v1133 = vmul.f32 %v1123, 1.442695
    %v1134 = vpow.pop %v1133
    %v1135 = vmul.f32 %v1124, 1.442695
    %v1136 = vpow.pop %v1135
    %v1137 = vmul.f32 %v1125, 1.442695
    %v1138 = vpow.pop %v1137
    %v1139 = vmul.f32 %v1126, 1.442695
    %v1140 = vpow.pop %v1139
    %v1141 = vmul.f32 %v1127, 1.442695
    %v1142 = vpow.pop %v1141
    %v1143 = vmul.f32 %v1128, 1.442695
    %v1144 = vpow.pop %v1143
    %v1145 = vsel %vm490, %v1130, 0.0
    %1146 = vadd.xlane.f32.xlu0 %v1145
    %v1147 = vpop.xlane.xlu0 %1146
    %v1148 = vsel %vm490, %v1132, 0.0
    %1149 = vadd.xlane.f32.xlu0 %v1148
    %v1150 = vpop.xlane.xlu0 %1149
    %v1151 = vsel %vm490, %v1134, 0.0
    %1152 = vadd.xlane.f32.xlu0 %v1151
    %v1153 = vpop.xlane.xlu0 %1152
    %v1154 = vsel %vm490, %v1136, 0.0
    %1155 = vadd.xlane.f32.xlu0 %v1154
    %v1156 = vpop.xlane.xlu0 %1155
    %v1157 = vsel %vm490, %v1138, 0.0
    %1158 = vadd.xlane.f32.xlu0 %v1157
    %v1159 = vpop.xlane.xlu0 %1158
    %v1160 = vsel %vm490, %v1140, 0.0
    %1161 = vadd.xlane.f32.xlu0 %v1160
    %v1162 = vpop.xlane.xlu0 %1161
    %v1163 = vsel %vm490, %v1142, 0.0
    %1164 = vadd.xlane.f32.xlu0 %v1163
    %v1165 = vpop.xlane.xlu0 %1164
    %v1166 = vsel %vm490, %v1144, 0.0
    %1167 = vadd.xlane.f32.xlu0 %v1166
    %v1168 = vpop.xlane.xlu0 %1167
    %v1169 = vrcp.pop %v1147
    %v1170 = vrcp.pop %v1150
    %v1171 = vrcp.pop %v1153
    %v1172 = vrcp.pop %v1156
    %v1173 = vrcp.pop %v1159
    %v1174 = vrcp.pop %v1162
    %v1175 = vrcp.pop %v1165
    %v1176 = vrcp.pop %v1168
    %v1177 = vmul.f32 %v1130, %v1169
    %v1178 = vmul.f32 %v1132, %v1170
    %v1179 = vmul.f32 %v1134, %v1171
    %v1180 = vmul.f32 %v1136, %v1172
    %v1181 = vmul.f32 %v1138, %v1173
    %v1182 = vmul.f32 %v1140, %v1174
    %v1183 = vmul.f32 %v1142, %v1175
    %v1184 = vmul.f32 %v1144, %v1176
    %1185 = vrot.lane.b32.xlu0 %v456, 64
    %v1186 = vpop.permute.xlu0 %1185
    %v1189 = vsel %vm490, %v1177, 0
    %1191 = vmatprep.subr.mxu0 0.0
    %1192 = vmatpush1.msra.mxu0 0.0
    %1193 = vmatprep.subr.mxu0 0.0
    %1194 = vmatpush1.msra.mxu0 0.0
    %1195 = vmatprep.subr.mxu0 0.0
    %1196 = vmatpush1.msra.mxu0 0.0
    %1197 = vmatprep.subr.mxu0 0.0
    %1198 = vmatpush1.msra.mxu0 0.0
    %1199 = vmatprep.subr.mxu0 0.0
    %1200 = vmatpush1.msra.mxu0 0.0
    %1201 = vmatprep.subr.mxu0 0.0
    %1202 = vmatpush1.msra.mxu0 0.0
    %1203 = vmatprep.subr.mxu0 0.0
    %1204 = vmatpush1.msra.mxu0 0.0
    %1205 = vmatprep.subr.mxu0 0.0
    %1206 = vmatpush1.msra.mxu0 0.0
    %1207 = vmatprep.subr.mxu0 0.0
    %1208 = vmatpush1.msra.mxu0 0.0
    %1209 = vmatprep.subr.mxu0 0.0
    %1210 = vmatpush1.msra.mxu0 0.0
    %1211 = vmatprep.subr.mxu0 0.0
    %1212 = vmatpush1.msra.mxu0 0.0
    %1213 = vmatprep.subr.mxu0 0.0
    %1214 = vmatpush1.msra.mxu0 0.0
    %1215 = vmatprep.subr.mxu0 0.0
    %1216 = vmatpush1.msra.mxu0 0.0
    %1217 = vmatprep.subr.mxu0 0.0
    %1218 = vmatpush1.msra.mxu0 0.0
    %1219 = vmatprep.subr.mxu0 0.0
    %1220 = vmatpush1.msra.mxu0 0.0
    %1221 = vmatprep.subr.mxu0 0.0
    %1222 = vmatpush1.msra.mxu0 %v1186
    %1223 = vmatprep.subr.mxu0 0.0
    %1224 = vmatpush2.msra.mxu0 0.0
    %1225 = vmatprep.subr.mxu0 0.0
    %1226 = vmatpush2.msra.mxu0 0.0
    %1227 = vmatprep.subr.mxu0 0.0
    %1228 = vmatpush2.msra.mxu0 0.0
    %1229 = vmatprep.subr.mxu0 0.0
    %1230 = vmatpush2.msra.mxu0 0.0
    %1231 = vmatprep.subr.mxu0 0.0
    %1232 = vmatpush2.msra.mxu0 0.0
    %1233 = vmatprep.subr.mxu0 0.0
    %1234 = vmatpush2.msra.mxu0 0.0
    %1235 = vmatprep.subr.mxu0 0.0
    %1236 = vmatpush2.msra.mxu0 0.0
    %1237 = vmatprep.subr.mxu0 0.0
    %1238 = vmatpush2.msra.mxu0 0.0
    %1239 = vmatprep.subr.mxu0 0.0
    %1240 = vmatpush2.msra.mxu0 0.0
    %1241 = vmatprep.subr.mxu0 0.0
    %1242 = vmatpush2.msra.mxu0 0.0
    %1243 = vmatprep.subr.mxu0 0.0
    %1244 = vmatpush2.msra.mxu0 0.0
    %1245 = vmatprep.subr.mxu0 0.0
    %1246 = vmatpush2.msra.mxu0 0.0
    %1247 = vmatprep.subr.mxu0 0.0
    %1248 = vmatpush2.msra.mxu0 0.0
    %1249 = vmatprep.subr.mxu0 0.0
    %1250 = vmatpush2.msra.mxu0 0.0
    %1251 = vmatprep.subr.mxu0 0.0
    %1252 = vmatpush2.msra.mxu0 0.0
    %1253 = vmatprep.subr.mxu0 0.0
    %1254 = vmatpush2.msra.mxu0 0.0
    %1255 = vmatprep.mubr.f32.mxu0 0.0
    %1256 = vmatmul.mubr.f32.gmra.mxu0 %v1189
    %v1257 = vpop.f32.mrf.mxu0
    %v1258 = vadd.f32 0.0, %v1257
    %v1259 = vpop.f32.mrf.mxu0
    %1260 = vdwg.mxu0
    %1261 = vrot.lane.b32.xlu0 %v461, 64
    %v1262 = vpop.permute.xlu0 %1261
    %v1265 = vsel %vm490, %v1178, 0
    %1267 = vmatprep.subr.mxu0 0.0
    %1268 = vmatpush1.msra.mxu0 0.0
    %1269 = vmatprep.subr.mxu0 0.0
    %1270 = vmatpush1.msra.mxu0 0.0
    %1271 = vmatprep.subr.mxu0 0.0
    %1272 = vmatpush1.msra.mxu0 0.0
    %1273 = vmatprep.subr.mxu0 0.0
    %1274 = vmatpush1.msra.mxu0 0.0
    %1275 = vmatprep.subr.mxu0 0.0
    %1276 = vmatpush1.msra.mxu0 0.0
    %1277 = vmatprep.subr.mxu0 0.0
    %1278 = vmatpush1.msra.mxu0 0.0
    %1279 = vmatprep.subr.mxu0 0.0
    %1280 = vmatpush1.msra.mxu0 0.0
    %1281 = vmatprep.subr.mxu0 0.0
    %1282 = vmatpush1.msra.mxu0 0.0
    %1283 = vmatprep.subr.mxu0 0.0
    %1284 = vmatpush1.msra.mxu0 0.0
    %1285 = vmatprep.subr.mxu0 0.0
    %1286 = vmatpush1.msra.mxu0 0.0
    %1287 = vmatprep.subr.mxu0 0.0
    %1288 = vmatpush1.msra.mxu0 0.0
    %1289 = vmatprep.subr.mxu0 0.0
    %1290 = vmatpush1.msra.mxu0 0.0
    %1291 = vmatprep.subr.mxu0 0.0
    %1292 = vmatpush1.msra.mxu0 0.0
    %1293 = vmatprep.subr.mxu0 0.0
    %1294 = vmatpush1.msra.mxu0 0.0
    %1295 = vmatprep.subr.mxu0 0.0
    %1296 = vmatpush1.msra.mxu0 0.0
    %1297 = vmatprep.subr.mxu0 0.0
    %1298 = vmatpush1.msra.mxu0 %v1262
    %1299 = vmatprep.subr.mxu0 0.0
    %1300 = vmatpush2.msra.mxu0 0.0
    %1301 = vmatprep.subr.mxu0 0.0
    %1302 = vmatpush2.msra.mxu0 0.0
    %1303 = vmatprep.subr.mxu0 0.0
    %1304 = vmatpush2.msra.mxu0 0.0
    %1305 = vmatprep.subr.mxu0 0.0
    %1306 = vmatpush2.msra.mxu0 0.0
    %1307 = vmatprep.subr.mxu0 0.0
    %1308 = vmatpush2.msra.mxu0 0.0
    %1309 = vmatprep.subr.mxu0 0.0
    %1310 = vmatpush2.msra.mxu0 0.0
    %1311 = vmatprep.subr.mxu0 0.0
    %1312 = vmatpush2.msra.mxu0 0.0
    %1313 = vmatprep.subr.mxu0 0.0
    %1314 = vmatpush2.msra.mxu0 0.0
    %1315 = vmatprep.subr.mxu0 0.0
    %1316 = vmatpush2.msra.mxu0 0.0
    %1317 = vmatprep.subr.mxu0 0.0
    %1318 = vmatpush2.msra.mxu0 0.0
    %1319 = vmatprep.subr.mxu0 0.0
    %1320 = vmatpush2.msra.mxu0 0.0
    %1321 = vmatprep.subr.mxu0 0.0
    %1322 = vmatpush2.msra.mxu0 0.0
    %1323 = vmatprep.subr.mxu0 0.0
    %1324 = vmatpush2.msra.mxu0 0.0
    %1325 = vmatprep.subr.mxu0 0.0
    %1326 = vmatpush2.msra.mxu0 0.0
    %1327 = vmatprep.subr.mxu0 0.0
    %1328 = vmatpush2.msra.mxu0 0.0
    %1329 = vmatprep.subr.mxu0 0.0
    %1330 = vmatpush2.msra.mxu0 0.0
    %1331 = vmatprep.mubr.f32.mxu0 0.0
    %1332 = vmatmul.mubr.f32.gmra.mxu0 %v1265
    %v1333 = vpop.f32.mrf.mxu0
    %v1334 = vadd.f32 0.0, %v1333
    %v1335 = vpop.f32.mrf.mxu0
    %1336 = vdwg.mxu0
    %1337 = vrot.lane.b32.xlu0 %v467, 64
    %v1338 = vpop.permute.xlu0 %1337
    %v1341 = vsel %vm490, %v1179, 0
    %1343 = vmatprep.subr.mxu0 0.0
    %1344 = vmatpush1.msra.mxu0 0.0
    %1345 = vmatprep.subr.mxu0 0.0
    %1346 = vmatpush1.msra.mxu0 0.0
    %1347 = vmatprep.subr.mxu0 0.0
    %1348 = vmatpush1.msra.mxu0 0.0
    %1349 = vmatprep.subr.mxu0 0.0
    %1350 = vmatpush1.msra.mxu0 0.0
    %1351 = vmatprep.subr.mxu0 0.0
    %1352 = vmatpush1.msra.mxu0 0.0
    %1353 = vmatprep.subr.mxu0 0.0
    %1354 = vmatpush1.msra.mxu0 0.0
    %1355 = vmatprep.subr.mxu0 0.0
    %1356 = vmatpush1.msra.mxu0 0.0
    %1357 = vmatprep.subr.mxu0 0.0
    %1358 = vmatpush1.msra.mxu0 0.0
    %1359 = vmatprep.subr.mxu0 0.0
    %1360 = vmatpush1.msra.mxu0 0.0
    %1361 = vmatprep.subr.mxu0 0.0
    %1362 = vmatpush1.msra.mxu0 0.0
    %1363 = vmatprep.subr.mxu0 0.0
    %1364 = vmatpush1.msra.mxu0 0.0
    %1365 = vmatprep.subr.mxu0 0.0
    %1366 = vmatpush1.msra.mxu0 0.0
    %1367 = vmatprep.subr.mxu0 0.0
    %1368 = vmatpush1.msra.mxu0 0.0
    %1369 = vmatprep.subr.mxu0 0.0
    %1370 = vmatpush1.msra.mxu0 0.0
    %1371 = vmatprep.subr.mxu0 0.0
    %1372 = vmatpush1.msra.mxu0 0.0
    %1373 = vmatprep.subr.mxu0 0.0
    %1374 = vmatpush1.msra.mxu0 %v1338
    %1375 = vmatprep.subr.mxu0 0.0
    %1376 = vmatpush2.msra.mxu0 0.0
    %1377 = vmatprep.subr.mxu0 0.0
    %1378 = vmatpush2.msra.mxu0 0.0
    %1379 = vmatprep.subr.mxu0 0.0
    %1380 = vmatpush2.msra.mxu0 0.0
    %1381 = vmatprep.subr.mxu0 0.0
    %1382 = vmatpush2.msra.mxu0 0.0
    %1383 = vmatprep.subr.mxu0 0.0
    %1384 = vmatpush2.msra.mxu0 0.0
    %1385 = vmatprep.subr.mxu0 0.0
    %1386 = vmatpush2.msra.mxu0 0.0
    %1387 = vmatprep.subr.mxu0 0.0
    %1388 = vmatpush2.msra.mxu0 0.0
    %1389 = vmatprep.subr.mxu0 0.0
    %1390 = vmatpush2.msra.mxu0 0.0
    %1391 = vmatprep.subr.mxu0 0.0
    %1392 = vmatpush2.msra.mxu0 0.0
    %1393 = vmatprep.subr.mxu0 0.0
    %1394 = vmatpush2.msra.mxu0 0.0
    %1395 = vmatprep.subr.mxu0 0.0
    %1396 = vmatpush2.msra.mxu0 0.0
    %1397 = vmatprep.subr.mxu0 0.0
    %1398 = vmatpush2.msra.mxu0 0.0
    %1399 = vmatprep.subr.mxu0 0.0
    %1400 = vmatpush2.msra.mxu0 0.0
    %1401 = vmatprep.subr.mxu0 0.0
    %1402 = vmatpush2.msra.mxu0 0.0
    %1403 = vmatprep.subr.mxu0 0.0
    %1404 = vmatpush2.msra.mxu0 0.0
    %1405 = vmatprep.subr.mxu0 0.0
    %1406 = vmatpush2.msra.mxu0 0.0
    %1407 = vmatprep.mubr.f32.mxu0 0.0
    %1408 = vmatmul.mubr.f32.gmra.mxu0 %v1341
    %v1409 = vpop.f32.mrf.mxu0
    %v1410 = vadd.f32 0.0, %v1409
    %v1411 = vpop.f32.mrf.mxu0
    %1412 = vdwg.mxu0
    %1413 = vrot.lane.b32.xlu0 %v469, 64
    %v1414 = vpop.permute.xlu0 %1413
    %v1417 = vsel %vm490, %v1180, 0
    %1419 = vmatprep.subr.mxu0 0.0
    %1420 = vmatpush1.msra.mxu0 0.0
    %1421 = vmatprep.subr.mxu0 0.0
    %1422 = vmatpush1.msra.mxu0 0.0
    %1423 = vmatprep.subr.mxu0 0.0
    %1424 = vmatpush1.msra.mxu0 0.0
    %1425 = vmatprep.subr.mxu0 0.0
    %1426 = vmatpush1.msra.mxu0 0.0
    %1427 = vmatprep.subr.mxu0 0.0
    %1428 = vmatpush1.msra.mxu0 0.0
    %1429 = vmatprep.subr.mxu0 0.0
    %1430 = vmatpush1.msra.mxu0 0.0
    %1431 = vmatprep.subr.mxu0 0.0
    %1432 = vmatpush1.msra.mxu0 0.0
    %1433 = vmatprep.subr.mxu0 0.0
    %1434 = vmatpush1.msra.mxu0 0.0
    %1435 = vmatprep.subr.mxu0 0.0
    %1436 = vmatpush1.msra.mxu0 0.0
    %1437 = vmatprep.subr.mxu0 0.0
    %1438 = vmatpush1.msra.mxu0 0.0
    %1439 = vmatprep.subr.mxu0 0.0
    %1440 = vmatpush1.msra.mxu0 0.0
    %1441 = vmatprep.subr.mxu0 0.0
    %1442 = vmatpush1.msra.mxu0 0.0
    %1443 = vmatprep.subr.mxu0 0.0
    %1444 = vmatpush1.msra.mxu0 0.0
    %1445 = vmatprep.subr.mxu0 0.0
    %1446 = vmatpush1.msra.mxu0 0.0
    %1447 = vmatprep.subr.mxu0 0.0
    %1448 = vmatpush1.msra.mxu0 0.0
    %1449 = vmatprep.subr.mxu0 0.0
    %1450 = vmatpush1.msra.mxu0 %v1414
    %1451 = vmatprep.subr.mxu0 0.0
    %1452 = vmatpush2.msra.mxu0 0.0
    %1453 = vmatprep.subr.mxu0 0.0
    %1454 = vmatpush2.msra.mxu0 0.0
    %1455 = vmatprep.subr.mxu0 0.0
    %1456 = vmatpush2.msra.mxu0 0.0
    %1457 = vmatprep.subr.mxu0 0.0
    %1458 = vmatpush2.msra.mxu0 0.0
    %1459 = vmatprep.subr.mxu0 0.0
    %1460 = vmatpush2.msra.mxu0 0.0
    %1461 = vmatprep.subr.mxu0 0.0
    %1462 = vmatpush2.msra.mxu0 0.0
    %1463 = vmatprep.subr.mxu0 0.0
    %1464 = vmatpush2.msra.mxu0 0.0
    %1465 = vmatprep.subr.mxu0 0.0
    %1466 = vmatpush2.msra.mxu0 0.0
    %1467 = vmatprep.subr.mxu0 0.0
    %1468 = vmatpush2.msra.mxu0 0.0
    %1469 = vmatprep.subr.mxu0 0.0
    %1470 = vmatpush2.msra.mxu0 0.0
    %1471 = vmatprep.subr.mxu0 0.0
    %1472 = vmatpush2.msra.mxu0 0.0
    %1473 = vmatprep.subr.mxu0 0.0
    %1474 = vmatpush2.msra.mxu0 0.0
    %1475 = vmatprep.subr.mxu0 0.0
    %1476 = vmatpush2.msra.mxu0 0.0
    %1477 = vmatprep.subr.mxu0 0.0
    %1478 = vmatpush2.msra.mxu0 0.0
    %1479 = vmatprep.subr.mxu0 0.0
    %1480 = vmatpush2.msra.mxu0 0.0
    %1481 = vmatprep.subr.mxu0 0.0
    %1482 = vmatpush2.msra.mxu0 0.0
    %1483 = vmatprep.mubr.f32.mxu0 0.0
    %1484 = vmatmul.mubr.f32.gmra.mxu0 %v1417
    %v1485 = vpop.f32.mrf.mxu0
    %v1486 = vadd.f32 0.0, %v1485
    %v1487 = vpop.f32.mrf.mxu0
    %1488 = vdwg.mxu0
    %1489 = vrot.lane.b32.xlu0 %v471, 64
    %v1490 = vpop.permute.xlu0 %1489
    %v1493 = vsel %vm490, %v1181, 0
    %1495 = vmatprep.subr.mxu0 0.0
    %1496 = vmatpush1.msra.mxu0 0.0
    %1497 = vmatprep.subr.mxu0 0.0
    %1498 = vmatpush1.msra.mxu0 0.0
    %1499 = vmatprep.subr.mxu0 0.0
    %1500 = vmatpush1.msra.mxu0 0.0
    %1501 = vmatprep.subr.mxu0 0.0
    %1502 = vmatpush1.msra.mxu0 0.0
    %1503 = vmatprep.subr.mxu0 0.0
    %1504 = vmatpush1.msra.mxu0 0.0
    %1505 = vmatprep.subr.mxu0 0.0
    %1506 = vmatpush1.msra.mxu0 0.0
    %1507 = vmatprep.subr.mxu0 0.0
    %1508 = vmatpush1.msra.mxu0 0.0
    %1509 = vmatprep.subr.mxu0 0.0
    %1510 = vmatpush1.msra.mxu0 0.0
    %1511 = vmatprep.subr.mxu0 0.0
    %1512 = vmatpush1.msra.mxu0 0.0
    %1513 = vmatprep.subr.mxu0 0.0
    %1514 = vmatpush1.msra.mxu0 0.0
    %1515 = vmatprep.subr.mxu0 0.0
    %1516 = vmatpush1.msra.mxu0 0.0
    %1517 = vmatprep.subr.mxu0 0.0
    %1518 = vmatpush1.msra.mxu0 0.0
    %1519 = vmatprep.subr.mxu0 0.0
    %1520 = vmatpush1.msra.mxu0 0.0
    %1521 = vmatprep.subr.mxu0 0.0
    %1522 = vmatpush1.msra.mxu0 0.0
    %1523 = vmatprep.subr.mxu0 0.0
    %1524 = vmatpush1.msra.mxu0 0.0
    %1525 = vmatprep.subr.mxu0 0.0
    %1526 = vmatpush1.msra.mxu0 %v1490
    %1527 = vmatprep.subr.mxu0 0.0
    %1528 = vmatpush2.msra.mxu0 0.0
    %1529 = vmatprep.subr.mxu0 0.0
    %1530 = vmatpush2.msra.mxu0 0.0
    %1531 = vmatprep.subr.mxu0 0.0
    %1532 = vmatpush2.msra.mxu0 0.0
    %1533 = vmatprep.subr.mxu0 0.0
    %1534 = vmatpush2.msra.mxu0 0.0
    %1535 = vmatprep.subr.mxu0 0.0
    %1536 = vmatpush2.msra.mxu0 0.0
    %1537 = vmatprep.subr.mxu0 0.0
    %1538 = vmatpush2.msra.mxu0 0.0
    %1539 = vmatprep.subr.mxu0 0.0
    %1540 = vmatpush2.msra.mxu0 0.0
    %1541 = vmatprep.subr.mxu0 0.0
    %1542 = vmatpush2.msra.mxu0 0.0
    %1543 = vmatprep.subr.mxu0 0.0
    %1544 = vmatpush2.msra.mxu0 0.0
    %1545 = vmatprep.subr.mxu0 0.0
    %1546 = vmatpush2.msra.mxu0 0.0
    %1547 = vmatprep.subr.mxu0 0.0
    %1548 = vmatpush2.msra.mxu0 0.0
    %1549 = vmatprep.subr.mxu0 0.0
    %1550 = vmatpush2.msra.mxu0 0.0
    %1551 = vmatprep.subr.mxu0 0.0
    %1552 = vmatpush2.msra.mxu0 0.0
    %1553 = vmatprep.subr.mxu0 0.0
    %1554 = vmatpush2.msra.mxu0 0.0
    %1555 = vmatprep.subr.mxu0 0.0
    %1556 = vmatpush2.msra.mxu0 0.0
    %1557 = vmatprep.subr.mxu0 0.0
    %1558 = vmatpush2.msra.mxu0 0.0
    %1559 = vmatprep.mubr.f32.mxu0 0.0
    %1560 = vmatmul.mubr.f32.gmra.mxu0 %v1493
    %v1561 = vpop.f32.mrf.mxu0
    %v1562 = vadd.f32 0.0, %v1561
    %v1563 = vpop.f32.mrf.mxu0
    %1564 = vdwg.mxu0
    %1565 = vrot.lane.b32.xlu0 %v473, 64
    %v1566 = vpop.permute.xlu0 %1565
    %v1569 = vsel %vm490, %v1182, 0
    %1571 = vmatprep.subr.mxu0 0.0
    %1572 = vmatpush1.msra.mxu0 0.0
    %1573 = vmatprep.subr.mxu0 0.0
    %1574 = vmatpush1.msra.mxu0 0.0
    %1575 = vmatprep.subr.mxu0 0.0
    %1576 = vmatpush1.msra.mxu0 0.0
    %1577 = vmatprep.subr.mxu0 0.0
    %1578 = vmatpush1.msra.mxu0 0.0
    %1579 = vmatprep.subr.mxu0 0.0
    %1580 = vmatpush1.msra.mxu0 0.0
    %1581 = vmatprep.subr.mxu0 0.0
    %1582 = vmatpush1.msra.mxu0 0.0
    %1583 = vmatprep.subr.mxu0 0.0
    %1584 = vmatpush1.msra.mxu0 0.0
    %1585 = vmatprep.subr.mxu0 0.0
    %1586 = vmatpush1.msra.mxu0 0.0
    %1587 = vmatprep.subr.mxu0 0.0
    %1588 = vmatpush1.msra.mxu0 0.0
    %1589 = vmatprep.subr.mxu0 0.0
    %1590 = vmatpush1.msra.mxu0 0.0
    %1591 = vmatprep.subr.mxu0 0.0
    %1592 = vmatpush1.msra.mxu0 0.0
    %1593 = vmatprep.subr.mxu0 0.0
    %1594 = vmatpush1.msra.mxu0 0.0
    %1595 = vmatprep.subr.mxu0 0.0
    %1596 = vmatpush1.msra.mxu0 0.0
    %1597 = vmatprep.subr.mxu0 0.0
    %1598 = vmatpush1.msra.mxu0 0.0
    %1599 = vmatprep.subr.mxu0 0.0
    %1600 = vmatpush1.msra.mxu0 0.0
    %1601 = vmatprep.subr.mxu0 0.0
    %1602 = vmatpush1.msra.mxu0 %v1566
    %1603 = vmatprep.subr.mxu0 0.0
    %1604 = vmatpush2.msra.mxu0 0.0
    %1605 = vmatprep.subr.mxu0 0.0
    %1606 = vmatpush2.msra.mxu0 0.0
    %1607 = vmatprep.subr.mxu0 0.0
    %1608 = vmatpush2.msra.mxu0 0.0
    %1609 = vmatprep.subr.mxu0 0.0
    %1610 = vmatpush2.msra.mxu0 0.0
    %1611 = vmatprep.subr.mxu0 0.0
    %1612 = vmatpush2.msra.mxu0 0.0
    %1613 = vmatprep.subr.mxu0 0.0
    %1614 = vmatpush2.msra.mxu0 0.0
    %1615 = vmatprep.subr.mxu0 0.0
    %1616 = vmatpush2.msra.mxu0 0.0
    %1617 = vmatprep.subr.mxu0 0.0
    %1618 = vmatpush2.msra.mxu0 0.0
    %1619 = vmatprep.subr.mxu0 0.0
    %1620 = vmatpush2.msra.mxu0 0.0
    %1621 = vmatprep.subr.mxu0 0.0
    %1622 = vmatpush2.msra.mxu0 0.0
    %1623 = vmatprep.subr.mxu0 0.0
    %1624 = vmatpush2.msra.mxu0 0.0
    %1625 = vmatprep.subr.mxu0 0.0
    %1626 = vmatpush2.msra.mxu0 0.0
    %1627 = vmatprep.subr.mxu0 0.0
    %1628 = vmatpush2.msra.mxu0 0.0
    %1629 = vmatprep.subr.mxu0 0.0
    %1630 = vmatpush2.msra.mxu0 0.0
    %1631 = vmatprep.subr.mxu0 0.0
    %1632 = vmatpush2.msra.mxu0 0.0
    %1633 = vmatprep.subr.mxu0 0.0
    %1634 = vmatpush2.msra.mxu0 0.0
    %1635 = vmatprep.mubr.f32.mxu0 0.0
    %1636 = vmatmul.mubr.f32.gmra.mxu0 %v1569
    %v1637 = vpop.f32.mrf.mxu0
    %v1638 = vadd.f32 0.0, %v1637
    %v1639 = vpop.f32.mrf.mxu0
    %1640 = vdwg.mxu0
    %1641 = vrot.lane.b32.xlu0 %v475, 64
    %v1642 = vpop.permute.xlu0 %1641
    %v1645 = vsel %vm490, %v1183, 0
    %1647 = vmatprep.subr.mxu0 0.0
    %1648 = vmatpush1.msra.mxu0 0.0
    %1649 = vmatprep.subr.mxu0 0.0
    %1650 = vmatpush1.msra.mxu0 0.0
    %1651 = vmatprep.subr.mxu0 0.0
    %1652 = vmatpush1.msra.mxu0 0.0
    %1653 = vmatprep.subr.mxu0 0.0
    %1654 = vmatpush1.msra.mxu0 0.0
    %1655 = vmatprep.subr.mxu0 0.0
    %1656 = vmatpush1.msra.mxu0 0.0
    %1657 = vmatprep.subr.mxu0 0.0
    %1658 = vmatpush1.msra.mxu0 0.0
    %1659 = vmatprep.subr.mxu0 0.0
    %1660 = vmatpush1.msra.mxu0 0.0
    %1661 = vmatprep.subr.mxu0 0.0
    %1662 = vmatpush1.msra.mxu0 0.0
    %1663 = vmatprep.subr.mxu0 0.0
    %1664 = vmatpush1.msra.mxu0 0.0
    %1665 = vmatprep.subr.mxu0 0.0
    %1666 = vmatpush1.msra.mxu0 0.0
    %1667 = vmatprep.subr.mxu0 0.0
    %1668 = vmatpush1.msra.mxu0 0.0
    %1669 = vmatprep.subr.mxu0 0.0
    %1670 = vmatpush1.msra.mxu0 0.0
    %1671 = vmatprep.subr.mxu0 0.0
    %1672 = vmatpush1.msra.mxu0 0.0
    %1673 = vmatprep.subr.mxu0 0.0
    %1674 = vmatpush1.msra.mxu0 0.0
    %1675 = vmatprep.subr.mxu0 0.0
    %1676 = vmatpush1.msra.mxu0 0.0
    %1677 = vmatprep.subr.mxu0 0.0
    %1678 = vmatpush1.msra.mxu0 %v1642
    %1679 = vmatprep.subr.mxu0 0.0
    %1680 = vmatpush2.msra.mxu0 0.0
    %1681 = vmatprep.subr.mxu0 0.0
    %1682 = vmatpush2.msra.mxu0 0.0
    %1683 = vmatprep.subr.mxu0 0.0
    %1684 = vmatpush2.msra.mxu0 0.0
    %1685 = vmatprep.subr.mxu0 0.0
    %1686 = vmatpush2.msra.mxu0 0.0
    %1687 = vmatprep.subr.mxu0 0.0
    %1688 = vmatpush2.msra.mxu0 0.0
    %1689 = vmatprep.subr.mxu0 0.0
    %1690 = vmatpush2.msra.mxu0 0.0
    %1691 = vmatprep.subr.mxu0 0.0
    %1692 = vmatpush2.msra.mxu0 0.0
    %1693 = vmatprep.subr.mxu0 0.0
    %1694 = vmatpush2.msra.mxu0 0.0
    %1695 = vmatprep.subr.mxu0 0.0
    %1696 = vmatpush2.msra.mxu0 0.0
    %1697 = vmatprep.subr.mxu0 0.0
    %1698 = vmatpush2.msra.mxu0 0.0
    %1699 = vmatprep.subr.mxu0 0.0
    %1700 = vmatpush2.msra.mxu0 0.0
    %1701 = vmatprep.subr.mxu0 0.0
    %1702 = vmatpush2.msra.mxu0 0.0
    %1703 = vmatprep.subr.mxu0 0.0
    %1704 = vmatpush2.msra.mxu0 0.0
    %1705 = vmatprep.subr.mxu0 0.0
    %1706 = vmatpush2.msra.mxu0 0.0
    %1707 = vmatprep.subr.mxu0 0.0
    %1708 = vmatpush2.msra.mxu0 0.0
    %1709 = vmatprep.subr.mxu0 0.0
    %1710 = vmatpush2.msra.mxu0 0.0
    %1711 = vmatprep.mubr.f32.mxu0 0.0
    %1712 = vmatmul.mubr.f32.gmra.mxu0 %v1645
    %v1713 = vpop.f32.mrf.mxu0
    %v1714 = vadd.f32 0.0, %v1713
    %v1715 = vpop.f32.mrf.mxu0
    %1716 = vdwg.mxu0
    %1717 = vrot.lane.b32.xlu0 %v477, 64
    %v1718 = vpop.permute.xlu0 %1717
    %v1721 = vsel %vm490, %v1184, 0
    %1723 = vmatprep.subr.mxu0 0.0
    %1724 = vmatpush1.msra.mxu0 0.0
    %1725 = vmatprep.subr.mxu0 0.0
    %1726 = vmatpush1.msra.mxu0 0.0
    %1727 = vmatprep.subr.mxu0 0.0
    %1728 = vmatpush1.msra.mxu0 0.0
    %1729 = vmatprep.subr.mxu0 0.0
    %1730 = vmatpush1.msra.mxu0 0.0
    %1731 = vmatprep.subr.mxu0 0.0
    %1732 = vmatpush1.msra.mxu0 0.0
    %1733 = vmatprep.subr.mxu0 0.0
    %1734 = vmatpush1.msra.mxu0 0.0
    %1735 = vmatprep.subr.mxu0 0.0
    %1736 = vmatpush1.msra.mxu0 0.0
    %1737 = vmatprep.subr.mxu0 0.0
    %1738 = vmatpush1.msra.mxu0 0.0
    %1739 = vmatprep.subr.mxu0 0.0
    %1740 = vmatpush1.msra.mxu0 0.0
    %1741 = vmatprep.subr.mxu0 0.0
    %1742 = vmatpush1.msra.mxu0 0.0
    %1743 = vmatprep.subr.mxu0 0.0
    %1744 = vmatpush1.msra.mxu0 0.0
    %1745 = vmatprep.subr.mxu0 0.0
    %1746 = vmatpush1.msra.mxu0 0.0
    %1747 = vmatprep.subr.mxu0 0.0
    %1748 = vmatpush1.msra.mxu0 0.0
    %1749 = vmatprep.subr.mxu0 0.0
    %1750 = vmatpush1.msra.mxu0 0.0
    %1751 = vmatprep.subr.mxu0 0.0
    %1752 = vmatpush1.msra.mxu0 0.0
    %1753 = vmatprep.subr.mxu0 0.0
    %1754 = vmatpush1.msra.mxu0 %v1718
    %1755 = vmatprep.subr.mxu0 0.0
    %1756 = vmatpush2.msra.mxu0 0.0
    %1757 = vmatprep.subr.mxu0 0.0
    %1758 = vmatpush2.msra.mxu0 0.0
    %1759 = vmatprep.subr.mxu0 0.0
    %1760 = vmatpush2.msra.mxu0 0.0
    %1761 = vmatprep.subr.mxu0 0.0
    %1762 = vmatpush2.msra.mxu0 0.0
    %1763 = vmatprep.subr.mxu0 0.0
    %1764 = vmatpush2.msra.mxu0 0.0
    %1765 = vmatprep.subr.mxu0 0.0
    %1766 = vmatpush2.msra.mxu0 0.0
    %1767 = vmatprep.subr.mxu0 0.0
    %1768 = vmatpush2.msra.mxu0 0.0
    %1769 = vmatprep.subr.mxu0 0.0
    %1770 = vmatpush2.msra.mxu0 0.0
    %1771 = vmatprep.subr.mxu0 0.0
    %1772 = vmatpush2.msra.mxu0 0.0
    %1773 = vmatprep.subr.mxu0 0.0
    %1774 = vmatpush2.msra.mxu0 0.0
    %1775 = vmatprep.subr.mxu0 0.0
    %1776 = vmatpush2.msra.mxu0 0.0
    %1777 = vmatprep.subr.mxu0 0.0
    %1778 = vmatpush2.msra.mxu0 0.0
    %1779 = vmatprep.subr.mxu0 0.0
    %1780 = vmatpush2.msra.mxu0 0.0
    %1781 = vmatprep.subr.mxu0 0.0
    %1782 = vmatpush2.msra.mxu0 0.0
    %1783 = vmatprep.subr.mxu0 0.0
    %1784 = vmatpush2.msra.mxu0 0.0
    %1785 = vmatprep.subr.mxu0 0.0
    %1786 = vmatpush2.msra.mxu0 0.0
    %1787 = vmatprep.mubr.f32.mxu0 0.0
    %1788 = vmatmul.mubr.f32.gmra.mxu0 %v1721
    %v1789 = vpop.f32.mrf.mxu0
    %v1790 = vadd.f32 0.0, %v1789
    %v1791 = vpop.f32.mrf.mxu0
    %1792 = vdwg.mxu0
    %1795 = vrot.lane.b32.xlu0 %v1410, 8
    %v1796 = vpop.permute.xlu0 %1795
    %1797 = vrot.lane.b32.xlu0 %v1486, 8
    %v1798 = vpop.permute.xlu0 %1797
    %1803 = vrot.lane.b32.xlu0 %v1562, 16
    %v1804 = vpop.permute.xlu0 %1803
    %1805 = vrot.lane.b32.xlu0 %v1638, 16
    %v1806 = vpop.permute.xlu0 %1805
    %1811 = vrot.lane.b32.xlu0 %v1714, 24
    %v1812 = vpop.permute.xlu0 %1811
    %1813 = vrot.lane.b32.xlu0 %v1790, 24
    %v1814 = vpop.permute.xlu0 %1813
    %v1817 = vsel %vm490, %v1258, %v1796
    %v1818 = vsel %vm490, %v1334, %v1798
    %vm1819 = vcmask 130048
    %v1820 = vsel %vm1819, %v1817, %v1804
    %v1821 = vsel %vm1819, %v1818, %v1806
    %vm1822 = vcmask 195584
    %v1823 = vsel %vm1822, %v1820, %v1812
    %v1824 = vsel %vm1822, %v1821, %v1814
    %v1825 = vld [vmem:[%s5] sm:$0xff]
    %v1826 = vld [vmem:[%s5 + $0x8] sm:$0xff]
    %v1827 = vld [vmem:[%s5 + $0x10] sm:$0xff]
    %v1828 = vld [vmem:[%s5 + $0x18] sm:$0xff]
    %v1829 = vld [vmem:[%s5 + $0x20] sm:$0x1]
    %v1830 = vlaneseq
    %v1831 = vshrl.u32 %v1830, 7
    %v1832 = vsub.s32 0, %v1831
    %v1833 = vrot.slane %v1829, %v1832
    %v1835 = vsel %vm308, %v1823, 0
    %v1838 = vsel %vm308, %v1824, 0
    %1840 = vmatprep.subr.mxu0 0.0
    %1841 = vmatpush1.msra.mxu0 0.0
    %1842 = vmatprep.subr.mxu0 0.0
    %1843 = vmatpush1.msra.mxu0 0.0
    %1844 = vmatprep.subr.mxu0 0.0
    %1845 = vmatpush1.msra.mxu0 0.0
    %1846 = vmatprep.subr.mxu0 0.0
    %1847 = vmatpush1.msra.mxu0 0.0
    %1848 = vmatprep.subr.mxu0 0.0
    %1849 = vmatpush1.msra.mxu0 0.0
    %1850 = vmatprep.subr.mxu0 0.0
    %1851 = vmatpush1.msra.mxu0 0.0
    %1852 = vmatprep.subr.mxu0 0.0
    %1853 = vmatpush1.msra.mxu0 0.0
    %1854 = vmatprep.subr.mxu0 0.0
    %1855 = vmatpush1.msra.mxu0 0.0
    %1856 = vmatprep.subr.mxu0 0.0
    %1857 = vmatpush1.msra.mxu0 0.0
    %1858 = vmatprep.subr.mxu0 0.0
    %1859 = vmatpush1.msra.mxu0 0.0
    %1860 = vmatprep.subr.mxu0 0.0
    %1861 = vmatpush1.msra.mxu0 0.0
    %1862 = vmatprep.subr.mxu0 0.0
    %1863 = vmatpush1.msra.mxu0 0.0
    %1864 = vmatprep.subr.mxu0 0.0
    %1865 = vmatpush1.msra.mxu0 %v1828
    %1866 = vmatprep.subr.mxu0 0.0
    %1867 = vmatpush1.msra.mxu0 %v1827
    %1868 = vmatprep.subr.mxu0 0.0
    %1869 = vmatpush1.msra.mxu0 %v1826
    %1870 = vmatprep.subr.mxu0 0.0
    %1871 = vmatpush1.msra.mxu0 %v1825
    %1872 = vmatprep.subr.mxu0 0.0
    %1873 = vmatpush2.msra.mxu0 0.0
    %1874 = vmatprep.subr.mxu0 0.0
    %1875 = vmatpush2.msra.mxu0 0.0
    %1876 = vmatprep.subr.mxu0 0.0
    %1877 = vmatpush2.msra.mxu0 0.0
    %1878 = vmatprep.subr.mxu0 0.0
    %1879 = vmatpush2.msra.mxu0 0.0
    %1880 = vmatprep.subr.mxu0 0.0
    %1881 = vmatpush2.msra.mxu0 0.0
    %1882 = vmatprep.subr.mxu0 0.0
    %1883 = vmatpush2.msra.mxu0 0.0
    %1884 = vmatprep.subr.mxu0 0.0
    %1885 = vmatpush2.msra.mxu0 0.0
    %1886 = vmatprep.subr.mxu0 0.0
    %1887 = vmatpush2.msra.mxu0 0.0
    %1888 = vmatprep.subr.mxu0 0.0
    %1889 = vmatpush2.msra.mxu0 0.0
    %1890 = vmatprep.subr.mxu0 0.0
    %1891 = vmatpush2.msra.mxu0 0.0
    %1892 = vmatprep.subr.mxu0 0.0
    %1893 = vmatpush2.msra.mxu0 0.0
    %1894 = vmatprep.subr.mxu0 0.0
    %1895 = vmatpush2.msra.mxu0 0.0
    %1896 = vmatprep.subr.mxu0 0.0
    %1897 = vmatpush2.msra.mxu0 0.0
    %1898 = vmatprep.subr.mxu0 0.0
    %1899 = vmatpush2.msra.mxu0 0.0
    %1900 = vmatprep.subr.mxu0 0.0
    %1901 = vmatpush2.msra.mxu0 0.0
    %1902 = vmatprep.subr.mxu0 0.0
    %1903 = vmatpush2.msra.mxu0 0.0
    %1904 = vmatprep.mubr.f32.mxu0 0.0
    %1905 = vmatmul.mubr.f32.gmra.mxu0 %v1835
    %v1906 = vpop.f32.mrf.mxu0
    %v1907 = vadd.f32 %v1833, %v1906
    %v1908 = vpop.f32.mrf.mxu0
    %1909 = vmatprep.mubr.f32.mxu0 0.0
    %1910 = vmatmul.mubr.f32.gmra.mxu0 %v1838
    %v1911 = vpop.f32.mrf.mxu0
    %v1912 = vadd.f32 %v1833, %v1911
    %v1913 = vpop.f32.mrf.mxu0
    %1914 = vdwg.mxu0
    %v1915 = vadd.f32 %v1907, %v346
    %v1916 = vadd.f32 %v1912, %v347
    %v1917 = vld [vmem:[%s3 + $0x22] sm:$0x1]
    %v1918 = vld [vmem:[%s3 + $0x23] sm:$0x1]
    %v1919 = vsel %vm308, %v1915, 0.0
    %1920 = vadd.xlane.f32.xlu0 %v1919
    %v1921 = vpop.xlane.xlu0 %1920
    %v1922 = vsel %vm308, %v1916, 0.0
    %1923 = vadd.xlane.f32.xlu0 %v1922
    %v1924 = vpop.xlane.xlu0 %1923
    %v1925 = vmul.f32 %v1921, %v315
    %v1926 = vmul.f32 %v1924, %v315
    %v1927 = vsub.f32 %v1915, %v1925
    %v1928 = vsub.f32 %v1916, %v1926
    %v1929 = vmul.f32 %v1927, %v1927
    %v1930 = vmul.f32 %v1928, %v1928
    %v1931 = vsel %vm308, %v1929, 0.0
    %1932 = vadd.xlane.f32.xlu0 %v1931
    %v1933 = vpop.xlane.xlu0 %1932
    %v1934 = vsel %vm308, %v1930, 0.0
    %1935 = vadd.xlane.f32.xlu0 %v1934
    %v1936 = vpop.xlane.xlu0 %1935
    %v1937 = vmul.f32 %v1933, %v315
    %v1938 = vmul.f32 %v1936, %v315
    %v1939 = vadd.f32 %v1937, 1e-12
    %v1940 = vadd.f32 %v1938, 1e-12
    %v1941 = vrsqrt.pop %v1939
    %v1942 = vrsqrt.pop %v1940
    %v1943 = vmul.f32 %v1927, %v1941
    %v1944 = vmul.f32 %v1928, %v1942
    %v1945 = vlaneseq
    %v1946 = vshrl.u32 %v1945, 7
    %v1947 = vsub.s32 0, %v1946
    %v1948 = vrot.slane %v1917, %v1947
    %v1949 = vmul.f32 %v1943, %v1948
    %v1950 = vmul.f32 %v1944, %v1948
    %v1951 = vlaneseq
    %v1952 = vshrl.u32 %v1951, 7
    %v1953 = vsub.s32 0, %v1952
    %v1954 = vrot.slane %v1918, %v1953
    %v1955 = vadd.f32 %v1949, %v1954
    %v1956 = vadd.f32 %v1950, %v1954
    %v1957 = vld [vmem:[%s6] sm:$0xff]
    %v1958 = vld [vmem:[%s6 + $0x8] sm:$0xff]
    %v1959 = vld [vmem:[%s6 + $0x10] sm:$0xff]
    %v1960 = vld [vmem:[%s6 + $0x18] sm:$0xff]
    %v1961 = vld [vmem:[%s6 + $0x20] sm:$0x1]
    %v1962 = vlaneseq
    %v1963 = vshrl.u32 %v1962, 7
    %v1964 = vsub.s32 0, %v1963
    %v1965 = vrot.slane %v1961, %v1964
    %v1967 = vsel %vm308, %v1955, 0
    %v1970 = vsel %vm308, %v1956, 0
    %1972 = vmatprep.subr.mxu0 0.0
    %1973 = vmatpush1.msra.mxu0 0.0
    %1974 = vmatprep.subr.mxu0 0.0
    %1975 = vmatpush1.msra.mxu0 0.0
    %1976 = vmatprep.subr.mxu0 0.0
    %1977 = vmatpush1.msra.mxu0 0.0
    %1978 = vmatprep.subr.mxu0 0.0
    %1979 = vmatpush1.msra.mxu0 0.0
    %1980 = vmatprep.subr.mxu0 0.0
    %1981 = vmatpush1.msra.mxu0 0.0
    %1982 = vmatprep.subr.mxu0 0.0
    %1983 = vmatpush1.msra.mxu0 0.0
    %1984 = vmatprep.subr.mxu0 0.0
    %1985 = vmatpush1.msra.mxu0 0.0
    %1986 = vmatprep.subr.mxu0 0.0
    %1987 = vmatpush1.msra.mxu0 0.0
    %1988 = vmatprep.subr.mxu0 0.0
    %1989 = vmatpush1.msra.mxu0 0.0
    %1990 = vmatprep.subr.mxu0 0.0
    %1991 = vmatpush1.msra.mxu0 0.0
    %1992 = vmatprep.subr.mxu0 0.0
    %1993 = vmatpush1.msra.mxu0 0.0
    %1994 = vmatprep.subr.mxu0 0.0
    %1995 = vmatpush1.msra.mxu0 0.0
    %1996 = vmatprep.subr.mxu0 0.0
    %1997 = vmatpush1.msra.mxu0 %v1960
    %1998 = vmatprep.subr.mxu0 0.0
    %1999 = vmatpush1.msra.mxu0 %v1959
    %2000 = vmatprep.subr.mxu0 0.0
    %2001 = vmatpush1.msra.mxu0 %v1958
    %2002 = vmatprep.subr.mxu0 0.0
    %2003 = vmatpush1.msra.mxu0 %v1957
    %2004 = vmatprep.subr.mxu0 0.0
    %2005 = vmatpush2.msra.mxu0 0.0
    %2006 = vmatprep.subr.mxu0 0.0
    %2007 = vmatpush2.msra.mxu0 0.0
    %2008 = vmatprep.subr.mxu0 0.0
    %2009 = vmatpush2.msra.mxu0 0.0
    %2010 = vmatprep.subr.mxu0 0.0
    %2011 = vmatpush2.msra.mxu0 0.0
    %2012 = vmatprep.subr.mxu0 0.0
    %2013 = vmatpush2.msra.mxu0 0.0
    %2014 = vmatprep.subr.mxu0 0.0
    %2015 = vmatpush2.msra.mxu0 0.0
    %2016 = vmatprep.subr.mxu0 0.0
    %2017 = vmatpush2.msra.mxu0 0.0
    %2018 = vmatprep.subr.mxu0 0.0
    %2019 = vmatpush2.msra.mxu0 0.0
    %2020 = vmatprep.subr.mxu0 0.0
    %2021 = vmatpush2.msra.mxu0 0.0
    %2022 = vmatprep.subr.mxu0 0.0
    %2023 = vmatpush2.msra.mxu0 0.0
    %2024 = vmatprep.subr.mxu0 0.0
    %2025 = vmatpush2.msra.mxu0 0.0
    %2026 = vmatprep.subr.mxu0 0.0
    %2027 = vmatpush2.msra.mxu0 0.0
    %2028 = vmatprep.subr.mxu0 0.0
    %2029 = vmatpush2.msra.mxu0 0.0
    %2030 = vmatprep.subr.mxu0 0.0
    %2031 = vmatpush2.msra.mxu0 0.0
    %2032 = vmatprep.subr.mxu0 0.0
    %2033 = vmatpush2.msra.mxu0 0.0
    %2034 = vmatprep.subr.mxu0 0.0
    %2035 = vmatpush2.msra.mxu0 0.0
    %2036 = vmatprep.mubr.f32.mxu0 0.0
    %2037 = vmatmul.mubr.f32.gmra.mxu0 %v1967
    %v2038 = vpop.f32.mrf.mxu0
    %v2039 = vadd.f32 %v1965, %v2038
    %v2040 = vpop.f32.mrf.mxu0
    %2041 = vmatprep.mubr.f32.mxu0 0.0
    %2042 = vmatmul.mubr.f32.gmra.mxu0 %v1970
    %v2043 = vpop.f32.mrf.mxu0
    %v2044 = vadd.f32 %v1965, %v2043
    %v2045 = vpop.f32.mrf.mxu0
    %2046 = vdwg.mxu0
    %v2047 = vmul.f32 %v2039, 0.5
    %v2048 = vmul.f32 %v2044, 0.5
    %v2049 = vmul.f32 %v2039, 0.70710677
    %v2050 = vmul.f32 %v2044, 0.70710677
    %v2051 = vand.u32 2147483647, %v2049
    %v2052 = vand.u32 2147483647, %v2050
    %v2053 = vmul.f32 %v2051, 0.3275911
    %v2054 = vmul.f32 %v2052, 0.3275911
    %v2055 = vadd.f32 %v2053, 1.0
    %v2056 = vadd.f32 %v2054, 1.0
    %v2057 = vrcp.pop %v2055
    %v2058 = vmul.f32 1.0, %v2057
    %v2059 = vrcp.pop %v2056
    %v2060 = vmul.f32 1.0, %v2059
    %v2061 = vmul.f32 %v2058, 1.0614054
    %v2062 = vmul.f32 %v2060, 1.0614054
    %v2063 = vadd.f32 %v2061, -1.4531521
    %v2064 = vadd.f32 %v2062, -1.4531521
    %v2065 = vmul.f32 %v2063, %v2058
    %v2066 = vmul.f32 %v2064, %v2060
    %v2067 = vadd.f32 %v2065, 1.4214138
    %v2068 = vadd.f32 %v2066, 1.4214138
    %v2069 = vmul.f32 %v2067, %v2058
    %v2070 = vmul.f32 %v2068, %v2060
    %v2071 = vadd.f32 %v2069, -0.28449672
    %v2072 = vadd.f32 %v2070, -0.28449672
    %v2073 = vmul.f32 %v2071, %v2058
    %v2074 = vmul.f32 %v2072, %v2060
    %v2075 = vadd.f32 %v2073, 0.2548296
    %v2076 = vadd.f32 %v2074, 0.2548296
    %v2077 = vmul.f32 %v2075, %v2058
    %v2078 = vmul.f32 %v2076, %v2060
    %v2079 = vmul.f32 %v2051, %v2051
    %v2080 = vmul.f32 %v2052, %v2052
    %v2081 = vsub.f32 0.0, %v2079
    %v2082 = vsub.f32 0.0, %v2080
    %v2083 = vmul.f32 %v2081, 1.442695
    %v2084 = vpow.pop %v2083
    %v2085 = vmul.f32 %v2082, 1.442695
    %v2086 = vpow.pop %v2085
    %v2087 = vmul.f32 %v2077, %v2084
    %v2088 = vmul.f32 %v2078, %v2086
    %v2089 = vsub.f32 1.0, %v2087
    %v2090 = vsub.f32 1.0, %v2088
    %vm2091 = vcmp.ge.f32.partialorder %v2049, 0.0
    %vm2092 = vcmp.ge.f32.partialorder %v2050, 0.0
    %v2093 = vsub.f32 0.0, %v2089
    %v2094 = vsub.f32 0.0, %v2090
    %v2095 = vsel %vm2091, %v2089, %v2093
    %v2096 = vsel %vm2092, %v2090, %v2094
    %v2097 = vadd.f32 %v2095, 1.0
    %v2098 = vadd.f32 %v2096, 1.0
    %v2099 = vmul.f32 %v2047, %v2097
    %v2100 = vmul.f32 %v2048, %v2098
    %v2101 = vld [vmem:[%s7] sm:$0xff]
    %v2102 = vld [vmem:[%s7 + $0x8] sm:$0xff]
    %v2103 = vld [vmem:[%s7 + $0x10] sm:$0xff]
    %v2104 = vld [vmem:[%s7 + $0x18] sm:$0xff]
    %v2105 = vld [vmem:[%s7 + $0x20] sm:$0xff]
    %v2106 = vld [vmem:[%s7 + $0x28] sm:$0xff]
    %v2107 = vld [vmem:[%s7 + $0x30] sm:$0xff]
    %v2108 = vld [vmem:[%s7 + $0x38] sm:$0xff]
    %v2109 = vld [vmem:[%s7 + $0x40] sm:$0x1]
    %v2110 = vlaneseq
    %v2111 = vshrl.u32 %v2110, 7
    %v2112 = vsub.s32 0, %v2111
    %v2113 = vrot.slane %v2109, %v2112
    %vm2114 = vcmask 523264
    %v2116 = vsel %vm2114, %v2099, 0
    %v2119 = vsel %vm2114, %v2100, 0
    %2121 = vmatprep.subr.mxu0 0.0
    %2122 = vmatpush1.msra.mxu0 0.0
    %2123 = vmatprep.subr.mxu0 0.0
    %2124 = vmatpush1.msra.mxu0 0.0
    %2125 = vmatprep.subr.mxu0 0.0
    %2126 = vmatpush1.msra.mxu0 0.0
    %2127 = vmatprep.subr.mxu0 0.0
    %2128 = vmatpush1.msra.mxu0 0.0
    %2129 = vmatprep.subr.mxu0 0.0
    %2130 = vmatpush1.msra.mxu0 0.0
    %2131 = vmatprep.subr.mxu0 0.0
    %2132 = vmatpush1.msra.mxu0 0.0
    %2133 = vmatprep.subr.mxu0 0.0
    %2134 = vmatpush1.msra.mxu0 0.0
    %2135 = vmatprep.subr.mxu0 0.0
    %2136 = vmatpush1.msra.mxu0 0.0
    %2137 = vmatprep.subr.mxu0 0.0
    %2138 = vmatpush1.msra.mxu0 %v2108
    %2139 = vmatprep.subr.mxu0 0.0
    %2140 = vmatpush1.msra.mxu0 %v2107
    %2141 = vmatprep.subr.mxu0 0.0
    %2142 = vmatpush1.msra.mxu0 %v2106
    %2143 = vmatprep.subr.mxu0 0.0
    %2144 = vmatpush1.msra.mxu0 %v2105
    %2145 = vmatprep.subr.mxu0 0.0
    %2146 = vmatpush1.msra.mxu0 %v2104
    %2147 = vmatprep.subr.mxu0 0.0
    %2148 = vmatpush1.msra.mxu0 %v2103
    %2149 = vmatprep.subr.mxu0 0.0
    %2150 = vmatpush1.msra.mxu0 %v2102
    %2151 = vmatprep.subr.mxu0 0.0
    %2152 = vmatpush1.msra.mxu0 %v2101
    %2153 = vmatprep.subr.mxu0 0.0
    %2154 = vmatpush2.msra.mxu0 0.0
    %2155 = vmatprep.subr.mxu0 0.0
    %2156 = vmatpush2.msra.mxu0 0.0
    %2157 = vmatprep.subr.mxu0 0.0
    %2158 = vmatpush2.msra.mxu0 0.0
    %2159 = vmatprep.subr.mxu0 0.0
    %2160 = vmatpush2.msra.mxu0 0.0
    %2161 = vmatprep.subr.mxu0 0.0
    %2162 = vmatpush2.msra.mxu0 0.0
    %2163 = vmatprep.subr.mxu0 0.0
    %2164 = vmatpush2.msra.mxu0 0.0
    %2165 = vmatprep.subr.mxu0 0.0
    %2166 = vmatpush2.msra.mxu0 0.0
    %2167 = vmatprep.subr.mxu0 0.0
    %2168 = vmatpush2.msra.mxu0 0.0
    %2169 = vmatprep.subr.mxu0 0.0
    %2170 = vmatpush2.msra.mxu0 0.0
    %2171 = vmatprep.subr.mxu0 0.0
    %2172 = vmatpush2.msra.mxu0 0.0
    %2173 = vmatprep.subr.mxu0 0.0
    %2174 = vmatpush2.msra.mxu0 0.0
    %2175 = vmatprep.subr.mxu0 0.0
    %2176 = vmatpush2.msra.mxu0 0.0
    %2177 = vmatprep.subr.mxu0 0.0
    %2178 = vmatpush2.msra.mxu0 0.0
    %2179 = vmatprep.subr.mxu0 0.0
    %2180 = vmatpush2.msra.mxu0 0.0
    %2181 = vmatprep.subr.mxu0 0.0
    %2182 = vmatpush2.msra.mxu0 0.0
    %2183 = vmatprep.subr.mxu0 0.0
    %2184 = vmatpush2.msra.mxu0 0.0
    %2185 = vmatprep.mubr.f32.mxu0 0.0
    %2186 = vmatmul.mubr.f32.gmra.mxu0 %v2116
    %v2187 = vpop.f32.mrf.mxu0
    %v2188 = vadd.f32 %v2113, %v2187
    %v2189 = vpop.f32.mrf.mxu0
    %2190 = vmatprep.mubr.f32.mxu0 0.0
    %2191 = vmatmul.mubr.f32.gmra.mxu0 %v2119
    %v2192 = vpop.f32.mrf.mxu0
    %v2193 = vadd.f32 %v2113, %v2192
    %v2194 = vpop.f32.mrf.mxu0
    %2195 = vdwg.mxu0
    %v2196 = vadd.f32 %v2188, %v1955
    %v2197 = vadd.f32 %v2193, %v1956
    %v2198 = vld [vmem:[%s3 + $0x24] sm:$0x1]
    %v2199 = vld [vmem:[%s3 + $0x25] sm:$0x1]
    %v2200 = vsel %vm308, %v2196, 0.0
    %2201 = vadd.xlane.f32.xlu0 %v2200
    %v2202 = vpop.xlane.xlu0 %2201
    %v2203 = vsel %vm308, %v2197, 0.0
    %2204 = vadd.xlane.f32.xlu0 %v2203
    %v2205 = vpop.xlane.xlu0 %2204
    %v2206 = vmul.f32 %v2202, %v315
    %v2207 = vmul.f32 %v2205, %v315
    %v2208 = vsub.f32 %v2196, %v2206
    %v2209 = vsub.f32 %v2197, %v2207
    %v2210 = vmul.f32 %v2208, %v2208
    %v2211 = vmul.f32 %v2209, %v2209
    %v2212 = vsel %vm308, %v2210, 0.0
    %2213 = vadd.xlane.f32.xlu0 %v2212
    %v2214 = vpop.xlane.xlu0 %2213
    %v2215 = vsel %vm308, %v2211, 0.0
    %2216 = vadd.xlane.f32.xlu0 %v2215
    %v2217 = vpop.xlane.xlu0 %2216
    %v2218 = vmul.f32 %v2214, %v315
    %v2219 = vmul.f32 %v2217, %v315
    %v2220 = vadd.f32 %v2218, 1e-12
    %v2221 = vadd.f32 %v2219, 1e-12
    %v2222 = vrsqrt.pop %v2220
    %v2223 = vrsqrt.pop %v2221
    %v2224 = vmul.f32 %v2208, %v2222
    %v2225 = vmul.f32 %v2209, %v2223
    %v2226 = vlaneseq
    %v2227 = vshrl.u32 %v2226, 7
    %v2228 = vsub.s32 0, %v2227
    %v2229 = vrot.slane %v2198, %v2228
    %v2230 = vmul.f32 %v2224, %v2229
    %v2231 = vmul.f32 %v2225, %v2229
    %v2232 = vlaneseq
    %v2233 = vshrl.u32 %v2232, 7
    %v2234 = vsub.s32 0, %v2233
    %v2235 = vrot.slane %v2199, %v2234
    %v2236 = vadd.f32 %v2230, %v2235
    %v2237 = vadd.f32 %v2231, %v2235
    %s2238 = scalar_lea.vmem %s4, 40
    %v2239 = vld [vmem:[%s2238] sm:$0xff]
    %v2240 = vld [vmem:[%s2238 + $0x8] sm:$0xff]
    %v2241 = vld [vmem:[%s2238 + $0x10] sm:$0xff]
    %v2242 = vld [vmem:[%s2238 + $0x18] sm:$0xff]
    %v2243 = vld [vmem:[%s2238 + $0x20] sm:$0x1]
    %v2244 = vlaneseq
    %v2245 = vshrl.u32 %v2244, 7
    %v2246 = vsub.s32 0, %v2245
    %v2247 = vrot.slane %v2243, %v2246
    %v2249 = vsel %vm308, %v2236, 0
    %v2252 = vsel %vm308, %v2237, 0
    %2254 = vmatprep.subr.mxu0 0.0
    %2255 = vmatpush1.msra.mxu0 0.0
    %2256 = vmatprep.subr.mxu0 0.0
    %2257 = vmatpush1.msra.mxu0 0.0
    %2258 = vmatprep.subr.mxu0 0.0
    %2259 = vmatpush1.msra.mxu0 0.0
    %2260 = vmatprep.subr.mxu0 0.0
    %2261 = vmatpush1.msra.mxu0 0.0
    %2262 = vmatprep.subr.mxu0 0.0
    %2263 = vmatpush1.msra.mxu0 0.0
    %2264 = vmatprep.subr.mxu0 0.0
    %2265 = vmatpush1.msra.mxu0 0.0
    %2266 = vmatprep.subr.mxu0 0.0
    %2267 = vmatpush1.msra.mxu0 0.0
    %2268 = vmatprep.subr.mxu0 0.0
    %2269 = vmatpush1.msra.mxu0 0.0
    %2270 = vmatprep.subr.mxu0 0.0
    %2271 = vmatpush1.msra.mxu0 0.0
    %2272 = vmatprep.subr.mxu0 0.0
    %2273 = vmatpush1.msra.mxu0 0.0
    %2274 = vmatprep.subr.mxu0 0.0
    %2275 = vmatpush1.msra.mxu0 0.0
    %2276 = vmatprep.subr.mxu0 0.0
    %2277 = vmatpush1.msra.mxu0 0.0
    %2278 = vmatprep.subr.mxu0 0.0
    %2279 = vmatpush1.msra.mxu0 %v2242
    %2280 = vmatprep.subr.mxu0 0.0
    %2281 = vmatpush1.msra.mxu0 %v2241
    %2282 = vmatprep.subr.mxu0 0.0
    %2283 = vmatpush1.msra.mxu0 %v2240
    %2284 = vmatprep.subr.mxu0 0.0
    %2285 = vmatpush1.msra.mxu0 %v2239
    %2286 = vmatprep.subr.mxu0 0.0
    %2287 = vmatpush2.msra.mxu0 0.0
    %2288 = vmatprep.subr.mxu0 0.0
    %2289 = vmatpush2.msra.mxu0 0.0
    %2290 = vmatprep.subr.mxu0 0.0
    %2291 = vmatpush2.msra.mxu0 0.0
    %2292 = vmatprep.subr.mxu0 0.0
    %2293 = vmatpush2.msra.mxu0 0.0
    %2294 = vmatprep.subr.mxu0 0.0
    %2295 = vmatpush2.msra.mxu0 0.0
    %2296 = vmatprep.subr.mxu0 0.0
    %2297 = vmatpush2.msra.mxu0 0.0
    %2298 = vmatprep.subr.mxu0 0.0
    %2299 = vmatpush2.msra.mxu0 0.0
    %2300 = vmatprep.subr.mxu0 0.0
    %2301 = vmatpush2.msra.mxu0 0.0
    %2302 = vmatprep.subr.mxu0 0.0
    %2303 = vmatpush2.msra.mxu0 0.0
    %2304 = vmatprep.subr.mxu0 0.0
    %2305 = vmatpush2.msra.mxu0 0.0
    %2306 = vmatprep.subr.mxu0 0.0
    %2307 = vmatpush2.msra.mxu0 0.0
    %2308 = vmatprep.subr.mxu0 0.0
    %2309 = vmatpush2.msra.mxu0 0.0
    %2310 = vmatprep.subr.mxu0 0.0
    %2311 = vmatpush2.msra.mxu0 0.0
    %2312 = vmatprep.subr.mxu0 0.0
    %2313 = vmatpush2.msra.mxu0 0.0
    %2314 = vmatprep.subr.mxu0 0.0
    %2315 = vmatpush2.msra.mxu0 0.0
    %2316 = vmatprep.subr.mxu0 0.0
    %2317 = vmatpush2.msra.mxu0 0.0
    %2318 = vmatprep.mubr.f32.mxu0 0.0
    %2319 = vmatmul.mubr.f32.gmra.mxu0 %v2249
    %v2320 = vpop.f32.mrf.mxu0
    %v2321 = vadd.f32 %v2247, %v2320
    %v2322 = vpop.f32.mrf.mxu0
    %2323 = vmatprep.mubr.f32.mxu0 0.0
    %2324 = vmatmul.mubr.f32.gmra.mxu0 %v2252
    %v2325 = vpop.f32.mrf.mxu0
    %v2326 = vadd.f32 %v2247, %v2325
    %v2327 = vpop.f32.mrf.mxu0
    %2328 = vdwg.mxu0
    %2331 = vrot.lane.b32.xlu0 %v2321, 120
    %v2332 = vpop.permute.xlu0 %2331
    %2333 = vrot.lane.b32.xlu0 %v2326, 120
    %v2334 = vpop.permute.xlu0 %2333
    %2335 = vrot.lane.b32.xlu0 %v2321, 112
    %v2336 = vpop.permute.xlu0 %2335
    %2337 = vrot.lane.b32.xlu0 %v2326, 112
    %v2338 = vpop.permute.xlu0 %2337
    %2339 = vrot.lane.b32.xlu0 %v2321, 104
    %v2340 = vpop.permute.xlu0 %2339
    %2341 = vrot.lane.b32.xlu0 %v2326, 104
    %v2342 = vpop.permute.xlu0 %2341
    %2343 = vrot.lane.b32.xlu0 %v2321, 96
    %v2344 = vpop.permute.xlu0 %2343
    %v2345 = vsel %vm490, %v2321, 0
    %v2347 = vsel %vm490, %v2344, 0
    %2349 = vmatprep.subr.mxu0 0.0
    %2350 = vmatpush1.xpose.msra.mxu0 0.0
    %2351 = vmatprep.subr.mxu0 0.0
    %2352 = vmatpush1.xpose.msra.mxu0 0.0
    %2353 = vmatprep.subr.mxu0 0.0
    %2354 = vmatpush1.xpose.msra.mxu0 0.0
    %2355 = vmatprep.subr.mxu0 0.0
    %2356 = vmatpush1.xpose.msra.mxu0 0.0
    %2357 = vmatprep.subr.mxu0 0.0
    %2358 = vmatpush1.xpose.msra.mxu0 0.0
    %2359 = vmatprep.subr.mxu0 0.0
    %2360 = vmatpush1.xpose.msra.mxu0 0.0
    %2361 = vmatprep.subr.mxu0 0.0
    %2362 = vmatpush1.xpose.msra.mxu0 0.0
    %2363 = vmatprep.subr.mxu0 0.0
    %2364 = vmatpush1.xpose.msra.mxu0 0.0
    %2365 = vmatprep.subr.mxu0 0.0
    %2366 = vmatpush1.xpose.msra.mxu0 0.0
    %2367 = vmatprep.subr.mxu0 0.0
    %2368 = vmatpush1.xpose.msra.mxu0 0.0
    %2369 = vmatprep.subr.mxu0 0.0
    %2370 = vmatpush1.xpose.msra.mxu0 0.0
    %2371 = vmatprep.subr.mxu0 0.0
    %2372 = vmatpush1.xpose.msra.mxu0 0.0
    %2373 = vmatprep.subr.mxu0 0.0
    %2374 = vmatpush1.xpose.msra.mxu0 0.0
    %2375 = vmatprep.subr.mxu0 0.0
    %2376 = vmatpush1.xpose.msra.mxu0 0.0
    %2377 = vmatprep.subr.mxu0 0.0
    %2378 = vmatpush1.xpose.msra.mxu0 0.0
    %2379 = vmatprep.subr.mxu0 0.0
    %2380 = vmatpush1.xpose.msra.mxu0 %v2347
    %2381 = vmatprep.subr.mxu0 0.0
    %2382 = vmatpush2.xpose.msra.mxu0 0.0
    %2383 = vmatprep.subr.mxu0 0.0
    %2384 = vmatpush2.xpose.msra.mxu0 0.0
    %2385 = vmatprep.subr.mxu0 0.0
    %2386 = vmatpush2.xpose.msra.mxu0 0.0
    %2387 = vmatprep.subr.mxu0 0.0
    %2388 = vmatpush2.xpose.msra.mxu0 0.0
    %2389 = vmatprep.subr.mxu0 0.0
    %2390 = vmatpush2.xpose.msra.mxu0 0.0
    %2391 = vmatprep.subr.mxu0 0.0
    %2392 = vmatpush2.xpose.msra.mxu0 0.0
    %2393 = vmatprep.subr.mxu0 0.0
    %2394 = vmatpush2.xpose.msra.mxu0 0.0
    %2395 = vmatprep.subr.mxu0 0.0
    %2396 = vmatpush2.xpose.msra.mxu0 0.0
    %2397 = vmatprep.subr.mxu0 0.0
    %2398 = vmatpush2.xpose.msra.mxu0 0.0
    %2399 = vmatprep.subr.mxu0 0.0
    %2400 = vmatpush2.xpose.msra.mxu0 0.0
    %2401 = vmatprep.subr.mxu0 0.0
    %2402 = vmatpush2.xpose.msra.mxu0 0.0
    %2403 = vmatprep.subr.mxu0 0.0
    %2404 = vmatpush2.xpose.msra.mxu0 0.0
    %2405 = vmatprep.subr.mxu0 0.0
    %2406 = vmatpush2.xpose.msra.mxu0 0.0
    %2407 = vmatprep.subr.mxu0 0.0
    %2408 = vmatpush2.xpose.msra.mxu0 0.0
    %2409 = vmatprep.subr.mxu0 0.0
    %2410 = vmatpush2.xpose.msra.mxu0 0.0
    %2411 = vmatprep.subr.mxu0 0.0
    %2412 = vmatpush2.xpose.msra.mxu0 0.0
    %2413 = vmatprep.mubr.f32.mxu0 0.0
    %2414 = vmatmul.mubr.f32.gmra.mxu0 %v2345
    %v2415 = vpop.f32.mrf.mxu0
    %v2416 = vadd.f32 %v481, %v2415
    %v2417 = vpop.f32.mrf.mxu0
    %2418 = vdwg.mxu0
    %2419 = vrot.lane.b32.xlu0 %v2326, 96
    %v2420 = vpop.permute.xlu0 %2419
    %v2421 = vsel %vm490, %v2326, 0
    %v2423 = vsel %vm490, %v2420, 0
    %2425 = vmatprep.subr.mxu0 0.0
    %2426 = vmatpush1.xpose.msra.mxu0 0.0
    %2427 = vmatprep.subr.mxu0 0.0
    %2428 = vmatpush1.xpose.msra.mxu0 0.0
    %2429 = vmatprep.subr.mxu0 0.0
    %2430 = vmatpush1.xpose.msra.mxu0 0.0
    %2431 = vmatprep.subr.mxu0 0.0
    %2432 = vmatpush1.xpose.msra.mxu0 0.0
    %2433 = vmatprep.subr.mxu0 0.0
    %2434 = vmatpush1.xpose.msra.mxu0 0.0
    %2435 = vmatprep.subr.mxu0 0.0
    %2436 = vmatpush1.xpose.msra.mxu0 0.0
    %2437 = vmatprep.subr.mxu0 0.0
    %2438 = vmatpush1.xpose.msra.mxu0 0.0
    %2439 = vmatprep.subr.mxu0 0.0
    %2440 = vmatpush1.xpose.msra.mxu0 0.0
    %2441 = vmatprep.subr.mxu0 0.0
    %2442 = vmatpush1.xpose.msra.mxu0 0.0
    %2443 = vmatprep.subr.mxu0 0.0
    %2444 = vmatpush1.xpose.msra.mxu0 0.0
    %2445 = vmatprep.subr.mxu0 0.0
    %2446 = vmatpush1.xpose.msra.mxu0 0.0
    %2447 = vmatprep.subr.mxu0 0.0
    %2448 = vmatpush1.xpose.msra.mxu0 0.0
    %2449 = vmatprep.subr.mxu0 0.0
    %2450 = vmatpush1.xpose.msra.mxu0 0.0
    %2451 = vmatprep.subr.mxu0 0.0
    %2452 = vmatpush1.xpose.msra.mxu0 0.0
    %2453 = vmatprep.subr.mxu0 0.0
    %2454 = vmatpush1.xpose.msra.mxu0 0.0
    %2455 = vmatprep.subr.mxu0 0.0
    %2456 = vmatpush1.xpose.msra.mxu0 %v2423
    %2457 = vmatprep.subr.mxu0 0.0
    %2458 = vmatpush2.xpose.msra.mxu0 0.0
    %2459 = vmatprep.subr.mxu0 0.0
    %2460 = vmatpush2.xpose.msra.mxu0 0.0
    %2461 = vmatprep.subr.mxu0 0.0
    %2462 = vmatpush2.xpose.msra.mxu0 0.0
    %2463 = vmatprep.subr.mxu0 0.0
    %2464 = vmatpush2.xpose.msra.mxu0 0.0
    %2465 = vmatprep.subr.mxu0 0.0
    %2466 = vmatpush2.xpose.msra.mxu0 0.0
    %2467 = vmatprep.subr.mxu0 0.0
    %2468 = vmatpush2.xpose.msra.mxu0 0.0
    %2469 = vmatprep.subr.mxu0 0.0
    %2470 = vmatpush2.xpose.msra.mxu0 0.0
    %2471 = vmatprep.subr.mxu0 0.0
    %2472 = vmatpush2.xpose.msra.mxu0 0.0
    %2473 = vmatprep.subr.mxu0 0.0
    %2474 = vmatpush2.xpose.msra.mxu0 0.0
    %2475 = vmatprep.subr.mxu0 0.0
    %2476 = vmatpush2.xpose.msra.mxu0 0.0
    %2477 = vmatprep.subr.mxu0 0.0
    %2478 = vmatpush2.xpose.msra.mxu0 0.0
    %2479 = vmatprep.subr.mxu0 0.0
    %2480 = vmatpush2.xpose.msra.mxu0 0.0
    %2481 = vmatprep.subr.mxu0 0.0
    %2482 = vmatpush2.xpose.msra.mxu0 0.0
    %2483 = vmatprep.subr.mxu0 0.0
    %2484 = vmatpush2.xpose.msra.mxu0 0.0
    %2485 = vmatprep.subr.mxu0 0.0
    %2486 = vmatpush2.xpose.msra.mxu0 0.0
    %2487 = vmatprep.subr.mxu0 0.0
    %2488 = vmatpush2.xpose.msra.mxu0 0.0
    %2489 = vmatprep.mubr.f32.mxu0 0.0
    %2490 = vmatmul.mubr.f32.gmra.mxu0 %v2421
    %v2491 = vpop.f32.mrf.mxu0
    %v2492 = vadd.f32 %v485, %v2491
    %v2493 = vpop.f32.mrf.mxu0
    %2494 = vdwg.mxu0
    %2495 = vrot.lane.b32.xlu0 %v2332, 96
    %v2496 = vpop.permute.xlu0 %2495
    %v2497 = vsel %vm490, %v2332, 0
    %v2499 = vsel %vm490, %v2496, 0
    %2501 = vmatprep.subr.mxu0 0.0
    %2502 = vmatpush1.xpose.msra.mxu0 0.0
    %2503 = vmatprep.subr.mxu0 0.0
    %2504 = vmatpush1.xpose.msra.mxu0 0.0
    %2505 = vmatprep.subr.mxu0 0.0
    %2506 = vmatpush1.xpose.msra.mxu0 0.0
    %2507 = vmatprep.subr.mxu0 0.0
    %2508 = vmatpush1.xpose.msra.mxu0 0.0
    %2509 = vmatprep.subr.mxu0 0.0
    %2510 = vmatpush1.xpose.msra.mxu0 0.0
    %2511 = vmatprep.subr.mxu0 0.0
    %2512 = vmatpush1.xpose.msra.mxu0 0.0
    %2513 = vmatprep.subr.mxu0 0.0
    %2514 = vmatpush1.xpose.msra.mxu0 0.0
    %2515 = vmatprep.subr.mxu0 0.0
    %2516 = vmatpush1.xpose.msra.mxu0 0.0
    %2517 = vmatprep.subr.mxu0 0.0
    %2518 = vmatpush1.xpose.msra.mxu0 0.0
    %2519 = vmatprep.subr.mxu0 0.0
    %2520 = vmatpush1.xpose.msra.mxu0 0.0
    %2521 = vmatprep.subr.mxu0 0.0
    %2522 = vmatpush1.xpose.msra.mxu0 0.0
    %2523 = vmatprep.subr.mxu0 0.0
    %2524 = vmatpush1.xpose.msra.mxu0 0.0
    %2525 = vmatprep.subr.mxu0 0.0
    %2526 = vmatpush1.xpose.msra.mxu0 0.0
    %2527 = vmatprep.subr.mxu0 0.0
    %2528 = vmatpush1.xpose.msra.mxu0 0.0
    %2529 = vmatprep.subr.mxu0 0.0
    %2530 = vmatpush1.xpose.msra.mxu0 0.0
    %2531 = vmatprep.subr.mxu0 0.0
    %2532 = vmatpush1.xpose.msra.mxu0 %v2499
    %2533 = vmatprep.subr.mxu0 0.0
    %2534 = vmatpush2.xpose.msra.mxu0 0.0
    %2535 = vmatprep.subr.mxu0 0.0
    %2536 = vmatpush2.xpose.msra.mxu0 0.0
    %2537 = vmatprep.subr.mxu0 0.0
    %2538 = vmatpush2.xpose.msra.mxu0 0.0
    %2539 = vmatprep.subr.mxu0 0.0
    %2540 = vmatpush2.xpose.msra.mxu0 0.0
    %2541 = vmatprep.subr.mxu0 0.0
    %2542 = vmatpush2.xpose.msra.mxu0 0.0
    %2543 = vmatprep.subr.mxu0 0.0
    %2544 = vmatpush2.xpose.msra.mxu0 0.0
    %2545 = vmatprep.subr.mxu0 0.0
    %2546 = vmatpush2.xpose.msra.mxu0 0.0
    %2547 = vmatprep.subr.mxu0 0.0
    %2548 = vmatpush2.xpose.msra.mxu0 0.0
    %2549 = vmatprep.subr.mxu0 0.0
    %2550 = vmatpush2.xpose.msra.mxu0 0.0
    %2551 = vmatprep.subr.mxu0 0.0
    %2552 = vmatpush2.xpose.msra.mxu0 0.0
    %2553 = vmatprep.subr.mxu0 0.0
    %2554 = vmatpush2.xpose.msra.mxu0 0.0
    %2555 = vmatprep.subr.mxu0 0.0
    %2556 = vmatpush2.xpose.msra.mxu0 0.0
    %2557 = vmatprep.subr.mxu0 0.0
    %2558 = vmatpush2.xpose.msra.mxu0 0.0
    %2559 = vmatprep.subr.mxu0 0.0
    %2560 = vmatpush2.xpose.msra.mxu0 0.0
    %2561 = vmatprep.subr.mxu0 0.0
    %2562 = vmatpush2.xpose.msra.mxu0 0.0
    %2563 = vmatprep.subr.mxu0 0.0
    %2564 = vmatpush2.xpose.msra.mxu0 0.0
    %2565 = vmatprep.mubr.f32.mxu0 0.0
    %2566 = vmatmul.mubr.f32.gmra.mxu0 %v2497
    %v2567 = vpop.f32.mrf.mxu0
    %v2568 = vadd.f32 %v481, %v2567
    %v2569 = vpop.f32.mrf.mxu0
    %2570 = vdwg.mxu0
    %2571 = vrot.lane.b32.xlu0 %v2334, 96
    %v2572 = vpop.permute.xlu0 %2571
    %v2573 = vsel %vm490, %v2334, 0
    %v2575 = vsel %vm490, %v2572, 0
    %2577 = vmatprep.subr.mxu0 0.0
    %2578 = vmatpush1.xpose.msra.mxu0 0.0
    %2579 = vmatprep.subr.mxu0 0.0
    %2580 = vmatpush1.xpose.msra.mxu0 0.0
    %2581 = vmatprep.subr.mxu0 0.0
    %2582 = vmatpush1.xpose.msra.mxu0 0.0
    %2583 = vmatprep.subr.mxu0 0.0
    %2584 = vmatpush1.xpose.msra.mxu0 0.0
    %2585 = vmatprep.subr.mxu0 0.0
    %2586 = vmatpush1.xpose.msra.mxu0 0.0
    %2587 = vmatprep.subr.mxu0 0.0
    %2588 = vmatpush1.xpose.msra.mxu0 0.0
    %2589 = vmatprep.subr.mxu0 0.0
    %2590 = vmatpush1.xpose.msra.mxu0 0.0
    %2591 = vmatprep.subr.mxu0 0.0
    %2592 = vmatpush1.xpose.msra.mxu0 0.0
    %2593 = vmatprep.subr.mxu0 0.0
    %2594 = vmatpush1.xpose.msra.mxu0 0.0
    %2595 = vmatprep.subr.mxu0 0.0
    %2596 = vmatpush1.xpose.msra.mxu0 0.0
    %2597 = vmatprep.subr.mxu0 0.0
    %2598 = vmatpush1.xpose.msra.mxu0 0.0
    %2599 = vmatprep.subr.mxu0 0.0
    %2600 = vmatpush1.xpose.msra.mxu0 0.0
    %2601 = vmatprep.subr.mxu0 0.0
    %2602 = vmatpush1.xpose.msra.mxu0 0.0
    %2603 = vmatprep.subr.mxu0 0.0
    %2604 = vmatpush1.xpose.msra.mxu0 0.0
    %2605 = vmatprep.subr.mxu0 0.0
    %2606 = vmatpush1.xpose.msra.mxu0 0.0
    %2607 = vmatprep.subr.mxu0 0.0
    %2608 = vmatpush1.xpose.msra.mxu0 %v2575
    %2609 = vmatprep.subr.mxu0 0.0
    %2610 = vmatpush2.xpose.msra.mxu0 0.0
    %2611 = vmatprep.subr.mxu0 0.0
    %2612 = vmatpush2.xpose.msra.mxu0 0.0
    %2613 = vmatprep.subr.mxu0 0.0
    %2614 = vmatpush2.xpose.msra.mxu0 0.0
    %2615 = vmatprep.subr.mxu0 0.0
    %2616 = vmatpush2.xpose.msra.mxu0 0.0
    %2617 = vmatprep.subr.mxu0 0.0
    %2618 = vmatpush2.xpose.msra.mxu0 0.0
    %2619 = vmatprep.subr.mxu0 0.0
    %2620 = vmatpush2.xpose.msra.mxu0 0.0
    %2621 = vmatprep.subr.mxu0 0.0
    %2622 = vmatpush2.xpose.msra.mxu0 0.0
    %2623 = vmatprep.subr.mxu0 0.0
    %2624 = vmatpush2.xpose.msra.mxu0 0.0
    %2625 = vmatprep.subr.mxu0 0.0
    %2626 = vmatpush2.xpose.msra.mxu0 0.0
    %2627 = vmatprep.subr.mxu0 0.0
    %2628 = vmatpush2.xpose.msra.mxu0 0.0
    %2629 = vmatprep.subr.mxu0 0.0
    %2630 = vmatpush2.xpose.msra.mxu0 0.0
    %2631 = vmatprep.subr.mxu0 0.0
    %2632 = vmatpush2.xpose.msra.mxu0 0.0
    %2633 = vmatprep.subr.mxu0 0.0
    %2634 = vmatpush2.xpose.msra.mxu0 0.0
    %2635 = vmatprep.subr.mxu0 0.0
    %2636 = vmatpush2.xpose.msra.mxu0 0.0
    %2637 = vmatprep.subr.mxu0 0.0
    %2638 = vmatpush2.xpose.msra.mxu0 0.0
    %2639 = vmatprep.subr.mxu0 0.0
    %2640 = vmatpush2.xpose.msra.mxu0 0.0
    %2641 = vmatprep.mubr.f32.mxu0 0.0
    %2642 = vmatmul.mubr.f32.gmra.mxu0 %v2573
    %v2643 = vpop.f32.mrf.mxu0
    %v2644 = vadd.f32 %v485, %v2643
    %v2645 = vpop.f32.mrf.mxu0
    %2646 = vdwg.mxu0
    %2647 = vrot.lane.b32.xlu0 %v2336, 96
    %v2648 = vpop.permute.xlu0 %2647
    %v2649 = vsel %vm490, %v2336, 0
    %v2651 = vsel %vm490, %v2648, 0
    %2653 = vmatprep.subr.mxu0 0.0
    %2654 = vmatpush1.xpose.msra.mxu0 0.0
    %2655 = vmatprep.subr.mxu0 0.0
    %2656 = vmatpush1.xpose.msra.mxu0 0.0
    %2657 = vmatprep.subr.mxu0 0.0
    %2658 = vmatpush1.xpose.msra.mxu0 0.0
    %2659 = vmatprep.subr.mxu0 0.0
    %2660 = vmatpush1.xpose.msra.mxu0 0.0
    %2661 = vmatprep.subr.mxu0 0.0
    %2662 = vmatpush1.xpose.msra.mxu0 0.0
    %2663 = vmatprep.subr.mxu0 0.0
    %2664 = vmatpush1.xpose.msra.mxu0 0.0
    %2665 = vmatprep.subr.mxu0 0.0
    %2666 = vmatpush1.xpose.msra.mxu0 0.0
    %2667 = vmatprep.subr.mxu0 0.0
    %2668 = vmatpush1.xpose.msra.mxu0 0.0
    %2669 = vmatprep.subr.mxu0 0.0
    %2670 = vmatpush1.xpose.msra.mxu0 0.0
    %2671 = vmatprep.subr.mxu0 0.0
    %2672 = vmatpush1.xpose.msra.mxu0 0.0
    %2673 = vmatprep.subr.mxu0 0.0
    %2674 = vmatpush1.xpose.msra.mxu0 0.0
    %2675 = vmatprep.subr.mxu0 0.0
    %2676 = vmatpush1.xpose.msra.mxu0 0.0
    %2677 = vmatprep.subr.mxu0 0.0
    %2678 = vmatpush1.xpose.msra.mxu0 0.0
    %2679 = vmatprep.subr.mxu0 0.0
    %2680 = vmatpush1.xpose.msra.mxu0 0.0
    %2681 = vmatprep.subr.mxu0 0.0
    %2682 = vmatpush1.xpose.msra.mxu0 0.0
    %2683 = vmatprep.subr.mxu0 0.0
    %2684 = vmatpush1.xpose.msra.mxu0 %v2651
    %2685 = vmatprep.subr.mxu0 0.0
    %2686 = vmatpush2.xpose.msra.mxu0 0.0
    %2687 = vmatprep.subr.mxu0 0.0
    %2688 = vmatpush2.xpose.msra.mxu0 0.0
    %2689 = vmatprep.subr.mxu0 0.0
    %2690 = vmatpush2.xpose.msra.mxu0 0.0
    %2691 = vmatprep.subr.mxu0 0.0
    %2692 = vmatpush2.xpose.msra.mxu0 0.0
    %2693 = vmatprep.subr.mxu0 0.0
    %2694 = vmatpush2.xpose.msra.mxu0 0.0
    %2695 = vmatprep.subr.mxu0 0.0
    %2696 = vmatpush2.xpose.msra.mxu0 0.0
    %2697 = vmatprep.subr.mxu0 0.0
    %2698 = vmatpush2.xpose.msra.mxu0 0.0
    %2699 = vmatprep.subr.mxu0 0.0
    %2700 = vmatpush2.xpose.msra.mxu0 0.0
    %2701 = vmatprep.subr.mxu0 0.0
    %2702 = vmatpush2.xpose.msra.mxu0 0.0
    %2703 = vmatprep.subr.mxu0 0.0
    %2704 = vmatpush2.xpose.msra.mxu0 0.0
    %2705 = vmatprep.subr.mxu0 0.0
    %2706 = vmatpush2.xpose.msra.mxu0 0.0
    %2707 = vmatprep.subr.mxu0 0.0
    %2708 = vmatpush2.xpose.msra.mxu0 0.0
    %2709 = vmatprep.subr.mxu0 0.0
    %2710 = vmatpush2.xpose.msra.mxu0 0.0
    %2711 = vmatprep.subr.mxu0 0.0
    %2712 = vmatpush2.xpose.msra.mxu0 0.0
    %2713 = vmatprep.subr.mxu0 0.0
    %2714 = vmatpush2.xpose.msra.mxu0 0.0
    %2715 = vmatprep.subr.mxu0 0.0
    %2716 = vmatpush2.xpose.msra.mxu0 0.0
    %2717 = vmatprep.mubr.f32.mxu0 0.0
    %2718 = vmatmul.mubr.f32.gmra.mxu0 %v2649
    %v2719 = vpop.f32.mrf.mxu0
    %v2720 = vadd.f32 %v481, %v2719
    %v2721 = vpop.f32.mrf.mxu0
    %2722 = vdwg.mxu0
    %2723 = vrot.lane.b32.xlu0 %v2338, 96
    %v2724 = vpop.permute.xlu0 %2723
    %v2725 = vsel %vm490, %v2338, 0
    %v2727 = vsel %vm490, %v2724, 0
    %2729 = vmatprep.subr.mxu0 0.0
    %2730 = vmatpush1.xpose.msra.mxu0 0.0
    %2731 = vmatprep.subr.mxu0 0.0
    %2732 = vmatpush1.xpose.msra.mxu0 0.0
    %2733 = vmatprep.subr.mxu0 0.0
    %2734 = vmatpush1.xpose.msra.mxu0 0.0
    %2735 = vmatprep.subr.mxu0 0.0
    %2736 = vmatpush1.xpose.msra.mxu0 0.0
    %2737 = vmatprep.subr.mxu0 0.0
    %2738 = vmatpush1.xpose.msra.mxu0 0.0
    %2739 = vmatprep.subr.mxu0 0.0
    %2740 = vmatpush1.xpose.msra.mxu0 0.0
    %2741 = vmatprep.subr.mxu0 0.0
    %2742 = vmatpush1.xpose.msra.mxu0 0.0
    %2743 = vmatprep.subr.mxu0 0.0
    %2744 = vmatpush1.xpose.msra.mxu0 0.0
    %2745 = vmatprep.subr.mxu0 0.0
    %2746 = vmatpush1.xpose.msra.mxu0 0.0
    %2747 = vmatprep.subr.mxu0 0.0
    %2748 = vmatpush1.xpose.msra.mxu0 0.0
    %2749 = vmatprep.subr.mxu0 0.0
    %2750 = vmatpush1.xpose.msra.mxu0 0.0
    %2751 = vmatprep.subr.mxu0 0.0
    %2752 = vmatpush1.xpose.msra.mxu0 0.0
    %2753 = vmatprep.subr.mxu0 0.0
    %2754 = vmatpush1.xpose.msra.mxu0 0.0
    %2755 = vmatprep.subr.mxu0 0.0
    %2756 = vmatpush1.xpose.msra.mxu0 0.0
    %2757 = vmatprep.subr.mxu0 0.0
    %2758 = vmatpush1.xpose.msra.mxu0 0.0
    %2759 = vmatprep.subr.mxu0 0.0
    %2760 = vmatpush1.xpose.msra.mxu0 %v2727
    %2761 = vmatprep.subr.mxu0 0.0
    %2762 = vmatpush2.xpose.msra.mxu0 0.0
    %2763 = vmatprep.subr.mxu0 0.0
    %2764 = vmatpush2.xpose.msra.mxu0 0.0
    %2765 = vmatprep.subr.mxu0 0.0
    %2766 = vmatpush2.xpose.msra.mxu0 0.0
    %2767 = vmatprep.subr.mxu0 0.0
    %2768 = vmatpush2.xpose.msra.mxu0 0.0
    %2769 = vmatprep.subr.mxu0 0.0
    %2770 = vmatpush2.xpose.msra.mxu0 0.0
    %2771 = vmatprep.subr.mxu0 0.0
    %2772 = vmatpush2.xpose.msra.mxu0 0.0
    %2773 = vmatprep.subr.mxu0 0.0
    %2774 = vmatpush2.xpose.msra.mxu0 0.0
    %2775 = vmatprep.subr.mxu0 0.0
    %2776 = vmatpush2.xpose.msra.mxu0 0.0
    %2777 = vmatprep.subr.mxu0 0.0
    %2778 = vmatpush2.xpose.msra.mxu0 0.0
    %2779 = vmatprep.subr.mxu0 0.0
    %2780 = vmatpush2.xpose.msra.mxu0 0.0
    %2781 = vmatprep.subr.mxu0 0.0
    %2782 = vmatpush2.xpose.msra.mxu0 0.0
    %2783 = vmatprep.subr.mxu0 0.0
    %2784 = vmatpush2.xpose.msra.mxu0 0.0
    %2785 = vmatprep.subr.mxu0 0.0
    %2786 = vmatpush2.xpose.msra.mxu0 0.0
    %2787 = vmatprep.subr.mxu0 0.0
    %2788 = vmatpush2.xpose.msra.mxu0 0.0
    %2789 = vmatprep.subr.mxu0 0.0
    %2790 = vmatpush2.xpose.msra.mxu0 0.0
    %2791 = vmatprep.subr.mxu0 0.0
    %2792 = vmatpush2.xpose.msra.mxu0 0.0
    %2793 = vmatprep.mubr.f32.mxu0 0.0
    %2794 = vmatmul.mubr.f32.gmra.mxu0 %v2725
    %v2795 = vpop.f32.mrf.mxu0
    %v2796 = vadd.f32 %v485, %v2795
    %v2797 = vpop.f32.mrf.mxu0
    %2798 = vdwg.mxu0
    %2799 = vrot.lane.b32.xlu0 %v2340, 96
    %v2800 = vpop.permute.xlu0 %2799
    %v2801 = vsel %vm490, %v2340, 0
    %v2803 = vsel %vm490, %v2800, 0
    %2805 = vmatprep.subr.mxu0 0.0
    %2806 = vmatpush1.xpose.msra.mxu0 0.0
    %2807 = vmatprep.subr.mxu0 0.0
    %2808 = vmatpush1.xpose.msra.mxu0 0.0
    %2809 = vmatprep.subr.mxu0 0.0
    %2810 = vmatpush1.xpose.msra.mxu0 0.0
    %2811 = vmatprep.subr.mxu0 0.0
    %2812 = vmatpush1.xpose.msra.mxu0 0.0
    %2813 = vmatprep.subr.mxu0 0.0
    %2814 = vmatpush1.xpose.msra.mxu0 0.0
    %2815 = vmatprep.subr.mxu0 0.0
    %2816 = vmatpush1.xpose.msra.mxu0 0.0
    %2817 = vmatprep.subr.mxu0 0.0
    %2818 = vmatpush1.xpose.msra.mxu0 0.0
    %2819 = vmatprep.subr.mxu0 0.0
    %2820 = vmatpush1.xpose.msra.mxu0 0.0
    %2821 = vmatprep.subr.mxu0 0.0
    %2822 = vmatpush1.xpose.msra.mxu0 0.0
    %2823 = vmatprep.subr.mxu0 0.0
    %2824 = vmatpush1.xpose.msra.mxu0 0.0
    %2825 = vmatprep.subr.mxu0 0.0
    %2826 = vmatpush1.xpose.msra.mxu0 0.0
    %2827 = vmatprep.subr.mxu0 0.0
    %2828 = vmatpush1.xpose.msra.mxu0 0.0
    %2829 = vmatprep.subr.mxu0 0.0
    %2830 = vmatpush1.xpose.msra.mxu0 0.0
    %2831 = vmatprep.subr.mxu0 0.0
    %2832 = vmatpush1.xpose.msra.mxu0 0.0
    %2833 = vmatprep.subr.mxu0 0.0
    %2834 = vmatpush1.xpose.msra.mxu0 0.0
    %2835 = vmatprep.subr.mxu0 0.0
    %2836 = vmatpush1.xpose.msra.mxu0 %v2803
    %2837 = vmatprep.subr.mxu0 0.0
    %2838 = vmatpush2.xpose.msra.mxu0 0.0
    %2839 = vmatprep.subr.mxu0 0.0
    %2840 = vmatpush2.xpose.msra.mxu0 0.0
    %2841 = vmatprep.subr.mxu0 0.0
    %2842 = vmatpush2.xpose.msra.mxu0 0.0
    %2843 = vmatprep.subr.mxu0 0.0
    %2844 = vmatpush2.xpose.msra.mxu0 0.0
    %2845 = vmatprep.subr.mxu0 0.0
    %2846 = vmatpush2.xpose.msra.mxu0 0.0
    %2847 = vmatprep.subr.mxu0 0.0
    %2848 = vmatpush2.xpose.msra.mxu0 0.0
    %2849 = vmatprep.subr.mxu0 0.0
    %2850 = vmatpush2.xpose.msra.mxu0 0.0
    %2851 = vmatprep.subr.mxu0 0.0
    %2852 = vmatpush2.xpose.msra.mxu0 0.0
    %2853 = vmatprep.subr.mxu0 0.0
    %2854 = vmatpush2.xpose.msra.mxu0 0.0
    %2855 = vmatprep.subr.mxu0 0.0
    %2856 = vmatpush2.xpose.msra.mxu0 0.0
    %2857 = vmatprep.subr.mxu0 0.0
    %2858 = vmatpush2.xpose.msra.mxu0 0.0
    %2859 = vmatprep.subr.mxu0 0.0
    %2860 = vmatpush2.xpose.msra.mxu0 0.0
    %2861 = vmatprep.subr.mxu0 0.0
    %2862 = vmatpush2.xpose.msra.mxu0 0.0
    %2863 = vmatprep.subr.mxu0 0.0
    %2864 = vmatpush2.xpose.msra.mxu0 0.0
    %2865 = vmatprep.subr.mxu0 0.0
    %2866 = vmatpush2.xpose.msra.mxu0 0.0
    %2867 = vmatprep.subr.mxu0 0.0
    %2868 = vmatpush2.xpose.msra.mxu0 0.0
    %2869 = vmatprep.mubr.f32.mxu0 0.0
    %2870 = vmatmul.mubr.f32.gmra.mxu0 %v2801
    %v2871 = vpop.f32.mrf.mxu0
    %v2872 = vadd.f32 %v481, %v2871
    %v2873 = vpop.f32.mrf.mxu0
    %2874 = vdwg.mxu0
    %2875 = vrot.lane.b32.xlu0 %v2342, 96
    %v2876 = vpop.permute.xlu0 %2875
    %v2877 = vsel %vm490, %v2342, 0
    %v2879 = vsel %vm490, %v2876, 0
    %2881 = vmatprep.subr.mxu0 0.0
    %2882 = vmatpush1.xpose.msra.mxu0 0.0
    %2883 = vmatprep.subr.mxu0 0.0
    %2884 = vmatpush1.xpose.msra.mxu0 0.0
    %2885 = vmatprep.subr.mxu0 0.0
    %2886 = vmatpush1.xpose.msra.mxu0 0.0
    %2887 = vmatprep.subr.mxu0 0.0
    %2888 = vmatpush1.xpose.msra.mxu0 0.0
    %2889 = vmatprep.subr.mxu0 0.0
    %2890 = vmatpush1.xpose.msra.mxu0 0.0
    %2891 = vmatprep.subr.mxu0 0.0
    %2892 = vmatpush1.xpose.msra.mxu0 0.0
    %2893 = vmatprep.subr.mxu0 0.0
    %2894 = vmatpush1.xpose.msra.mxu0 0.0
    %2895 = vmatprep.subr.mxu0 0.0
    %2896 = vmatpush1.xpose.msra.mxu0 0.0
    %2897 = vmatprep.subr.mxu0 0.0
    %2898 = vmatpush1.xpose.msra.mxu0 0.0
    %2899 = vmatprep.subr.mxu0 0.0
    %2900 = vmatpush1.xpose.msra.mxu0 0.0
    %2901 = vmatprep.subr.mxu0 0.0
    %2902 = vmatpush1.xpose.msra.mxu0 0.0
    %2903 = vmatprep.subr.mxu0 0.0
    %2904 = vmatpush1.xpose.msra.mxu0 0.0
    %2905 = vmatprep.subr.mxu0 0.0
    %2906 = vmatpush1.xpose.msra.mxu0 0.0
    %2907 = vmatprep.subr.mxu0 0.0
    %2908 = vmatpush1.xpose.msra.mxu0 0.0
    %2909 = vmatprep.subr.mxu0 0.0
    %2910 = vmatpush1.xpose.msra.mxu0 0.0
    %2911 = vmatprep.subr.mxu0 0.0
    %2912 = vmatpush1.xpose.msra.mxu0 %v2879
    %2913 = vmatprep.subr.mxu0 0.0
    %2914 = vmatpush2.xpose.msra.mxu0 0.0
    %2915 = vmatprep.subr.mxu0 0.0
    %2916 = vmatpush2.xpose.msra.mxu0 0.0
    %2917 = vmatprep.subr.mxu0 0.0
    %2918 = vmatpush2.xpose.msra.mxu0 0.0
    %2919 = vmatprep.subr.mxu0 0.0
    %2920 = vmatpush2.xpose.msra.mxu0 0.0
    %2921 = vmatprep.subr.mxu0 0.0
    %2922 = vmatpush2.xpose.msra.mxu0 0.0
    %2923 = vmatprep.subr.mxu0 0.0
    %2924 = vmatpush2.xpose.msra.mxu0 0.0
    %2925 = vmatprep.subr.mxu0 0.0
    %2926 = vmatpush2.xpose.msra.mxu0 0.0
    %2927 = vmatprep.subr.mxu0 0.0
    %2928 = vmatpush2.xpose.msra.mxu0 0.0
    %2929 = vmatprep.subr.mxu0 0.0
    %2930 = vmatpush2.xpose.msra.mxu0 0.0
    %2931 = vmatprep.subr.mxu0 0.0
    %2932 = vmatpush2.xpose.msra.mxu0 0.0
    %2933 = vmatprep.subr.mxu0 0.0
    %2934 = vmatpush2.xpose.msra.mxu0 0.0
    %2935 = vmatprep.subr.mxu0 0.0
    %2936 = vmatpush2.xpose.msra.mxu0 0.0
    %2937 = vmatprep.subr.mxu0 0.0
    %2938 = vmatpush2.xpose.msra.mxu0 0.0
    %2939 = vmatprep.subr.mxu0 0.0
    %2940 = vmatpush2.xpose.msra.mxu0 0.0
    %2941 = vmatprep.subr.mxu0 0.0
    %2942 = vmatpush2.xpose.msra.mxu0 0.0
    %2943 = vmatprep.subr.mxu0 0.0
    %2944 = vmatpush2.xpose.msra.mxu0 0.0
    %2945 = vmatprep.mubr.f32.mxu0 0.0
    %2946 = vmatmul.mubr.f32.gmra.mxu0 %v2877
    %v2947 = vpop.f32.mrf.mxu0
    %v2948 = vadd.f32 %v485, %v2947
    %v2949 = vpop.f32.mrf.mxu0
    %2950 = vdwg.mxu0
    %v2951 = vsel %vm490, %v2416, -inf
    %2952 = vmax.xlane.f32.xlu0 %v2951
    %v2953 = vpop.xlane.xlu0 %2952
    %v2954 = vsel %vm490, %v2492, -inf
    %2955 = vmax.xlane.f32.xlu0 %v2954
    %v2956 = vpop.xlane.xlu0 %2955
    %v2957 = vsel %vm490, %v2568, -inf
    %2958 = vmax.xlane.f32.xlu0 %v2957
    %v2959 = vpop.xlane.xlu0 %2958
    %v2960 = vsel %vm490, %v2644, -inf
    %2961 = vmax.xlane.f32.xlu0 %v2960
    %v2962 = vpop.xlane.xlu0 %2961
    %v2963 = vsel %vm490, %v2720, -inf
    %2964 = vmax.xlane.f32.xlu0 %v2963
    %v2965 = vpop.xlane.xlu0 %2964
    %v2966 = vsel %vm490, %v2796, -inf
    %2967 = vmax.xlane.f32.xlu0 %v2966
    %v2968 = vpop.xlane.xlu0 %2967
    %v2969 = vsel %vm490, %v2872, -inf
    %2970 = vmax.xlane.f32.xlu0 %v2969
    %v2971 = vpop.xlane.xlu0 %2970
    %v2972 = vsel %vm490, %v2948, -inf
    %2973 = vmax.xlane.f32.xlu0 %v2972
    %v2974 = vpop.xlane.xlu0 %2973
    %v2975 = vsub.f32 %v2416, %v2953
    %v2976 = vsub.f32 %v2492, %v2956
    %v2977 = vsub.f32 %v2568, %v2959
    %v2978 = vsub.f32 %v2644, %v2962
    %v2979 = vsub.f32 %v2720, %v2965
    %v2980 = vsub.f32 %v2796, %v2968
    %v2981 = vsub.f32 %v2872, %v2971
    %v2982 = vsub.f32 %v2948, %v2974
    %v2983 = vmul.f32 %v2975, 1.442695
    %v2984 = vpow.pop %v2983
    %v2985 = vmul.f32 %v2976, 1.442695
    %v2986 = vpow.pop %v2985
    %v2987 = vmul.f32 %v2977, 1.442695
    %v2988 = vpow.pop %v2987
    %v2989 = vmul.f32 %v2978, 1.442695
    %v2990 = vpow.pop %v2989
    %v2991 = vmul.f32 %v2979, 1.442695
    %v2992 = vpow.pop %v2991
    %v2993 = vmul.f32 %v2980, 1.442695
    %v2994 = vpow.pop %v2993
    %v2995 = vmul.f32 %v2981, 1.442695
    %v2996 = vpow.pop %v2995
    %v2997 = vmul.f32 %v2982, 1.442695
    %v2998 = vpow.pop %v2997
    %v2999 = vsel %vm490, %v2984, 0.0
    %3000 = vadd.xlane.f32.xlu0 %v2999
    %v3001 = vpop.xlane.xlu0 %3000
    %v3002 = vsel %vm490, %v2986, 0.0
    %3003 = vadd.xlane.f32.xlu0 %v3002
    %v3004 = vpop.xlane.xlu0 %3003
    %v3005 = vsel %vm490, %v2988, 0.0
    %3006 = vadd.xlane.f32.xlu0 %v3005
    %v3007 = vpop.xlane.xlu0 %3006
    %v3008 = vsel %vm490, %v2990, 0.0
    %3009 = vadd.xlane.f32.xlu0 %v3008
    %v3010 = vpop.xlane.xlu0 %3009
    %v3011 = vsel %vm490, %v2992, 0.0
    %3012 = vadd.xlane.f32.xlu0 %v3011
    %v3013 = vpop.xlane.xlu0 %3012
    %v3014 = vsel %vm490, %v2994, 0.0
    %3015 = vadd.xlane.f32.xlu0 %v3014
    %v3016 = vpop.xlane.xlu0 %3015
    %v3017 = vsel %vm490, %v2996, 0.0
    %3018 = vadd.xlane.f32.xlu0 %v3017
    %v3019 = vpop.xlane.xlu0 %3018
    %v3020 = vsel %vm490, %v2998, 0.0
    %3021 = vadd.xlane.f32.xlu0 %v3020
    %v3022 = vpop.xlane.xlu0 %3021
    %v3023 = vrcp.pop %v3001
    %v3024 = vrcp.pop %v3004
    %v3025 = vrcp.pop %v3007
    %v3026 = vrcp.pop %v3010
    %v3027 = vrcp.pop %v3013
    %v3028 = vrcp.pop %v3016
    %v3029 = vrcp.pop %v3019
    %v3030 = vrcp.pop %v3022
    %v3031 = vmul.f32 %v2984, %v3023
    %v3032 = vmul.f32 %v2986, %v3024
    %v3033 = vmul.f32 %v2988, %v3025
    %v3034 = vmul.f32 %v2990, %v3026
    %v3035 = vmul.f32 %v2992, %v3027
    %v3036 = vmul.f32 %v2994, %v3028
    %v3037 = vmul.f32 %v2996, %v3029
    %v3038 = vmul.f32 %v2998, %v3030
    %3039 = vrot.lane.b32.xlu0 %v2321, 64
    %v3040 = vpop.permute.xlu0 %3039
    %v3043 = vsel %vm490, %v3031, 0
    %3045 = vmatprep.subr.mxu0 0.0
    %3046 = vmatpush1.msra.mxu0 0.0
    %3047 = vmatprep.subr.mxu0 0.0
    %3048 = vmatpush1.msra.mxu0 0.0
    %3049 = vmatprep.subr.mxu0 0.0
    %3050 = vmatpush1.msra.mxu0 0.0
    %3051 = vmatprep.subr.mxu0 0.0
    %3052 = vmatpush1.msra.mxu0 0.0
    %3053 = vmatprep.subr.mxu0 0.0
    %3054 = vmatpush1.msra.mxu0 0.0
    %3055 = vmatprep.subr.mxu0 0.0
    %3056 = vmatpush1.msra.mxu0 0.0
    %3057 = vmatprep.subr.mxu0 0.0
    %3058 = vmatpush1.msra.mxu0 0.0
    %3059 = vmatprep.subr.mxu0 0.0
    %3060 = vmatpush1.msra.mxu0 0.0
    %3061 = vmatprep.subr.mxu0 0.0
    %3062 = vmatpush1.msra.mxu0 0.0
    %3063 = vmatprep.subr.mxu0 0.0
    %3064 = vmatpush1.msra.mxu0 0.0
    %3065 = vmatprep.subr.mxu0 0.0
    %3066 = vmatpush1.msra.mxu0 0.0
    %3067 = vmatprep.subr.mxu0 0.0
    %3068 = vmatpush1.msra.mxu0 0.0
    %3069 = vmatprep.subr.mxu0 0.0
    %3070 = vmatpush1.msra.mxu0 0.0
    %3071 = vmatprep.subr.mxu0 0.0
    %3072 = vmatpush1.msra.mxu0 0.0
    %3073 = vmatprep.subr.mxu0 0.0
    %3074 = vmatpush1.msra.mxu0 0.0
    %3075 = vmatprep.subr.mxu0 0.0
    %3076 = vmatpush1.msra.mxu0 %v3040
    %3077 = vmatprep.subr.mxu0 0.0
    %3078 = vmatpush2.msra.mxu0 0.0
    %3079 = vmatprep.subr.mxu0 0.0
    %3080 = vmatpush2.msra.mxu0 0.0
    %3081 = vmatprep.subr.mxu0 0.0
    %3082 = vmatpush2.msra.mxu0 0.0
    %3083 = vmatprep.subr.mxu0 0.0
    %3084 = vmatpush2.msra.mxu0 0.0
    %3085 = vmatprep.subr.mxu0 0.0
    %3086 = vmatpush2.msra.mxu0 0.0
    %3087 = vmatprep.subr.mxu0 0.0
    %3088 = vmatpush2.msra.mxu0 0.0
    %3089 = vmatprep.subr.mxu0 0.0
    %3090 = vmatpush2.msra.mxu0 0.0
    %3091 = vmatprep.subr.mxu0 0.0
    %3092 = vmatpush2.msra.mxu0 0.0
    %3093 = vmatprep.subr.mxu0 0.0
    %3094 = vmatpush2.msra.mxu0 0.0
    %3095 = vmatprep.subr.mxu0 0.0
    %3096 = vmatpush2.msra.mxu0 0.0
    %3097 = vmatprep.subr.mxu0 0.0
    %3098 = vmatpush2.msra.mxu0 0.0
    %3099 = vmatprep.subr.mxu0 0.0
    %3100 = vmatpush2.msra.mxu0 0.0
    %3101 = vmatprep.subr.mxu0 0.0
    %3102 = vmatpush2.msra.mxu0 0.0
    %3103 = vmatprep.subr.mxu0 0.0
    %3104 = vmatpush2.msra.mxu0 0.0
    %3105 = vmatprep.subr.mxu0 0.0
    %3106 = vmatpush2.msra.mxu0 0.0
    %3107 = vmatprep.subr.mxu0 0.0
    %3108 = vmatpush2.msra.mxu0 0.0
    %3109 = vmatprep.mubr.f32.mxu0 0.0
    %3110 = vmatmul.mubr.f32.gmra.mxu0 %v3043
    %v3111 = vpop.f32.mrf.mxu0
    %v3112 = vadd.f32 0.0, %v3111
    %v3113 = vpop.f32.mrf.mxu0
    %3114 = vdwg.mxu0
    %3115 = vrot.lane.b32.xlu0 %v2326, 64
    %v3116 = vpop.permute.xlu0 %3115
    %v3119 = vsel %vm490, %v3032, 0
    %3121 = vmatprep.subr.mxu0 0.0
    %3122 = vmatpush1.msra.mxu0 0.0
    %3123 = vmatprep.subr.mxu0 0.0
    %3124 = vmatpush1.msra.mxu0 0.0
    %3125 = vmatprep.subr.mxu0 0.0
    %3126 = vmatpush1.msra.mxu0 0.0
    %3127 = vmatprep.subr.mxu0 0.0
    %3128 = vmatpush1.msra.mxu0 0.0
    %3129 = vmatprep.subr.mxu0 0.0
    %3130 = vmatpush1.msra.mxu0 0.0
    %3131 = vmatprep.subr.mxu0 0.0
    %3132 = vmatpush1.msra.mxu0 0.0
    %3133 = vmatprep.subr.mxu0 0.0
    %3134 = vmatpush1.msra.mxu0 0.0
    %3135 = vmatprep.subr.mxu0 0.0
    %3136 = vmatpush1.msra.mxu0 0.0
    %3137 = vmatprep.subr.mxu0 0.0
    %3138 = vmatpush1.msra.mxu0 0.0
    %3139 = vmatprep.subr.mxu0 0.0
    %3140 = vmatpush1.msra.mxu0 0.0
    %3141 = vmatprep.subr.mxu0 0.0
    %3142 = vmatpush1.msra.mxu0 0.0
    %3143 = vmatprep.subr.mxu0 0.0
    %3144 = vmatpush1.msra.mxu0 0.0
    %3145 = vmatprep.subr.mxu0 0.0
    %3146 = vmatpush1.msra.mxu0 0.0
    %3147 = vmatprep.subr.mxu0 0.0
    %3148 = vmatpush1.msra.mxu0 0.0
    %3149 = vmatprep.subr.mxu0 0.0
    %3150 = vmatpush1.msra.mxu0 0.0
    %3151 = vmatprep.subr.mxu0 0.0
    %3152 = vmatpush1.msra.mxu0 %v3116
    %3153 = vmatprep.subr.mxu0 0.0
    %3154 = vmatpush2.msra.mxu0 0.0
    %3155 = vmatprep.subr.mxu0 0.0
    %3156 = vmatpush2.msra.mxu0 0.0
    %3157 = vmatprep.subr.mxu0 0.0
    %3158 = vmatpush2.msra.mxu0 0.0
    %3159 = vmatprep.subr.mxu0 0.0
    %3160 = vmatpush2.msra.mxu0 0.0
    %3161 = vmatprep.subr.mxu0 0.0
    %3162 = vmatpush2.msra.mxu0 0.0
    %3163 = vmatprep.subr.mxu0 0.0
    %3164 = vmatpush2.msra.mxu0 0.0
    %3165 = vmatprep.subr.mxu0 0.0
    %3166 = vmatpush2.msra.mxu0 0.0
    %3167 = vmatprep.subr.mxu0 0.0
    %3168 = vmatpush2.msra.mxu0 0.0
    %3169 = vmatprep.subr.mxu0 0.0
    %3170 = vmatpush2.msra.mxu0 0.0
    %3171 = vmatprep.subr.mxu0 0.0
    %3172 = vmatpush2.msra.mxu0 0.0
    %3173 = vmatprep.subr.mxu0 0.0
    %3174 = vmatpush2.msra.mxu0 0.0
    %3175 = vmatprep.subr.mxu0 0.0
    %3176 = vmatpush2.msra.mxu0 0.0
    %3177 = vmatprep.subr.mxu0 0.0
    %3178 = vmatpush2.msra.mxu0 0.0
    %3179 = vmatprep.subr.mxu0 0.0
    %3180 = vmatpush2.msra.mxu0 0.0
    %3181 = vmatprep.subr.mxu0 0.0
    %3182 = vmatpush2.msra.mxu0 0.0
    %3183 = vmatprep.subr.mxu0 0.0
    %3184 = vmatpush2.msra.mxu0 0.0
    %3185 = vmatprep.mubr.f32.mxu0 0.0
    %3186 = vmatmul.mubr.f32.gmra.mxu0 %v3119
    %v3187 = vpop.f32.mrf.mxu0
    %v3188 = vadd.f32 0.0, %v3187
    %v3189 = vpop.f32.mrf.mxu0
    %3190 = vdwg.mxu0
    %3191 = vrot.lane.b32.xlu0 %v2332, 64
    %v3192 = vpop.permute.xlu0 %3191
    %v3195 = vsel %vm490, %v3033, 0
    %3197 = vmatprep.subr.mxu0 0.0
    %3198 = vmatpush1.msra.mxu0 0.0
    %3199 = vmatprep.subr.mxu0 0.0
    %3200 = vmatpush1.msra.mxu0 0.0
    %3201 = vmatprep.subr.mxu0 0.0
    %3202 = vmatpush1.msra.mxu0 0.0
    %3203 = vmatprep.subr.mxu0 0.0
    %3204 = vmatpush1.msra.mxu0 0.0
    %3205 = vmatprep.subr.mxu0 0.0
    %3206 = vmatpush1.msra.mxu0 0.0
    %3207 = vmatprep.subr.mxu0 0.0
    %3208 = vmatpush1.msra.mxu0 0.0
    %3209 = vmatprep.subr.mxu0 0.0
    %3210 = vmatpush1.msra.mxu0 0.0
    %3211 = vmatprep.subr.mxu0 0.0
    %3212 = vmatpush1.msra.mxu0 0.0
    %3213 = vmatprep.subr.mxu0 0.0
    %3214 = vmatpush1.msra.mxu0 0.0
    %3215 = vmatprep.subr.mxu0 0.0
    %3216 = vmatpush1.msra.mxu0 0.0
    %3217 = vmatprep.subr.mxu0 0.0
    %3218 = vmatpush1.msra.mxu0 0.0
    %3219 = vmatprep.subr.mxu0 0.0
    %3220 = vmatpush1.msra.mxu0 0.0
    %3221 = vmatprep.subr.mxu0 0.0
    %3222 = vmatpush1.msra.mxu0 0.0
    %3223 = vmatprep.subr.mxu0 0.0
    %3224 = vmatpush1.msra.mxu0 0.0
    %3225 = vmatprep.subr.mxu0 0.0
    %3226 = vmatpush1.msra.mxu0 0.0
    %3227 = vmatprep.subr.mxu0 0.0
    %3228 = vmatpush1.msra.mxu0 %v3192
    %3229 = vmatprep.subr.mxu0 0.0
    %3230 = vmatpush2.msra.mxu0 0.0
    %3231 = vmatprep.subr.mxu0 0.0
    %3232 = vmatpush2.msra.mxu0 0.0
    %3233 = vmatprep.subr.mxu0 0.0
    %3234 = vmatpush2.msra.mxu0 0.0
    %3235 = vmatprep.subr.mxu0 0.0
    %3236 = vmatpush2.msra.mxu0 0.0
    %3237 = vmatprep.subr.mxu0 0.0
    %3238 = vmatpush2.msra.mxu0 0.0
    %3239 = vmatprep.subr.mxu0 0.0
    %3240 = vmatpush2.msra.mxu0 0.0
    %3241 = vmatprep.subr.mxu0 0.0
    %3242 = vmatpush2.msra.mxu0 0.0
    %3243 = vmatprep.subr.mxu0 0.0
    %3244 = vmatpush2.msra.mxu0 0.0
    %3245 = vmatprep.subr.mxu0 0.0
    %3246 = vmatpush2.msra.mxu0 0.0
    %3247 = vmatprep.subr.mxu0 0.0
    %3248 = vmatpush2.msra.mxu0 0.0
    %3249 = vmatprep.subr.mxu0 0.0
    %3250 = vmatpush2.msra.mxu0 0.0
    %3251 = vmatprep.subr.mxu0 0.0
    %3252 = vmatpush2.msra.mxu0 0.0
    %3253 = vmatprep.subr.mxu0 0.0
    %3254 = vmatpush2.msra.mxu0 0.0
    %3255 = vmatprep.subr.mxu0 0.0
    %3256 = vmatpush2.msra.mxu0 0.0
    %3257 = vmatprep.subr.mxu0 0.0
    %3258 = vmatpush2.msra.mxu0 0.0
    %3259 = vmatprep.subr.mxu0 0.0
    %3260 = vmatpush2.msra.mxu0 0.0
    %3261 = vmatprep.mubr.f32.mxu0 0.0
    %3262 = vmatmul.mubr.f32.gmra.mxu0 %v3195
    %v3263 = vpop.f32.mrf.mxu0
    %v3264 = vadd.f32 0.0, %v3263
    %v3265 = vpop.f32.mrf.mxu0
    %3266 = vdwg.mxu0
    %3267 = vrot.lane.b32.xlu0 %v2334, 64
    %v3268 = vpop.permute.xlu0 %3267
    %v3271 = vsel %vm490, %v3034, 0
    %3273 = vmatprep.subr.mxu0 0.0
    %3274 = vmatpush1.msra.mxu0 0.0
    %3275 = vmatprep.subr.mxu0 0.0
    %3276 = vmatpush1.msra.mxu0 0.0
    %3277 = vmatprep.subr.mxu0 0.0
    %3278 = vmatpush1.msra.mxu0 0.0
    %3279 = vmatprep.subr.mxu0 0.0
    %3280 = vmatpush1.msra.mxu0 0.0
    %3281 = vmatprep.subr.mxu0 0.0
    %3282 = vmatpush1.msra.mxu0 0.0
    %3283 = vmatprep.subr.mxu0 0.0
    %3284 = vmatpush1.msra.mxu0 0.0
    %3285 = vmatprep.subr.mxu0 0.0
    %3286 = vmatpush1.msra.mxu0 0.0
    %3287 = vmatprep.subr.mxu0 0.0
    %3288 = vmatpush1.msra.mxu0 0.0
    %3289 = vmatprep.subr.mxu0 0.0
    %3290 = vmatpush1.msra.mxu0 0.0
    %3291 = vmatprep.subr.mxu0 0.0
    %3292 = vmatpush1.msra.mxu0 0.0
    %3293 = vmatprep.subr.mxu0 0.0
    %3294 = vmatpush1.msra.mxu0 0.0
    %3295 = vmatprep.subr.mxu0 0.0
    %3296 = vmatpush1.msra.mxu0 0.0
    %3297 = vmatprep.subr.mxu0 0.0
    %3298 = vmatpush1.msra.mxu0 0.0
    %3299 = vmatprep.subr.mxu0 0.0
    %3300 = vmatpush1.msra.mxu0 0.0
    %3301 = vmatprep.subr.mxu0 0.0
    %3302 = vmatpush1.msra.mxu0 0.0
    %3303 = vmatprep.subr.mxu0 0.0
    %3304 = vmatpush1.msra.mxu0 %v3268
    %3305 = vmatprep.subr.mxu0 0.0
    %3306 = vmatpush2.msra.mxu0 0.0
    %3307 = vmatprep.subr.mxu0 0.0
    %3308 = vmatpush2.msra.mxu0 0.0
    %3309 = vmatprep.subr.mxu0 0.0
    %3310 = vmatpush2.msra.mxu0 0.0
    %3311 = vmatprep.subr.mxu0 0.0
    %3312 = vmatpush2.msra.mxu0 0.0
    %3313 = vmatprep.subr.mxu0 0.0
    %3314 = vmatpush2.msra.mxu0 0.0
    %3315 = vmatprep.subr.mxu0 0.0
    %3316 = vmatpush2.msra.mxu0 0.0
    %3317 = vmatprep.subr.mxu0 0.0
    %3318 = vmatpush2.msra.mxu0 0.0
    %3319 = vmatprep.subr.mxu0 0.0
    %3320 = vmatpush2.msra.mxu0 0.0
    %3321 = vmatprep.subr.mxu0 0.0
    %3322 = vmatpush2.msra.mxu0 0.0
    %3323 = vmatprep.subr.mxu0 0.0
    %3324 = vmatpush2.msra.mxu0 0.0
    %3325 = vmatprep.subr.mxu0 0.0
    %3326 = vmatpush2.msra.mxu0 0.0
    %3327 = vmatprep.subr.mxu0 0.0
    %3328 = vmatpush2.msra.mxu0 0.0
    %3329 = vmatprep.subr.mxu0 0.0
    %3330 = vmatpush2.msra.mxu0 0.0
    %3331 = vmatprep.subr.mxu0 0.0
    %3332 = vmatpush2.msra.mxu0 0.0
    %3333 = vmatprep.subr.mxu0 0.0
    %3334 = vmatpush2.msra.mxu0 0.0
    %3335 = vmatprep.subr.mxu0 0.0
    %3336 = vmatpush2.msra.mxu0 0.0
    %3337 = vmatprep.mubr.f32.mxu0 0.0
    %3338 = vmatmul.mubr.f32.gmra.mxu0 %v3271
    %v3339 = vpop.f32.mrf.mxu0
    %v3340 = vadd.f32 0.0, %v3339
    %v3341 = vpop.f32.mrf.mxu0
    %3342 = vdwg.mxu0
    %3343 = vrot.lane.b32.xlu0 %v2336, 64
    %v3344 = vpop.permute.xlu0 %3343
    %v3347 = vsel %vm490, %v3035, 0
    %3349 = vmatprep.subr.mxu0 0.0
    %3350 = vmatpush1.msra.mxu0 0.0
    %3351 = vmatprep.subr.mxu0 0.0
    %3352 = vmatpush1.msra.mxu0 0.0
    %3353 = vmatprep.subr.mxu0 0.0
    %3354 = vmatpush1.msra.mxu0 0.0
    %3355 = vmatprep.subr.mxu0 0.0
    %3356 = vmatpush1.msra.mxu0 0.0
    %3357 = vmatprep.subr.mxu0 0.0
    %3358 = vmatpush1.msra.mxu0 0.0
    %3359 = vmatprep.subr.mxu0 0.0
    %3360 = vmatpush1.msra.mxu0 0.0
    %3361 = vmatprep.subr.mxu0 0.0
    %3362 = vmatpush1.msra.mxu0 0.0
    %3363 = vmatprep.subr.mxu0 0.0
    %3364 = vmatpush1.msra.mxu0 0.0
    %3365 = vmatprep.subr.mxu0 0.0
    %3366 = vmatpush1.msra.mxu0 0.0
    %3367 = vmatprep.subr.mxu0 0.0
    %3368 = vmatpush1.msra.mxu0 0.0
    %3369 = vmatprep.subr.mxu0 0.0
    %3370 = vmatpush1.msra.mxu0 0.0
    %3371 = vmatprep.subr.mxu0 0.0
    %3372 = vmatpush1.msra.mxu0 0.0
    %3373 = vmatprep.subr.mxu0 0.0
    %3374 = vmatpush1.msra.mxu0 0.0
    %3375 = vmatprep.subr.mxu0 0.0
    %3376 = vmatpush1.msra.mxu0 0.0
    %3377 = vmatprep.subr.mxu0 0.0
    %3378 = vmatpush1.msra.mxu0 0.0
    %3379 = vmatprep.subr.mxu0 0.0
    %3380 = vmatpush1.msra.mxu0 %v3344
    %3381 = vmatprep.subr.mxu0 0.0
    %3382 = vmatpush2.msra.mxu0 0.0
    %3383 = vmatprep.subr.mxu0 0.0
    %3384 = vmatpush2.msra.mxu0 0.0
    %3385 = vmatprep.subr.mxu0 0.0
    %3386 = vmatpush2.msra.mxu0 0.0
    %3387 = vmatprep.subr.mxu0 0.0
    %3388 = vmatpush2.msra.mxu0 0.0
    %3389 = vmatprep.subr.mxu0 0.0
    %3390 = vmatpush2.msra.mxu0 0.0
    %3391 = vmatprep.subr.mxu0 0.0
    %3392 = vmatpush2.msra.mxu0 0.0
    %3393 = vmatprep.subr.mxu0 0.0
    %3394 = vmatpush2.msra.mxu0 0.0
    %3395 = vmatprep.subr.mxu0 0.0
    %3396 = vmatpush2.msra.mxu0 0.0
    %3397 = vmatprep.subr.mxu0 0.0
    %3398 = vmatpush2.msra.mxu0 0.0
    %3399 = vmatprep.subr.mxu0 0.0
    %3400 = vmatpush2.msra.mxu0 0.0
    %3401 = vmatprep.subr.mxu0 0.0
    %3402 = vmatpush2.msra.mxu0 0.0
    %3403 = vmatprep.subr.mxu0 0.0
    %3404 = vmatpush2.msra.mxu0 0.0
    %3405 = vmatprep.subr.mxu0 0.0
    %3406 = vmatpush2.msra.mxu0 0.0
    %3407 = vmatprep.subr.mxu0 0.0
    %3408 = vmatpush2.msra.mxu0 0.0
    %3409 = vmatprep.subr.mxu0 0.0
    %3410 = vmatpush2.msra.mxu0 0.0
    %3411 = vmatprep.subr.mxu0 0.0
    %3412 = vmatpush2.msra.mxu0 0.0
    %3413 = vmatprep.mubr.f32.mxu0 0.0
    %3414 = vmatmul.mubr.f32.gmra.mxu0 %v3347
    %v3415 = vpop.f32.mrf.mxu0
    %v3416 = vadd.f32 0.0, %v3415
    %v3417 = vpop.f32.mrf.mxu0
    %3418 = vdwg.mxu0
    %3419 = vrot.lane.b32.xlu0 %v2338, 64
    %v3420 = vpop.permute.xlu0 %3419
    %v3423 = vsel %vm490, %v3036, 0
    %3425 = vmatprep.subr.mxu0 0.0
    %3426 = vmatpush1.msra.mxu0 0.0
    %3427 = vmatprep.subr.mxu0 0.0
    %3428 = vmatpush1.msra.mxu0 0.0
    %3429 = vmatprep.subr.mxu0 0.0
    %3430 = vmatpush1.msra.mxu0 0.0
    %3431 = vmatprep.subr.mxu0 0.0
    %3432 = vmatpush1.msra.mxu0 0.0
    %3433 = vmatprep.subr.mxu0 0.0
    %3434 = vmatpush1.msra.mxu0 0.0
    %3435 = vmatprep.subr.mxu0 0.0
    %3436 = vmatpush1.msra.mxu0 0.0
    %3437 = vmatprep.subr.mxu0 0.0
    %3438 = vmatpush1.msra.mxu0 0.0
    %3439 = vmatprep.subr.mxu0 0.0
    %3440 = vmatpush1.msra.mxu0 0.0
    %3441 = vmatprep.subr.mxu0 0.0
    %3442 = vmatpush1.msra.mxu0 0.0
    %3443 = vmatprep.subr.mxu0 0.0
    %3444 = vmatpush1.msra.mxu0 0.0
    %3445 = vmatprep.subr.mxu0 0.0
    %3446 = vmatpush1.msra.mxu0 0.0
    %3447 = vmatprep.subr.mxu0 0.0
    %3448 = vmatpush1.msra.mxu0 0.0
    %3449 = vmatprep.subr.mxu0 0.0
    %3450 = vmatpush1.msra.mxu0 0.0
    %3451 = vmatprep.subr.mxu0 0.0
    %3452 = vmatpush1.msra.mxu0 0.0
    %3453 = vmatprep.subr.mxu0 0.0
    %3454 = vmatpush1.msra.mxu0 0.0
    %3455 = vmatprep.subr.mxu0 0.0
    %3456 = vmatpush1.msra.mxu0 %v3420
    %3457 = vmatprep.subr.mxu0 0.0
    %3458 = vmatpush2.msra.mxu0 0.0
    %3459 = vmatprep.subr.mxu0 0.0
    %3460 = vmatpush2.msra.mxu0 0.0
    %3461 = vmatprep.subr.mxu0 0.0
    %3462 = vmatpush2.msra.mxu0 0.0
    %3463 = vmatprep.subr.mxu0 0.0
    %3464 = vmatpush2.msra.mxu0 0.0
    %3465 = vmatprep.subr.mxu0 0.0
    %3466 = vmatpush2.msra.mxu0 0.0
    %3467 = vmatprep.subr.mxu0 0.0
    %3468 = vmatpush2.msra.mxu0 0.0
    %3469 = vmatprep.subr.mxu0 0.0
    %3470 = vmatpush2.msra.mxu0 0.0
    %3471 = vmatprep.subr.mxu0 0.0
    %3472 = vmatpush2.msra.mxu0 0.0
    %3473 = vmatprep.subr.mxu0 0.0
    %3474 = vmatpush2.msra.mxu0 0.0
    %3475 = vmatprep.subr.mxu0 0.0
    %3476 = vmatpush2.msra.mxu0 0.0
    %3477 = vmatprep.subr.mxu0 0.0
    %3478 = vmatpush2.msra.mxu0 0.0
    %3479 = vmatprep.subr.mxu0 0.0
    %3480 = vmatpush2.msra.mxu0 0.0
    %3481 = vmatprep.subr.mxu0 0.0
    %3482 = vmatpush2.msra.mxu0 0.0
    %3483 = vmatprep.subr.mxu0 0.0
    %3484 = vmatpush2.msra.mxu0 0.0
    %3485 = vmatprep.subr.mxu0 0.0
    %3486 = vmatpush2.msra.mxu0 0.0
    %3487 = vmatprep.subr.mxu0 0.0
    %3488 = vmatpush2.msra.mxu0 0.0
    %3489 = vmatprep.mubr.f32.mxu0 0.0
    %3490 = vmatmul.mubr.f32.gmra.mxu0 %v3423
    %v3491 = vpop.f32.mrf.mxu0
    %v3492 = vadd.f32 0.0, %v3491
    %v3493 = vpop.f32.mrf.mxu0
    %3494 = vdwg.mxu0
    %3495 = vrot.lane.b32.xlu0 %v2340, 64
    %v3496 = vpop.permute.xlu0 %3495
    %v3499 = vsel %vm490, %v3037, 0
    %3501 = vmatprep.subr.mxu0 0.0
    %3502 = vmatpush1.msra.mxu0 0.0
    %3503 = vmatprep.subr.mxu0 0.0
    %3504 = vmatpush1.msra.mxu0 0.0
    %3505 = vmatprep.subr.mxu0 0.0
    %3506 = vmatpush1.msra.mxu0 0.0
    %3507 = vmatprep.subr.mxu0 0.0
    %3508 = vmatpush1.msra.mxu0 0.0
    %3509 = vmatprep.subr.mxu0 0.0
    %3510 = vmatpush1.msra.mxu0 0.0
    %3511 = vmatprep.subr.mxu0 0.0
    %3512 = vmatpush1.msra.mxu0 0.0
    %3513 = vmatprep.subr.mxu0 0.0
    %3514 = vmatpush1.msra.mxu0 0.0
    %3515 = vmatprep.subr.mxu0 0.0
    %3516 = vmatpush1.msra.mxu0 0.0
    %3517 = vmatprep.subr.mxu0 0.0
    %3518 = vmatpush1.msra.mxu0 0.0
    %3519 = vmatprep.subr.mxu0 0.0
    %3520 = vmatpush1.msra.mxu0 0.0
    %3521 = vmatprep.subr.mxu0 0.0
    %3522 = vmatpush1.msra.mxu0 0.0
    %3523 = vmatprep.subr.mxu0 0.0
    %3524 = vmatpush1.msra.mxu0 0.0
    %3525 = vmatprep.subr.mxu0 0.0
    %3526 = vmatpush1.msra.mxu0 0.0
    %3527 = vmatprep.subr.mxu0 0.0
    %3528 = vmatpush1.msra.mxu0 0.0
    %3529 = vmatprep.subr.mxu0 0.0
    %3530 = vmatpush1.msra.mxu0 0.0
    %3531 = vmatprep.subr.mxu0 0.0
    %3532 = vmatpush1.msra.mxu0 %v3496
    %3533 = vmatprep.subr.mxu0 0.0
    %3534 = vmatpush2.msra.mxu0 0.0
    %3535 = vmatprep.subr.mxu0 0.0
    %3536 = vmatpush2.msra.mxu0 0.0
    %3537 = vmatprep.subr.mxu0 0.0
    %3538 = vmatpush2.msra.mxu0 0.0
    %3539 = vmatprep.subr.mxu0 0.0
    %3540 = vmatpush2.msra.mxu0 0.0
    %3541 = vmatprep.subr.mxu0 0.0
    %3542 = vmatpush2.msra.mxu0 0.0
    %3543 = vmatprep.subr.mxu0 0.0
    %3544 = vmatpush2.msra.mxu0 0.0
    %3545 = vmatprep.subr.mxu0 0.0
    %3546 = vmatpush2.msra.mxu0 0.0
    %3547 = vmatprep.subr.mxu0 0.0
    %3548 = vmatpush2.msra.mxu0 0.0
    %3549 = vmatprep.subr.mxu0 0.0
    %3550 = vmatpush2.msra.mxu0 0.0
    %3551 = vmatprep.subr.mxu0 0.0
    %3552 = vmatpush2.msra.mxu0 0.0
    %3553 = vmatprep.subr.mxu0 0.0
    %3554 = vmatpush2.msra.mxu0 0.0
    %3555 = vmatprep.subr.mxu0 0.0
    %3556 = vmatpush2.msra.mxu0 0.0
    %3557 = vmatprep.subr.mxu0 0.0
    %3558 = vmatpush2.msra.mxu0 0.0
    %3559 = vmatprep.subr.mxu0 0.0
    %3560 = vmatpush2.msra.mxu0 0.0
    %3561 = vmatprep.subr.mxu0 0.0
    %3562 = vmatpush2.msra.mxu0 0.0
    %3563 = vmatprep.subr.mxu0 0.0
    %3564 = vmatpush2.msra.mxu0 0.0
    %3565 = vmatprep.mubr.f32.mxu0 0.0
    %3566 = vmatmul.mubr.f32.gmra.mxu0 %v3499
    %v3567 = vpop.f32.mrf.mxu0
    %v3568 = vadd.f32 0.0, %v3567
    %v3569 = vpop.f32.mrf.mxu0
    %3570 = vdwg.mxu0
    %3571 = vrot.lane.b32.xlu0 %v2342, 64
    %v3572 = vpop.permute.xlu0 %3571
    %v3575 = vsel %vm490, %v3038, 0
    %3577 = vmatprep.subr.mxu0 0.0
    %3578 = vmatpush1.msra.mxu0 0.0
    %3579 = vmatprep.subr.mxu0 0.0
    %3580 = vmatpush1.msra.mxu0 0.0
    %3581 = vmatprep.subr.mxu0 0.0
    %3582 = vmatpush1.msra.mxu0 0.0
    %3583 = vmatprep.subr.mxu0 0.0
    %3584 = vmatpush1.msra.mxu0 0.0
    %3585 = vmatprep.subr.mxu0 0.0
    %3586 = vmatpush1.msra.mxu0 0.0
    %3587 = vmatprep.subr.mxu0 0.0
    %3588 = vmatpush1.msra.mxu0 0.0
    %3589 = vmatprep.subr.mxu0 0.0
    %3590 = vmatpush1.msra.mxu0 0.0
    %3591 = vmatprep.subr.mxu0 0.0
    %3592 = vmatpush1.msra.mxu0 0.0
    %3593 = vmatprep.subr.mxu0 0.0
    %3594 = vmatpush1.msra.mxu0 0.0
    %3595 = vmatprep.subr.mxu0 0.0
    %3596 = vmatpush1.msra.mxu0 0.0
    %3597 = vmatprep.subr.mxu0 0.0
    %3598 = vmatpush1.msra.mxu0 0.0
    %3599 = vmatprep.subr.mxu0 0.0
    %3600 = vmatpush1.msra.mxu0 0.0
    %3601 = vmatprep.subr.mxu0 0.0
    %3602 = vmatpush1.msra.mxu0 0.0
    %3603 = vmatprep.subr.mxu0 0.0
    %3604 = vmatpush1.msra.mxu0 0.0
    %3605 = vmatprep.subr.mxu0 0.0
    %3606 = vmatpush1.msra.mxu0 0.0
    %3607 = vmatprep.subr.mxu0 0.0
    %3608 = vmatpush1.msra.mxu0 %v3572
    %3609 = vmatprep.subr.mxu0 0.0
    %3610 = vmatpush2.msra.mxu0 0.0
    %3611 = vmatprep.subr.mxu0 0.0
    %3612 = vmatpush2.msra.mxu0 0.0
    %3613 = vmatprep.subr.mxu0 0.0
    %3614 = vmatpush2.msra.mxu0 0.0
    %3615 = vmatprep.subr.mxu0 0.0
    %3616 = vmatpush2.msra.mxu0 0.0
    %3617 = vmatprep.subr.mxu0 0.0
    %3618 = vmatpush2.msra.mxu0 0.0
    %3619 = vmatprep.subr.mxu0 0.0
    %3620 = vmatpush2.msra.mxu0 0.0
    %3621 = vmatprep.subr.mxu0 0.0
    %3622 = vmatpush2.msra.mxu0 0.0
    %3623 = vmatprep.subr.mxu0 0.0
    %3624 = vmatpush2.msra.mxu0 0.0
    %3625 = vmatprep.subr.mxu0 0.0
    %3626 = vmatpush2.msra.mxu0 0.0
    %3627 = vmatprep.subr.mxu0 0.0
    %3628 = vmatpush2.msra.mxu0 0.0
    %3629 = vmatprep.subr.mxu0 0.0
    %3630 = vmatpush2.msra.mxu0 0.0
    %3631 = vmatprep.subr.mxu0 0.0
    %3632 = vmatpush2.msra.mxu0 0.0
    %3633 = vmatprep.subr.mxu0 0.0
    %3634 = vmatpush2.msra.mxu0 0.0
    %3635 = vmatprep.subr.mxu0 0.0
    %3636 = vmatpush2.msra.mxu0 0.0
    %3637 = vmatprep.subr.mxu0 0.0
    %3638 = vmatpush2.msra.mxu0 0.0
    %3639 = vmatprep.subr.mxu0 0.0
    %3640 = vmatpush2.msra.mxu0 0.0
    %3641 = vmatprep.mubr.f32.mxu0 0.0
    %3642 = vmatmul.mubr.f32.gmra.mxu0 %v3575
    %v3643 = vpop.f32.mrf.mxu0
    %v3644 = vadd.f32 0.0, %v3643
    %v3645 = vpop.f32.mrf.mxu0
    %3646 = vdwg.mxu0
    %3649 = vrot.lane.b32.xlu0 %v3264, 8
    %v3650 = vpop.permute.xlu0 %3649
    %3651 = vrot.lane.b32.xlu0 %v3340, 8
    %v3652 = vpop.permute.xlu0 %3651
    %3657 = vrot.lane.b32.xlu0 %v3416, 16
    %v3658 = vpop.permute.xlu0 %3657
    %3659 = vrot.lane.b32.xlu0 %v3492, 16
    %v3660 = vpop.permute.xlu0 %3659
    %3665 = vrot.lane.b32.xlu0 %v3568, 24
    %v3666 = vpop.permute.xlu0 %3665
    %3667 = vrot.lane.b32.xlu0 %v3644, 24
    %v3668 = vpop.permute.xlu0 %3667
    %v3671 = vsel %vm490, %v3112, %v3650
    %v3672 = vsel %vm490, %v3188, %v3652
    %v3673 = vsel %vm1819, %v3671, %v3658
    %v3674 = vsel %vm1819, %v3672, %v3660
    %v3675 = vsel %vm1822, %v3673, %v3666
    %v3676 = vsel %vm1822, %v3674, %v3668
    %s3677 = scalar_lea.vmem %s5, 40
    %v3678 = vld [vmem:[%s3677] sm:$0xff]
    %v3679 = vld [vmem:[%s3677 + $0x8] sm:$0xff]
    %v3680 = vld [vmem:[%s3677 + $0x10] sm:$0xff]
    %v3681 = vld [vmem:[%s3677 + $0x18] sm:$0xff]
    %v3682 = vld [vmem:[%s3677 + $0x20] sm:$0x1]
    %v3683 = vlaneseq
    %v3684 = vshrl.u32 %v3683, 7
    %v3685 = vsub.s32 0, %v3684
    %v3686 = vrot.slane %v3682, %v3685
    %v3688 = vsel %vm308, %v3675, 0
    %v3691 = vsel %vm308, %v3676, 0
    %3693 = vmatprep.subr.mxu0 0.0
    %3694 = vmatpush1.msra.mxu0 0.0
    %3695 = vmatprep.subr.mxu0 0.0
    %3696 = vmatpush1.msra.mxu0 0.0
    %3697 = vmatprep.subr.mxu0 0.0
    %3698 = vmatpush1.msra.mxu0 0.0
    %3699 = vmatprep.subr.mxu0 0.0
    %3700 = vmatpush1.msra.mxu0 0.0
    %3701 = vmatprep.subr.mxu0 0.0
    %3702 = vmatpush1.msra.mxu0 0.0
    %3703 = vmatprep.subr.mxu0 0.0
    %3704 = vmatpush1.msra.mxu0 0.0
    %3705 = vmatprep.subr.mxu0 0.0
    %3706 = vmatpush1.msra.mxu0 0.0
    %3707 = vmatprep.subr.mxu0 0.0
    %3708 = vmatpush1.msra.mxu0 0.0
    %3709 = vmatprep.subr.mxu0 0.0
    %3710 = vmatpush1.msra.mxu0 0.0
    %3711 = vmatprep.subr.mxu0 0.0
    %3712 = vmatpush1.msra.mxu0 0.0
    %3713 = vmatprep.subr.mxu0 0.0
    %3714 = vmatpush1.msra.mxu0 0.0
    %3715 = vmatprep.subr.mxu0 0.0
    %3716 = vmatpush1.msra.mxu0 0.0
    %3717 = vmatprep.subr.mxu0 0.0
    %3718 = vmatpush1.msra.mxu0 %v3681
    %3719 = vmatprep.subr.mxu0 0.0
    %3720 = vmatpush1.msra.mxu0 %v3680
    %3721 = vmatprep.subr.mxu0 0.0
    %3722 = vmatpush1.msra.mxu0 %v3679
    %3723 = vmatprep.subr.mxu0 0.0
    %3724 = vmatpush1.msra.mxu0 %v3678
    %3725 = vmatprep.subr.mxu0 0.0
    %3726 = vmatpush2.msra.mxu0 0.0
    %3727 = vmatprep.subr.mxu0 0.0
    %3728 = vmatpush2.msra.mxu0 0.0
    %3729 = vmatprep.subr.mxu0 0.0
    %3730 = vmatpush2.msra.mxu0 0.0
    %3731 = vmatprep.subr.mxu0 0.0
    %3732 = vmatpush2.msra.mxu0 0.0
    %3733 = vmatprep.subr.mxu0 0.0
    %3734 = vmatpush2.msra.mxu0 0.0
    %3735 = vmatprep.subr.mxu0 0.0
    %3736 = vmatpush2.msra.mxu0 0.0
    %3737 = vmatprep.subr.mxu0 0.0
    %3738 = vmatpush2.msra.mxu0 0.0
    %3739 = vmatprep.subr.mxu0 0.0
    %3740 = vmatpush2.msra.mxu0 0.0
    %3741 = vmatprep.subr.mxu0 0.0
    %3742 = vmatpush2.msra.mxu0 0.0
    %3743 = vmatprep.subr.mxu0 0.0
    %3744 = vmatpush2.msra.mxu0 0.0
    %3745 = vmatprep.subr.mxu0 0.0
    %3746 = vmatpush2.msra.mxu0 0.0
    %3747 = vmatprep.subr.mxu0 0.0
    %3748 = vmatpush2.msra.mxu0 0.0
    %3749 = vmatprep.subr.mxu0 0.0
    %3750 = vmatpush2.msra.mxu0 0.0
    %3751 = vmatprep.subr.mxu0 0.0
    %3752 = vmatpush2.msra.mxu0 0.0
    %3753 = vmatprep.subr.mxu0 0.0
    %3754 = vmatpush2.msra.mxu0 0.0
    %3755 = vmatprep.subr.mxu0 0.0
    %3756 = vmatpush2.msra.mxu0 0.0
    %3757 = vmatprep.mubr.f32.mxu0 0.0
    %3758 = vmatmul.mubr.f32.gmra.mxu0 %v3688
    %v3759 = vpop.f32.mrf.mxu0
    %v3760 = vadd.f32 %v3686, %v3759
    %v3761 = vpop.f32.mrf.mxu0
    %3762 = vmatprep.mubr.f32.mxu0 0.0
    %3763 = vmatmul.mubr.f32.gmra.mxu0 %v3691
    %v3764 = vpop.f32.mrf.mxu0
    %v3765 = vadd.f32 %v3686, %v3764
    %v3766 = vpop.f32.mrf.mxu0
    %3767 = vdwg.mxu0
    %v3768 = vadd.f32 %v3760, %v2236
    %v3769 = vadd.f32 %v3765, %v2237
    %v3770 = vld [vmem:[%s3 + $0x26] sm:$0x1]
    %v3771 = vld [vmem:[%s3 + $0x27] sm:$0x1]
    %v3772 = vsel %vm308, %v3768, 0.0
    %3773 = vadd.xlane.f32.xlu0 %v3772
    %v3774 = vpop.xlane.xlu0 %3773
    %v3775 = vsel %vm308, %v3769, 0.0
    %3776 = vadd.xlane.f32.xlu0 %v3775
    %v3777 = vpop.xlane.xlu0 %3776
    %v3778 = vmul.f32 %v3774, %v315
    %v3779 = vmul.f32 %v3777, %v315
    %v3780 = vsub.f32 %v3768, %v3778
    %v3781 = vsub.f32 %v3769, %v3779
    %v3782 = vmul.f32 %v3780, %v3780
    %v3783 = vmul.f32 %v3781, %v3781
    %v3784 = vsel %vm308, %v3782, 0.0
    %3785 = vadd.xlane.f32.xlu0 %v3784
    %v3786 = vpop.xlane.xlu0 %3785
    %v3787 = vsel %vm308, %v3783, 0.0
    %3788 = vadd.xlane.f32.xlu0 %v3787
    %v3789 = vpop.xlane.xlu0 %3788
    %v3790 = vmul.f32 %v3786, %v315
    %v3791 = vmul.f32 %v3789, %v315
    %v3792 = vadd.f32 %v3790, 1e-12
    %v3793 = vadd.f32 %v3791, 1e-12
    %v3794 = vrsqrt.pop %v3792
    %v3795 = vrsqrt.pop %v3793
    %v3796 = vmul.f32 %v3780, %v3794
    %v3797 = vmul.f32 %v3781, %v3795
    %v3798 = vlaneseq
    %v3799 = vshrl.u32 %v3798, 7
    %v3800 = vsub.s32 0, %v3799
    %v3801 = vrot.slane %v3770, %v3800
    %v3802 = vmul.f32 %v3796, %v3801
    %v3803 = vmul.f32 %v3797, %v3801
    %v3804 = vlaneseq
    %v3805 = vshrl.u32 %v3804, 7
    %v3806 = vsub.s32 0, %v3805
    %v3807 = vrot.slane %v3771, %v3806
    %v3808 = vadd.f32 %v3802, %v3807
    %v3809 = vadd.f32 %v3803, %v3807
    %s3810 = scalar_lea.vmem %s6, 40
    %v3811 = vld [vmem:[%s3810] sm:$0xff]
    %v3812 = vld [vmem:[%s3810 + $0x8] sm:$0xff]
    %v3813 = vld [vmem:[%s3810 + $0x10] sm:$0xff]
    %v3814 = vld [vmem:[%s3810 + $0x18] sm:$0xff]
    %v3815 = vld [vmem:[%s3810 + $0x20] sm:$0x1]
    %v3816 = vlaneseq
    %v3817 = vshrl.u32 %v3816, 7
    %v3818 = vsub.s32 0, %v3817
    %v3819 = vrot.slane %v3815, %v3818
    %v3821 = vsel %vm308, %v3808, 0
    %v3824 = vsel %vm308, %v3809, 0
    %3826 = vmatprep.subr.mxu0 0.0
    %3827 = vmatpush1.msra.mxu0 0.0
    %3828 = vmatprep.subr.mxu0 0.0
    %3829 = vmatpush1.msra.mxu0 0.0
    %3830 = vmatprep.subr.mxu0 0.0
    %3831 = vmatpush1.msra.mxu0 0.0
    %3832 = vmatprep.subr.mxu0 0.0
    %3833 = vmatpush1.msra.mxu0 0.0
    %3834 = vmatprep.subr.mxu0 0.0
    %3835 = vmatpush1.msra.mxu0 0.0
    %3836 = vmatprep.subr.mxu0 0.0
    %3837 = vmatpush1.msra.mxu0 0.0
    %3838 = vmatprep.subr.mxu0 0.0
    %3839 = vmatpush1.msra.mxu0 0.0
    %3840 = vmatprep.subr.mxu0 0.0
    %3841 = vmatpush1.msra.mxu0 0.0
    %3842 = vmatprep.subr.mxu0 0.0
    %3843 = vmatpush1.msra.mxu0 0.0
    %3844 = vmatprep.subr.mxu0 0.0
    %3845 = vmatpush1.msra.mxu0 0.0
    %3846 = vmatprep.subr.mxu0 0.0
    %3847 = vmatpush1.msra.mxu0 0.0
    %3848 = vmatprep.subr.mxu0 0.0
    %3849 = vmatpush1.msra.mxu0 0.0
    %3850 = vmatprep.subr.mxu0 0.0
    %3851 = vmatpush1.msra.mxu0 %v3814
    %3852 = vmatprep.subr.mxu0 0.0
    %3853 = vmatpush1.msra.mxu0 %v3813
    %3854 = vmatprep.subr.mxu0 0.0
    %3855 = vmatpush1.msra.mxu0 %v3812
    %3856 = vmatprep.subr.mxu0 0.0
    %3857 = vmatpush1.msra.mxu0 %v3811
    %3858 = vmatprep.subr.mxu0 0.0
    %3859 = vmatpush2.msra.mxu0 0.0
    %3860 = vmatprep.subr.mxu0 0.0
    %3861 = vmatpush2.msra.mxu0 0.0
    %3862 = vmatprep.subr.mxu0 0.0
    %3863 = vmatpush2.msra.mxu0 0.0
    %3864 = vmatprep.subr.mxu0 0.0
    %3865 = vmatpush2.msra.mxu0 0.0
    %3866 = vmatprep.subr.mxu0 0.0
    %3867 = vmatpush2.msra.mxu0 0.0
    %3868 = vmatprep.subr.mxu0 0.0
    %3869 = vmatpush2.msra.mxu0 0.0
    %3870 = vmatprep.subr.mxu0 0.0
    %3871 = vmatpush2.msra.mxu0 0.0
    %3872 = vmatprep.subr.mxu0 0.0
    %3873 = vmatpush2.msra.mxu0 0.0
    %3874 = vmatprep.subr.mxu0 0.0
    %3875 = vmatpush2.msra.mxu0 0.0
    %3876 = vmatprep.subr.mxu0 0.0
    %3877 = vmatpush2.msra.mxu0 0.0
    %3878 = vmatprep.subr.mxu0 0.0
    %3879 = vmatpush2.msra.mxu0 0.0
    %3880 = vmatprep.subr.mxu0 0.0
    %3881 = vmatpush2.msra.mxu0 0.0
    %3882 = vmatprep.subr.mxu0 0.0
    %3883 = vmatpush2.msra.mxu0 0.0
    %3884 = vmatprep.subr.mxu0 0.0
    %3885 = vmatpush2.msra.mxu0 0.0
    %3886 = vmatprep.subr.mxu0 0.0
    %3887 = vmatpush2.msra.mxu0 0.0
    %3888 = vmatprep.subr.mxu0 0.0
    %3889 = vmatpush2.msra.mxu0 0.0
    %3890 = vmatprep.mubr.f32.mxu0 0.0
    %3891 = vmatmul.mubr.f32.gmra.mxu0 %v3821
    %v3892 = vpop.f32.mrf.mxu0
    %v3893 = vadd.f32 %v3819, %v3892
    %v3894 = vpop.f32.mrf.mxu0
    %3895 = vmatprep.mubr.f32.mxu0 0.0
    %3896 = vmatmul.mubr.f32.gmra.mxu0 %v3824
    %v3897 = vpop.f32.mrf.mxu0
    %v3898 = vadd.f32 %v3819, %v3897
    %v3899 = vpop.f32.mrf.mxu0
    %3900 = vdwg.mxu0
    %v3901 = vmul.f32 %v3893, 0.5
    %v3902 = vmul.f32 %v3898, 0.5
    %v3903 = vmul.f32 %v3893, 0.70710677
    %v3904 = vmul.f32 %v3898, 0.70710677
    %v3905 = vand.u32 2147483647, %v3903
    %v3906 = vand.u32 2147483647, %v3904
    %v3907 = vmul.f32 %v3905, 0.3275911
    %v3908 = vmul.f32 %v3906, 0.3275911
    %v3909 = vadd.f32 %v3907, 1.0
    %v3910 = vadd.f32 %v3908, 1.0
    %v3911 = vrcp.pop %v3909
    %v3912 = vmul.f32 1.0, %v3911
    %v3913 = vrcp.pop %v3910
    %v3914 = vmul.f32 1.0, %v3913
    %v3915 = vmul.f32 %v3912, 1.0614054
    %v3916 = vmul.f32 %v3914, 1.0614054
    %v3917 = vadd.f32 %v3915, -1.4531521
    %v3918 = vadd.f32 %v3916, -1.4531521
    %v3919 = vmul.f32 %v3917, %v3912
    %v3920 = vmul.f32 %v3918, %v3914
    %v3921 = vadd.f32 %v3919, 1.4214138
    %v3922 = vadd.f32 %v3920, 1.4214138
    %v3923 = vmul.f32 %v3921, %v3912
    %v3924 = vmul.f32 %v3922, %v3914
    %v3925 = vadd.f32 %v3923, -0.28449672
    %v3926 = vadd.f32 %v3924, -0.28449672
    %v3927 = vmul.f32 %v3925, %v3912
    %v3928 = vmul.f32 %v3926, %v3914
    %v3929 = vadd.f32 %v3927, 0.2548296
    %v3930 = vadd.f32 %v3928, 0.2548296
    %v3931 = vmul.f32 %v3929, %v3912
    %v3932 = vmul.f32 %v3930, %v3914
    %v3933 = vmul.f32 %v3905, %v3905
    %v3934 = vmul.f32 %v3906, %v3906
    %v3935 = vsub.f32 0.0, %v3933
    %v3936 = vsub.f32 0.0, %v3934
    %v3937 = vmul.f32 %v3935, 1.442695
    %v3938 = vpow.pop %v3937
    %v3939 = vmul.f32 %v3936, 1.442695
    %v3940 = vpow.pop %v3939
    %v3941 = vmul.f32 %v3931, %v3938
    %v3942 = vmul.f32 %v3932, %v3940
    %v3943 = vsub.f32 1.0, %v3941
    %v3944 = vsub.f32 1.0, %v3942
    %vm3945 = vcmp.ge.f32.partialorder %v3903, 0.0
    %vm3946 = vcmp.ge.f32.partialorder %v3904, 0.0
    %v3947 = vsub.f32 0.0, %v3943
    %v3948 = vsub.f32 0.0, %v3944
    %v3949 = vsel %vm3945, %v3943, %v3947
    %v3950 = vsel %vm3946, %v3944, %v3948
    %v3951 = vadd.f32 %v3949, 1.0
    %v3952 = vadd.f32 %v3950, 1.0
    %v3953 = vmul.f32 %v3901, %v3951
    %v3954 = vmul.f32 %v3902, %v3952
    %s3955 = scalar_lea.vmem %s7, 72
    %v3956 = vld [vmem:[%s3955] sm:$0xff]
    %v3957 = vld [vmem:[%s3955 + $0x8] sm:$0xff]
    %v3958 = vld [vmem:[%s3955 + $0x10] sm:$0xff]
    %v3959 = vld [vmem:[%s3955 + $0x18] sm:$0xff]
    %v3960 = vld [vmem:[%s3955 + $0x20] sm:$0xff]
    %v3961 = vld [vmem:[%s3955 + $0x28] sm:$0xff]
    %v3962 = vld [vmem:[%s3955 + $0x30] sm:$0xff]
    %v3963 = vld [vmem:[%s3955 + $0x38] sm:$0xff]
    %v3964 = vld [vmem:[%s3955 + $0x40] sm:$0x1]
    %v3965 = vlaneseq
    %v3966 = vshrl.u32 %v3965, 7
    %v3967 = vsub.s32 0, %v3966
    %v3968 = vrot.slane %v3964, %v3967
    %v3970 = vsel %vm2114, %v3953, 0
    %v3973 = vsel %vm2114, %v3954, 0
    %3975 = vmatprep.subr.mxu0 0.0
    %3976 = vmatpush1.msra.mxu0 0.0
    %3977 = vmatprep.subr.mxu0 0.0
    %3978 = vmatpush1.msra.mxu0 0.0
    %3979 = vmatprep.subr.mxu0 0.0
    %3980 = vmatpush1.msra.mxu0 0.0
    %3981 = vmatprep.subr.mxu0 0.0
    %3982 = vmatpush1.msra.mxu0 0.0
    %3983 = vmatprep.subr.mxu0 0.0
    %3984 = vmatpush1.msra.mxu0 0.0
    %3985 = vmatprep.subr.mxu0 0.0
    %3986 = vmatpush1.msra.mxu0 0.0
    %3987 = vmatprep.subr.mxu0 0.0
    %3988 = vmatpush1.msra.mxu0 0.0
    %3989 = vmatprep.subr.mxu0 0.0
    %3990 = vmatpush1.msra.mxu0 0.0
    %3991 = vmatprep.subr.mxu0 0.0
    %3992 = vmatpush1.msra.mxu0 %v3963
    %3993 = vmatprep.subr.mxu0 0.0
    %3994 = vmatpush1.msra.mxu0 %v3962
    %3995 = vmatprep.subr.mxu0 0.0
    %3996 = vmatpush1.msra.mxu0 %v3961
    %3997 = vmatprep.subr.mxu0 0.0
    %3998 = vmatpush1.msra.mxu0 %v3960
    %3999 = vmatprep.subr.mxu0 0.0
    %4000 = vmatpush1.msra.mxu0 %v3959
    %4001 = vmatprep.subr.mxu0 0.0
    %4002 = vmatpush1.msra.mxu0 %v3958
    %4003 = vmatprep.subr.mxu0 0.0
    %4004 = vmatpush1.msra.mxu0 %v3957
    %4005 = vmatprep.subr.mxu0 0.0
    %4006 = vmatpush1.msra.mxu0 %v3956
    %4007 = vmatprep.subr.mxu0 0.0
    %4008 = vmatpush2.msra.mxu0 0.0
    %4009 = vmatprep.subr.mxu0 0.0
    %4010 = vmatpush2.msra.mxu0 0.0
    %4011 = vmatprep.subr.mxu0 0.0
    %4012 = vmatpush2.msra.mxu0 0.0
    %4013 = vmatprep.subr.mxu0 0.0
    %4014 = vmatpush2.msra.mxu0 0.0
    %4015 = vmatprep.subr.mxu0 0.0
    %4016 = vmatpush2.msra.mxu0 0.0
    %4017 = vmatprep.subr.mxu0 0.0
    %4018 = vmatpush2.msra.mxu0 0.0
    %4019 = vmatprep.subr.mxu0 0.0
    %4020 = vmatpush2.msra.mxu0 0.0
    %4021 = vmatprep.subr.mxu0 0.0
    %4022 = vmatpush2.msra.mxu0 0.0
    %4023 = vmatprep.subr.mxu0 0.0
    %4024 = vmatpush2.msra.mxu0 0.0
    %4025 = vmatprep.subr.mxu0 0.0
    %4026 = vmatpush2.msra.mxu0 0.0
    %4027 = vmatprep.subr.mxu0 0.0
    %4028 = vmatpush2.msra.mxu0 0.0
    %4029 = vmatprep.subr.mxu0 0.0
    %4030 = vmatpush2.msra.mxu0 0.0
    %4031 = vmatprep.subr.mxu0 0.0
    %4032 = vmatpush2.msra.mxu0 0.0
    %4033 = vmatprep.subr.mxu0 0.0
    %4034 = vmatpush2.msra.mxu0 0.0
    %4035 = vmatprep.subr.mxu0 0.0
    %4036 = vmatpush2.msra.mxu0 0.0
    %4037 = vmatprep.subr.mxu0 0.0
    %4038 = vmatpush2.msra.mxu0 0.0
    %4039 = vmatprep.mubr.f32.mxu0 0.0
    %4040 = vmatmul.mubr.f32.gmra.mxu0 %v3970
    %v4041 = vpop.f32.mrf.mxu0
    %v4042 = vadd.f32 %v3968, %v4041
    %v4043 = vpop.f32.mrf.mxu0
    %4044 = vmatprep.mubr.f32.mxu0 0.0
    %4045 = vmatmul.mubr.f32.gmra.mxu0 %v3973
    %v4046 = vpop.f32.mrf.mxu0
    %v4047 = vadd.f32 %v3968, %v4046
    %v4048 = vpop.f32.mrf.mxu0
    %4049 = vdwg.mxu0
    %v4050 = vadd.f32 %v4042, %v3808
    %v4051 = vadd.f32 %v4047, %v3809
    %v4052 = vld [vmem:[%s3 + $0x28] sm:$0x1]
    %v4053 = vld [vmem:[%s3 + $0x29] sm:$0x1]
    %v4054 = vsel %vm308, %v4050, 0.0
    %4055 = vadd.xlane.f32.xlu0 %v4054
    %v4056 = vpop.xlane.xlu0 %4055
    %v4057 = vsel %vm308, %v4051, 0.0
    %4058 = vadd.xlane.f32.xlu0 %v4057
    %v4059 = vpop.xlane.xlu0 %4058
    %v4060 = vmul.f32 %v4056, %v315
    %v4061 = vmul.f32 %v4059, %v315
    %v4062 = vsub.f32 %v4050, %v4060
    %v4063 = vsub.f32 %v4051, %v4061
    %v4064 = vmul.f32 %v4062, %v4062
    %v4065 = vmul.f32 %v4063, %v4063
    %v4066 = vsel %vm308, %v4064, 0.0
    %4067 = vadd.xlane.f32.xlu0 %v4066
    %v4068 = vpop.xlane.xlu0 %4067
    %v4069 = vsel %vm308, %v4065, 0.0
    %4070 = vadd.xlane.f32.xlu0 %v4069
    %v4071 = vpop.xlane.xlu0 %4070
    %v4072 = vmul.f32 %v4068, %v315
    %v4073 = vmul.f32 %v4071, %v315
    %v4074 = vadd.f32 %v4072, 1e-12
    %v4075 = vadd.f32 %v4073, 1e-12
    %v4076 = vrsqrt.pop %v4074
    %v4077 = vrsqrt.pop %v4075
    %v4078 = vmul.f32 %v4062, %v4076
    %v4079 = vmul.f32 %v4063, %v4077
    %v4080 = vlaneseq
    %v4081 = vshrl.u32 %v4080, 7
    %v4082 = vsub.s32 0, %v4081
    %v4083 = vrot.slane %v4052, %v4082
    %v4084 = vmul.f32 %v4078, %v4083
    %v4085 = vmul.f32 %v4079, %v4083
    %v4086 = vlaneseq
    %v4087 = vshrl.u32 %v4086, 7
    %v4088 = vsub.s32 0, %v4087
    %v4089 = vrot.slane %v4053, %v4088
    %v4090 = vadd.f32 %v4084, %v4089
    %v4091 = vadd.f32 %v4085, %v4089
    %v4093 = vrot.slane %v4091, 7
    %v4095 = vsel %vm285, %v4090, %v4093
    %v4096 = vld [vmem:[%s8] sm:$0xff]
    %v4097 = vld [vmem:[%s8 + $0x8] sm:$0xff]
    %v4098 = vld [vmem:[%s8 + $0x10] sm:$0xff]
    %v4099 = vld [vmem:[%s8 + $0x18] sm:$0xff]
    %v4100 = vld [vmem:[%s8 + $0x20] sm:$0x1]
    %v4101 = vlaneseq
    %v4102 = vshrl.u32 %v4101, 7
    %v4103 = vsub.s32 0, %v4102
    %v4104 = vrot.slane %v4100, %v4103
    %v4106 = vsel %vm308, %v4095, 0
    %4108 = vmatprep.subr.mxu0 0.0
    %4109 = vmatpush1.msra.mxu0 0.0
    %4110 = vmatprep.subr.mxu0 0.0
    %4111 = vmatpush1.msra.mxu0 0.0
    %4112 = vmatprep.subr.mxu0 0.0
    %4113 = vmatpush1.msra.mxu0 0.0
    %4114 = vmatprep.subr.mxu0 0.0
    %4115 = vmatpush1.msra.mxu0 0.0
    %4116 = vmatprep.subr.mxu0 0.0
    %4117 = vmatpush1.msra.mxu0 0.0
    %4118 = vmatprep.subr.mxu0 0.0
    %4119 = vmatpush1.msra.mxu0 0.0
    %4120 = vmatprep.subr.mxu0 0.0
    %4121 = vmatpush1.msra.mxu0 0.0
    %4122 = vmatprep.subr.mxu0 0.0
    %4123 = vmatpush1.msra.mxu0 0.0
    %4124 = vmatprep.subr.mxu0 0.0
    %4125 = vmatpush1.msra.mxu0 0.0
    %4126 = vmatprep.subr.mxu0 0.0
    %4127 = vmatpush1.msra.mxu0 0.0
    %4128 = vmatprep.subr.mxu0 0.0
    %4129 = vmatpush1.msra.mxu0 0.0
    %4130 = vmatprep.subr.mxu0 0.0
    %4131 = vmatpush1.msra.mxu0 0.0
    %4132 = vmatprep.subr.mxu0 0.0
    %4133 = vmatpush1.msra.mxu0 %v4099
    %4134 = vmatprep.subr.mxu0 0.0
    %4135 = vmatpush1.msra.mxu0 %v4098
    %4136 = vmatprep.subr.mxu0 0.0
    %4137 = vmatpush1.msra.mxu0 %v4097
    %4138 = vmatprep.subr.mxu0 0.0
    %4139 = vmatpush1.msra.mxu0 %v4096
    %4140 = vmatprep.subr.mxu0 0.0
    %4141 = vmatpush2.msra.mxu0 0.0
    %4142 = vmatprep.subr.mxu0 0.0
    %4143 = vmatpush2.msra.mxu0 0.0
    %4144 = vmatprep.subr.mxu0 0.0
    %4145 = vmatpush2.msra.mxu0 0.0
    %4146 = vmatprep.subr.mxu0 0.0
    %4147 = vmatpush2.msra.mxu0 0.0
    %4148 = vmatprep.subr.mxu0 0.0
    %4149 = vmatpush2.msra.mxu0 0.0
    %4150 = vmatprep.subr.mxu0 0.0
    %4151 = vmatpush2.msra.mxu0 0.0
    %4152 = vmatprep.subr.mxu0 0.0
    %4153 = vmatpush2.msra.mxu0 0.0
    %4154 = vmatprep.subr.mxu0 0.0
    %4155 = vmatpush2.msra.mxu0 0.0
    %4156 = vmatprep.subr.mxu0 0.0
    %4157 = vmatpush2.msra.mxu0 0.0
    %4158 = vmatprep.subr.mxu0 0.0
    %4159 = vmatpush2.msra.mxu0 0.0
    %4160 = vmatprep.subr.mxu0 0.0
    %4161 = vmatpush2.msra.mxu0 0.0
    %4162 = vmatprep.subr.mxu0 0.0
    %4163 = vmatpush2.msra.mxu0 0.0
    %4164 = vmatprep.subr.mxu0 0.0
    %4165 = vmatpush2.msra.mxu0 0.0
    %4166 = vmatprep.subr.mxu0 0.0
    %4167 = vmatpush2.msra.mxu0 0.0
    %4168 = vmatprep.subr.mxu0 0.0
    %4169 = vmatpush2.msra.mxu0 0.0
    %4170 = vmatprep.subr.mxu0 0.0
    %4171 = vmatpush2.msra.mxu0 0.0
    %4172 = vmatprep.mubr.f32.mxu0 0.0
    %4173 = vmatmul.mubr.f32.gmra.mxu0 %v4106
    %v4174 = vpop.f32.mrf.mxu0
    %v4175 = vadd.f32 %v4104, %v4174
    %v4176 = vpop.f32.mrf.mxu0
    %4177 = vdwg.mxu0
    %v4178 = vtanh.pop %v4175
    %v4179 = vld [vmem:[%s9] sm:$0xff]
    %v4180 = vld [vmem:[%s9 + $0x8] sm:$0xff]
    %v4181 = vld [vmem:[%s9 + $0x10] sm:$0xff]
    %v4182 = vld [vmem:[%s9 + $0x18] sm:$0xff]
    %v4183 = vld [vmem:[%s9 + $0x20] sm:$0x1]
    %v4184 = vlaneseq
    %v4185 = vshrl.u32 %v4184, 7
    %v4186 = vsub.s32 0, %v4185
    %v4187 = vrot.slane %v4183, %v4186
    %v4189 = vsel %vm308, %v4178, 0
    %4191 = vmatprep.subr.mxu0 0.0
    %4192 = vmatpush1.msra.mxu0 0.0
    %4193 = vmatprep.subr.mxu0 0.0
    %4194 = vmatpush1.msra.mxu0 0.0
    %4195 = vmatprep.subr.mxu0 0.0
    %4196 = vmatpush1.msra.mxu0 0.0
    %4197 = vmatprep.subr.mxu0 0.0
    %4198 = vmatpush1.msra.mxu0 0.0
    %4199 = vmatprep.subr.mxu0 0.0
    %4200 = vmatpush1.msra.mxu0 0.0
    %4201 = vmatprep.subr.mxu0 0.0
    %4202 = vmatpush1.msra.mxu0 0.0
    %4203 = vmatprep.subr.mxu0 0.0
    %4204 = vmatpush1.msra.mxu0 0.0
    %4205 = vmatprep.subr.mxu0 0.0
    %4206 = vmatpush1.msra.mxu0 0.0
    %4207 = vmatprep.subr.mxu0 0.0
    %4208 = vmatpush1.msra.mxu0 0.0
    %4209 = vmatprep.subr.mxu0 0.0
    %4210 = vmatpush1.msra.mxu0 0.0
    %4211 = vmatprep.subr.mxu0 0.0
    %4212 = vmatpush1.msra.mxu0 0.0
    %4213 = vmatprep.subr.mxu0 0.0
    %4214 = vmatpush1.msra.mxu0 0.0
    %4215 = vmatprep.subr.mxu0 0.0
    %4216 = vmatpush1.msra.mxu0 %v4182
    %4217 = vmatprep.subr.mxu0 0.0
    %4218 = vmatpush1.msra.mxu0 %v4181
    %4219 = vmatprep.subr.mxu0 0.0
    %4220 = vmatpush1.msra.mxu0 %v4180
    %4221 = vmatprep.subr.mxu0 0.0
    %4222 = vmatpush1.msra.mxu0 %v4179
    %4223 = vmatprep.subr.mxu0 0.0
    %4224 = vmatpush2.msra.mxu0 0.0
    %4225 = vmatprep.subr.mxu0 0.0
    %4226 = vmatpush2.msra.mxu0 0.0
    %4227 = vmatprep.subr.mxu0 0.0
    %4228 = vmatpush2.msra.mxu0 0.0
    %4229 = vmatprep.subr.mxu0 0.0
    %4230 = vmatpush2.msra.mxu0 0.0
    %4231 = vmatprep.subr.mxu0 0.0
    %4232 = vmatpush2.msra.mxu0 0.0
    %4233 = vmatprep.subr.mxu0 0.0
    %4234 = vmatpush2.msra.mxu0 0.0
    %4235 = vmatprep.subr.mxu0 0.0
    %4236 = vmatpush2.msra.mxu0 0.0
    %4237 = vmatprep.subr.mxu0 0.0
    %4238 = vmatpush2.msra.mxu0 0.0
    %4239 = vmatprep.subr.mxu0 0.0
    %4240 = vmatpush2.msra.mxu0 0.0
    %4241 = vmatprep.subr.mxu0 0.0
    %4242 = vmatpush2.msra.mxu0 0.0
    %4243 = vmatprep.subr.mxu0 0.0
    %4244 = vmatpush2.msra.mxu0 0.0
    %4245 = vmatprep.subr.mxu0 0.0
    %4246 = vmatpush2.msra.mxu0 0.0
    %4247 = vmatprep.subr.mxu0 0.0
    %4248 = vmatpush2.msra.mxu0 0.0
    %4249 = vmatprep.subr.mxu0 0.0
    %4250 = vmatpush2.msra.mxu0 0.0
    %4251 = vmatprep.subr.mxu0 0.0
    %4252 = vmatpush2.msra.mxu0 0.0
    %4253 = vmatprep.subr.mxu0 0.0
    %4254 = vmatpush2.msra.mxu0 0.0
    %4255 = vmatprep.mubr.f32.mxu0 0.0
    %4256 = vmatmul.mubr.f32.gmra.mxu0 %v4189
    %v4257 = vpop.f32.mrf.mxu0
    %v4258 = vadd.f32 %v4187, %v4257
    %v4259 = vpop.f32.mrf.mxu0
    %4260 = vdwg.mxu0
    %4261 = vst [vmem:[#allocation5] sm:$0x3] %v4258
    // Predicated region
    $region46: #{bert_for_news_classification.1} parent=1 // pred_check
      _
    $region47: #{bert_for_news_classification.1} parent=1 // pred_check_branch
      %4263 = sbr.rel (0) target = $region49
    $region48: #{bert_for_news_classification.1} parent=1 // pred_region
      %s4265 = ssub.s32 32, 32
      %4266 = vsyncadd [#allocation3], %s4265
      %s4268 = sshll.u32 [#allocation5], 4
      %s4269 = int_to_ptr.vmem [resolvable:$true] %s4268
      %4271 = dma.vmem_to_hbm [thread:$0]  %s4269, 32, %s10, [#allocation3]
    $region49: #{bert_for_news_classification.1} parent=1 // pred_fallthru
      _
    // Predicated region
    $region50: #{bert_for_news_classification.1} parent=1 // pred_check
      _
    $region51: #{bert_for_news_classification.1} parent=1 // pred_check_branch
      %4273 = sbr.rel (0) target = $region53
    $region52: #{bert_for_news_classification.1} parent=1 // pred_region
      %4274 = dma.done [#allocation3], 32
    $region53: #{bert_for_news_classification.1} parent=1 // pred_fallthru
      _
    %4275 = vsyncpa [#allocation3], 1
    %4276 = vsyncpa [#allocation4], 1

</llo_original>
